<compile_context>
chip_gen: v7x
topology: tpu7x:2x2x1
jax: 0.10.0
libtpu: 0.0.40
codegen_flags: <defaults>
</compile_context>

<pallas_src>
import jax
import jax.numpy as jnp
import numpy as np
from jax.experimental import pallas as pl
from jax.experimental.pallas import tpu as pltpu

# module hyper-parameters (from the PyTorch script)
A = 0.5            # switching threshold fraction `a`
P = 0.5            # gate-value threshold `p`
HIDDEN = 20
INPUT = 4
NUM_LAYERS = 2
OUTPUT = 4

HP = 128           # per-gate lane-group width (HIDDEN padded to one vreg lane dim)
GP = 4 * HP        # full padded gate width

# Monotone-equivalent pre-activation thresholds.
LOGIT_P = float(np.log(P / (1.0 - P)))   # sigmoid(z) > P  <=>  z > logit(P)  (= 0.0)
ATANH_P = float(np.arctanh(P))           # tanh(z)    > P  <=>  z > atanh(P)


def lstm_kernel(xg_ref, wh0_ref, w1_ref, b1_ref, wl_ref, bl_ref, out_ref):
    T = xg_ref.shape[0]                  # static at trace time
    B = xg_ref.shape[1]
    thresh = float(B * HIDDEN) * A       # batch-global switch threshold (python scalar)

    def sigmoid(z):
        # one EUP tanh per call instead of exp + reciprocal
        return 0.5 * (jnp.tanh(0.5 * z) + 1.0)

    def step(gates, c):
        # Switch counts from the PRE-activation gates so the XLU reduce can
        # overlap the EUP transcendentals.  Padded lanes have pre-activation
        # exactly 0.0 (zero-padded weight columns/bias), so they fail both
        # thresholds and no mask is needed.
        # Packed counts: low 16 bits = #(g > p), high 16 bits = #(i > p).
        flags = ((gates[:, 3 * HP:4 * HP] > ATANH_P).astype(jnp.int32)
                 + (gates[:, 0 * HP:1 * HP] > LOGIT_P).astype(jnp.int32) * 65536)
        tot = jnp.sum(flags)
        count_g = tot & 0xFFFF
        count_i = tot >> 16

        # Gate layout is [ i | f | o | g ]: one sigmoid over a (B, 3*HP) slab,
        # one tanh over (B, HP).
        acts = sigmoid(gates[:, 0:3 * HP])
        i = acts[:, 0 * HP:1 * HP]
        f = acts[:, 1 * HP:2 * HP]
        o = acts[:, 2 * HP:3 * HP]
        g = jnp.tanh(gates[:, 3 * HP:4 * HP])

        cond_i = jnp.logical_and(count_g < thresh, count_i > thresh)
        cond_g = jnp.logical_and(count_g > thresh, count_i < thresh)
        # PyTorch's `.item()` if/elif/else becomes a traced scalar select.
        addend = jnp.where(cond_i, i, jnp.where(cond_g, g, i * g))
        c_next = f * c + addend
        h_next = o * jnp.tanh(c_next)
        return h_next, c_next

    zeros = jnp.zeros((B, HP), jnp.float32)
    h0, c0, h1, c1 = zeros, zeros, zeros, zeros

    # Hoisted layer-1 bias broadcast (b0 is already folded into xg).
    b1 = jnp.broadcast_to(b1_ref[...], (B, GP))

    # T is small and static -> full unroll keeps LLO scheduling visibility.
    # TODO(synk): for large T switch to lax.fori_loop(..., unroll=2..4) over xg.
    for t in range(T):
        # layer 0: x-contribution (incl. bias) precomputed -> one recurrent matmul
        gates0 = xg_ref[t] + jnp.dot(h0, wh0_ref[...],
                                     preferred_element_type=jnp.float32)
        h0, c0 = step(gates0, c0)

        # layer 1: fused [Wx1; Wh1] matmul, 256-deep contraction
        lhs1 = jnp.concatenate([h0, h1], axis=1)           # (B, 2*HP)
        gates1 = jnp.dot(lhs1, w1_ref[...],
                         preferred_element_type=jnp.float32) + b1
        h1, c1 = step(gates1, c1)

    out_ref[...] = (jnp.dot(h1, wl_ref[...], preferred_element_type=jnp.float32)
                    + bl_ref[...])


def _pad_gate_cols(w):
    """(in_dim, 4*H) -> (in_dim, 4*HP).

    Original stacked gate order is [i, f, g, o]; padded lane-group order is
    [i, f, o, g] so one sigmoid covers groups 0..2 and one tanh covers group 3.
    All padding columns are zero, so real outputs are unchanged.
    """
    in_dim = w.shape[0]
    w4 = w.reshape(in_dim, 4, HIDDEN)
    w4 = w4[:, (0, 1, 3, 2), :]                      # [i, f, g, o] -> [i, f, o, g]
    w4 = jnp.pad(w4, ((0, 0), (0, 0), (0, HP - HIDDEN)))
    return w4.reshape(in_dim, 4 * HP)


def _pad_rows(w):
    """(H, N) -> (HP, N) with zero rows for the padded hidden columns."""
    return jnp.pad(w, ((0, HP - w.shape[0]), (0, 0)))


@jax.jit
def lstm_predictor(x, wx0, wh0, b0, wx1, wh1, b1, wl, bl):
    """x: (B, T, INPUT) float32 -> (B, OUTPUT) float32."""
    B, T, I = x.shape
    assert B * HIDDEN < 65536, "packed 16-bit switch counts would overflow"

    # Lane-aligned, zero-padded weights (tiny one-off XLA ops outside the kernel).
    wx0p = _pad_gate_cols(wx0)                 # (I,    4*HP)
    wh0p = _pad_rows(_pad_gate_cols(wh0))      # (HP,   4*HP)
    b0p = _pad_gate_cols(b0)                   # (1,    4*HP)
    wx1p = _pad_rows(_pad_gate_cols(wx1))      # (HP,   4*HP)
    wh1p = _pad_rows(_pad_gate_cols(wh1))      # (HP,   4*HP)
    b1p = _pad_gate_cols(b1)                   # (1,    4*HP)
    wlp = _pad_rows(wl)                        # (HP,   OUTPUT)
    w1p = jnp.concatenate([wx1p, wh1p], axis=0)  # fused layer-1 weights (2*HP, 4*HP)

    # Precompute layer-0 input projection for ALL timesteps in one matmul
    # (off the recurrent critical path); bias b0 folds in here.
    xg = jnp.einsum('bti,ig->tbg', x, wx0p) + b0p        # (T, B, 4*HP)

    vmem = lambda: pl.BlockSpec(memory_space=pltpu.MemorySpace.VMEM)
    # TODO(synk): for large B add a leading "parallel" batch grid axis so v7x's
    # second TensorCore gets half the batch; at B=2 a single grid point is right.
    return pl.pallas_call(
        lstm_kernel,
        out_shape=jax.ShapeDtypeStruct((B, OUTPUT), jnp.float32),
        in_specs=[vmem() for _ in range(6)],
        out_specs=vmem(),
    )(xg, wh0p, w1p, b1p, wlp, bl)


def init_params(key):
    """Deterministic parameter init (uniform +/- 1/sqrt(fan_in), like nn.Linear)."""
    keys = jax.random.split(key, 10)

    def lin(k, fan_in, shape):
        bound = 1.0 / np.sqrt(fan_in)
        return jax.random.uniform(k, shape, jnp.float32, -bound, bound)

    in0 = INPUT + HIDDEN
    in1 = HIDDEN + HIDDEN
    # gate order within the stacked 4H dim: [input, forget, cell, output]
    wx0 = lin(keys[0], in0, (INPUT, 4 * HIDDEN))
    wh0 = lin(keys[1], in0, (HIDDEN, 4 * HIDDEN))
    b0 = lin(keys[2], in0, (1, 4 * HIDDEN))
    wx1 = lin(keys[3], in1, (HIDDEN, 4 * HIDDEN))
    wh1 = lin(keys[4], in1, (HIDDEN, 4 * HIDDEN))
    b1 = lin(keys[5], in1, (1, 4 * HIDDEN))
    wl = lin(keys[6], HIDDEN, (HIDDEN, OUTPUT))
    bl = lin(keys[7], HIDDEN, (1, OUTPUT))
    return wx0, wh0, b0, wx1, wh1, b1, wl, bl


def reference_forward(x, wx0, wh0, b0, wx1, wh1, b1, wl, bl):
    """Pure-numpy reference mirroring the PyTorch forward exactly."""
    x = np.asarray(x)
    B, T, _ = x.shape
    h = [np.zeros((B, HIDDEN), np.float32) for _ in range(NUM_LAYERS)]
    c = [np.zeros((B, HIDDEN), np.float32) for _ in range(NUM_LAYERS)]
    Ws = [(np.asarray(wx0), np.asarray(wh0), np.asarray(b0)),
          (np.asarray(wx1), np.asarray(wh1), np.asarray(b1))]

    def sig(z):
        return 1.0 / (1.0 + np.exp(-z))

    for t in range(T):
        for layer in range(NUM_LAYERS):
            inp = x[:, t, :] if layer == 0 else h[layer - 1]
            wx, wh, b = Ws[layer]
            gates = inp @ wx + h[layer] @ wh + b
            i = sig(gates[:, 0 * HIDDEN:1 * HIDDEN])
            f = sig(gates[:, 1 * HIDDEN:2 * HIDDEN])
            g = np.tanh(gates[:, 2 * HIDDEN:3 * HIDDEN])
            o = sig(gates[:, 3 * HIDDEN:4 * HIDDEN])
            fc = f * c[layer]
            cg = int((g > P).sum())
            ci = int((i > P).sum())
            total = g.size
            if cg < total * A and ci > total * A:
                c_next = fc + i
            elif cg > total * A and ci < total * A:
                c_next = fc + g
            else:
                c_next = fc + i * g
            h[layer] = o * np.tanh(c_next)
            c[layer] = c_next
    return h[-1] @ np.asarray(wl) + np.asarray(bl)


if __name__ == "__main__":
    key = jax.random.PRNGKey(0)
    kx, kp = jax.random.split(key)

    B, T = 2, 8
    x = jax.random.normal(kx, (B, T, INPUT), dtype=jnp.float32)
    params = init_params(kp)

    out = lstm_predictor(x, *params)
    out = jax.block_until_ready(out)

    ref = reference_forward(x, *params)
    np.testing.assert_allclose(np.asarray(out), ref, rtol=1e-4, atol=1e-4)

    print("KERNEL_OK")
</pallas_src>

<mosaic_0001>
module attributes {stable_mosaic.version = 11 : i64} {
  func.func @lstm_kernel(%arg0: memref<8x2x512xf32, #tpu.memory_space<vmem>>, %arg1: memref<128x512xf32, #tpu.memory_space<vmem>>, %arg2: memref<256x512xf32, #tpu.memory_space<vmem>>, %arg3: memref<1x512xf32, #tpu.memory_space<vmem>>, %arg4: memref<128x4xf32, #tpu.memory_space<vmem>>, %arg5: memref<1x4xf32, #tpu.memory_space<vmem>>, %arg6: memref<2x4xf32, #tpu.memory_space<vmem>>) attributes {dimension_semantics = [], scalar_prefetch = 0 : i64, scratch_operands = 0 : i64, tpu.core_type = #tpu.core_type<tc>} {
    %cst = arith.constant 0.000000e+00 : f32
    %0 = vector.broadcast %cst : f32 to vector<2x128xf32>
    %c0 = arith.constant 0 : index
    %c0_0 = arith.constant 0 : index
    %1 = vector.load %arg3[%c0, %c0_0] : memref<1x512xf32, #tpu.memory_space<vmem>>, vector<1x512xf32>
    %2 = vector.shape_cast %1 : vector<1x512xf32> to vector<1x512xf32>
    %3 = vector.broadcast %2 : vector<1x512xf32> to vector<2x512xf32>
    %c0_1 = arith.constant 0 : index
    %c0_2 = arith.constant 0 : index
    %c0_3 = arith.constant 0 : index
    %4 = vector.load %arg0[%c0_1, %c0_2, %c0_3] : memref<8x2x512xf32, #tpu.memory_space<vmem>>, vector<1x2x512xf32>
    %5 = vector.shape_cast %4 : vector<1x2x512xf32> to vector<2x512xf32>
    %c0_4 = arith.constant 0 : index
    %c0_5 = arith.constant 0 : index
    %6 = vector.load %arg1[%c0_4, %c0_5] : memref<128x512xf32, #tpu.memory_space<vmem>>, vector<128x512xf32>
    %cst_6 = arith.constant dense<0.000000e+00> : vector<2x512xf32>
    %7 = tpu.matmul %0, %6, %cst_6 {dimension_numbers = #tpu.dot_dimension_numbers<[1], [0], [0], [1], [0, 0, 1, 1], [], []>} : vector<2x128xf32>, vector<128x512xf32>, vector<2x512xf32> -> vector<2x512xf32>
    %8 = arith.addf %5, %7 : vector<2x512xf32>
    %9 = vector.extract_strided_slice %8 {offsets = [0, 384], sizes = [2, 128], strides = [1, 1]} : vector<2x512xf32> to vector<2x128xf32>
    %cst_7 = arith.constant 0.549306154 : f32
    %10 = vector.broadcast %cst_7 : f32 to vector<2x128xf32>
    %11 = arith.cmpf ogt, %9, %10 : vector<2x128xf32>
    %12 = arith.extui %11 : vector<2x128xi1> to vector<2x128xi32>
    %13 = vector.extract_strided_slice %8 {offsets = [0, 0], sizes = [2, 128], strides = [1, 1]} : vector<2x512xf32> to vector<2x128xf32>
    %cst_8 = arith.constant 0.000000e+00 : f32
    %14 = vector.broadcast %cst_8 : f32 to vector<2x128xf32>
    %15 = arith.cmpf ogt, %13, %14 : vector<2x128xf32>
    %16 = arith.extui %15 : vector<2x128xi1> to vector<2x128xi32>
    %c65536_i32 = arith.constant 65536 : i32
    %17 = vector.broadcast %c65536_i32 : i32 to vector<2x128xi32>
    %18 = arith.muli %16, %17 : vector<2x128xi32>
    %19 = arith.addi %12, %18 : vector<2x128xi32>
    %20 = vector.shape_cast %19 : vector<2x128xi32> to vector<1x2x128xi32>
    %cst_9 = arith.constant dense<0> : vector<1xi32>
    %21 = vector.multi_reduction <add>, %20, %cst_9 [1, 2] : vector<1x2x128xi32> to vector<1xi32>
    %22 = vector.shape_cast %21 : vector<1xi32> to vector<1x1x1xi32>
    %23 = vector.extract %22[0, 0, 0] : i32 from vector<1x1x1xi32>
    %c65535_i32 = arith.constant 65535 : i32
    %24 = arith.andi %23, %c65535_i32 : i32
    %c16_i32 = arith.constant 16 : i32
    %25 = arith.shrsi %23, %c16_i32 : i32
    %26 = vector.extract_strided_slice %8 {offsets = [0, 0], sizes = [2, 384], strides = [1, 1]} : vector<2x512xf32> to vector<2x384xf32>
    %cst_10 = arith.constant 5.000000e-01 : f32
    %27 = vector.broadcast %cst_10 : f32 to vector<2x384xf32>
    %28 = arith.mulf %27, %26 : vector<2x384xf32>
    %29 = math.tanh %28 : vector<2x384xf32>
    %cst_11 = arith.constant 1.000000e+00 : f32
    %30 = vector.broadcast %cst_11 : f32 to vector<2x384xf32>
    %31 = arith.addf %29, %30 : vector<2x384xf32>
    %cst_12 = arith.constant 5.000000e-01 : f32
    %32 = vector.broadcast %cst_12 : f32 to vector<2x384xf32>
    %33 = arith.mulf %32, %31 : vector<2x384xf32>
    %34 = vector.extract_strided_slice %33 {offsets = [0, 0], sizes = [2, 128], strides = [1, 1]} : vector<2x384xf32> to vector<2x128xf32>
    %35 = vector.extract_strided_slice %33 {offsets = [0, 128], sizes = [2, 128], strides = [1, 1]} : vector<2x384xf32> to vector<2x128xf32>
    %36 = vector.extract_strided_slice %33 {offsets = [0, 256], sizes = [2, 128], strides = [1, 1]} : vector<2x384xf32> to vector<2x128xf32>
    %37 = vector.extract_strided_slice %8 {offsets = [0, 384], sizes = [2, 128], strides = [1, 1]} : vector<2x512xf32> to vector<2x128xf32>
    %38 = math.tanh %37 : vector<2x128xf32>
    %39 = arith.sitofp %24 : i32 to f32
    %cst_13 = arith.constant 2.000000e+01 : f32
    %40 = arith.cmpf olt, %39, %cst_13 : f32
    %41 = arith.sitofp %25 : i32 to f32
    %cst_14 = arith.constant 2.000000e+01 : f32
    %42 = arith.cmpf ogt, %41, %cst_14 : f32
    %43 = arith.andi %40, %42 : i1
    %44 = arith.sitofp %24 : i32 to f32
    %cst_15 = arith.constant 2.000000e+01 : f32
    %45 = arith.cmpf ogt, %44, %cst_15 : f32
    %46 = arith.sitofp %25 : i32 to f32
    %cst_16 = arith.constant 2.000000e+01 : f32
    %47 = arith.cmpf olt, %46, %cst_16 : f32
    %48 = arith.andi %45, %47 : i1
    %49 = arith.mulf %34, %38 : vector<2x128xf32>
    %50 = arith.select %48, %38, %49 : vector<2x128xf32>
    %51 = arith.select %43, %34, %50 : vector<2x128xf32>
    %52 = arith.mulf %35, %0 : vector<2x128xf32>
    %53 = arith.addf %52, %51 : vector<2x128xf32>
    %54 = math.tanh %53 : vector<2x128xf32>
    %55 = arith.mulf %36, %54 : vector<2x128xf32>
    %56 = tpu.concatenate %55, %0 in 1 : vector<2x128xf32>, vector<2x128xf32> -> vector<2x256xf32>
    %c0_17 = arith.constant 0 : index
    %c0_18 = arith.constant 0 : index
    %57 = vector.load %arg2[%c0_17, %c0_18] : memref<256x512xf32, #tpu.memory_space<vmem>>, vector<256x512xf32>
    %cst_19 = arith.constant dense<0.000000e+00> : vector<2x512xf32>
    %58 = tpu.matmul %56, %57, %cst_19 {dimension_numbers = #tpu.dot_dimension_numbers<[1], [0], [0], [1], [0, 0, 1, 1], [], []>} : vector<2x256xf32>, vector<256x512xf32>, vector<2x512xf32> -> vector<2x512xf32>
    %59 = arith.addf %58, %3 : vector<2x512xf32>
    %60 = vector.extract_strided_slice %59 {offsets = [0, 384], sizes = [2, 128], strides = [1, 1]} : vector<2x512xf32> to vector<2x128xf32>
    %cst_20 = arith.constant 0.549306154 : f32
    %61 = vector.broadcast %cst_20 : f32 to vector<2x128xf32>
    %62 = arith.cmpf ogt, %60, %61 : vector<2x128xf32>
    %63 = arith.extui %62 : vector<2x128xi1> to vector<2x128xi32>
    %64 = vector.extract_strided_slice %59 {offsets = [0, 0], sizes = [2, 128], strides = [1, 1]} : vector<2x512xf32> to vector<2x128xf32>
    %cst_21 = arith.constant 0.000000e+00 : f32
    %65 = vector.broadcast %cst_21 : f32 to vector<2x128xf32>
    %66 = arith.cmpf ogt, %64, %65 : vector<2x128xf32>
    %67 = arith.extui %66 : vector<2x128xi1> to vector<2x128xi32>
    %c65536_i32_22 = arith.constant 65536 : i32
    %68 = vector.broadcast %c65536_i32_22 : i32 to vector<2x128xi32>
    %69 = arith.muli %67, %68 : vector<2x128xi32>
    %70 = arith.addi %63, %69 : vector<2x128xi32>
    %71 = vector.shape_cast %70 : vector<2x128xi32> to vector<1x2x128xi32>
    %cst_23 = arith.constant dense<0> : vector<1xi32>
    %72 = vector.multi_reduction <add>, %71, %cst_23 [1, 2] : vector<1x2x128xi32> to vector<1xi32>
    %73 = vector.shape_cast %72 : vector<1xi32> to vector<1x1x1xi32>
    %74 = vector.extract %73[0, 0, 0] : i32 from vector<1x1x1xi32>
    %c65535_i32_24 = arith.constant 65535 : i32
    %75 = arith.andi %74, %c65535_i32_24 : i32
    %c16_i32_25 = arith.constant 16 : i32
    %76 = arith.shrsi %74, %c16_i32_25 : i32
    %77 = vector.extract_strided_slice %59 {offsets = [0, 0], sizes = [2, 384], strides = [1, 1]} : vector<2x512xf32> to vector<2x384xf32>
    %cst_26 = arith.constant 5.000000e-01 : f32
    %78 = vector.broadcast %cst_26 : f32 to vector<2x384xf32>
    %79 = arith.mulf %78, %77 : vector<2x384xf32>
    %80 = math.tanh %79 : vector<2x384xf32>
    %cst_27 = arith.constant 1.000000e+00 : f32
    %81 = vector.broadcast %cst_27 : f32 to vector<2x384xf32>
    %82 = arith.addf %80, %81 : vector<2x384xf32>
    %cst_28 = arith.constant 5.000000e-01 : f32
    %83 = vector.broadcast %cst_28 : f32 to vector<2x384xf32>
    %84 = arith.mulf %83, %82 : vector<2x384xf32>
    %85 = vector.extract_strided_slice %84 {offsets = [0, 0], sizes = [2, 128], strides = [1, 1]} : vector<2x384xf32> to vector<2x128xf32>
    %86 = vector.extract_strided_slice %84 {offsets = [0, 128], sizes = [2, 128], strides = [1, 1]} : vector<2x384xf32> to vector<2x128xf32>
    %87 = vector.extract_strided_slice %84 {offsets = [0, 256], sizes = [2, 128], strides = [1, 1]} : vector<2x384xf32> to vector<2x128xf32>
    %88 = vector.extract_strided_slice %59 {offsets = [0, 384], sizes = [2, 128], strides = [1, 1]} : vector<2x512xf32> to vector<2x128xf32>
    %89 = math.tanh %88 : vector<2x128xf32>
    %90 = arith.sitofp %75 : i32 to f32
    %cst_29 = arith.constant 2.000000e+01 : f32
    %91 = arith.cmpf olt, %90, %cst_29 : f32
    %92 = arith.sitofp %76 : i32 to f32
    %cst_30 = arith.constant 2.000000e+01 : f32
    %93 = arith.cmpf ogt, %92, %cst_30 : f32
    %94 = arith.andi %91, %93 : i1
    %95 = arith.sitofp %75 : i32 to f32
    %cst_31 = arith.constant 2.000000e+01 : f32
    %96 = arith.cmpf ogt, %95, %cst_31 : f32
    %97 = arith.sitofp %76 : i32 to f32
    %cst_32 = arith.constant 2.000000e+01 : f32
    %98 = arith.cmpf olt, %97, %cst_32 : f32
    %99 = arith.andi %96, %98 : i1
    %100 = arith.mulf %85, %89 : vector<2x128xf32>
    %101 = arith.select %99, %89, %100 : vector<2x128xf32>
    %102 = arith.select %94, %85, %101 : vector<2x128xf32>
    %103 = arith.mulf %86, %0 : vector<2x128xf32>
    %104 = arith.addf %103, %102 : vector<2x128xf32>
    %105 = math.tanh %104 : vector<2x128xf32>
    %106 = arith.mulf %87, %105 : vector<2x128xf32>
    %c1 = arith.constant 1 : index
    %c0_33 = arith.constant 0 : index
    %c0_34 = arith.constant 0 : index
    %107 = vector.load %arg0[%c1, %c0_33, %c0_34] : memref<8x2x512xf32, #tpu.memory_space<vmem>>, vector<1x2x512xf32>
    %108 = vector.shape_cast %107 : vector<1x2x512xf32> to vector<2x512xf32>
    %c0_35 = arith.constant 0 : index
    %c0_36 = arith.constant 0 : index
    %109 = vector.load %arg1[%c0_35, %c0_36] : memref<128x512xf32, #tpu.memory_space<vmem>>, vector<128x512xf32>
    %cst_37 = arith.constant dense<0.000000e+00> : vector<2x512xf32>
    %110 = tpu.matmul %55, %109, %cst_37 {dimension_numbers = #tpu.dot_dimension_numbers<[1], [0], [0], [1], [0, 0, 1, 1], [], []>} : vector<2x128xf32>, vector<128x512xf32>, vector<2x512xf32> -> vector<2x512xf32>
    %111 = arith.addf %108, %110 : vector<2x512xf32>
    %112 = vector.extract_strided_slice %111 {offsets = [0, 384], sizes = [2, 128], strides = [1, 1]} : vector<2x512xf32> to vector<2x128xf32>
    %cst_38 = arith.constant 0.549306154 : f32
    %113 = vector.broadcast %cst_38 : f32 to vector<2x128xf32>
    %114 = arith.cmpf ogt, %112, %113 : vector<2x128xf32>
    %115 = arith.extui %114 : vector<2x128xi1> to vector<2x128xi32>
    %116 = vector.extract_strided_slice %111 {offsets = [0, 0], sizes = [2, 128], strides = [1, 1]} : vector<2x512xf32> to vector<2x128xf32>
    %cst_39 = arith.constant 0.000000e+00 : f32
    %117 = vector.broadcast %cst_39 : f32 to vector<2x128xf32>
    %118 = arith.cmpf ogt, %116, %117 : vector<2x128xf32>
    %119 = arith.extui %118 : vector<2x128xi1> to vector<2x128xi32>
    %c65536_i32_40 = arith.constant 65536 : i32
    %120 = vector.broadcast %c65536_i32_40 : i32 to vector<2x128xi32>
    %121 = arith.muli %119, %120 : vector<2x128xi32>
    %122 = arith.addi %115, %121 : vector<2x128xi32>
    %123 = vector.shape_cast %122 : vector<2x128xi32> to vector<1x2x128xi32>
    %cst_41 = arith.constant dense<0> : vector<1xi32>
    %124 = vector.multi_reduction <add>, %123, %cst_41 [1, 2] : vector<1x2x128xi32> to vector<1xi32>
    %125 = vector.shape_cast %124 : vector<1xi32> to vector<1x1x1xi32>
    %126 = vector.extract %125[0, 0, 0] : i32 from vector<1x1x1xi32>
    %c65535_i32_42 = arith.constant 65535 : i32
    %127 = arith.andi %126, %c65535_i32_42 : i32
    %c16_i32_43 = arith.constant 16 : i32
    %128 = arith.shrsi %126, %c16_i32_43 : i32
    %129 = vector.extract_strided_slice %111 {offsets = [0, 0], sizes = [2, 384], strides = [1, 1]} : vector<2x512xf32> to vector<2x384xf32>
    %cst_44 = arith.constant 5.000000e-01 : f32
    %130 = vector.broadcast %cst_44 : f32 to vector<2x384xf32>
    %131 = arith.mulf %130, %129 : vector<2x384xf32>
    %132 = math.tanh %131 : vector<2x384xf32>
    %cst_45 = arith.constant 1.000000e+00 : f32
    %133 = vector.broadcast %cst_45 : f32 to vector<2x384xf32>
    %134 = arith.addf %132, %133 : vector<2x384xf32>
    %cst_46 = arith.constant 5.000000e-01 : f32
    %135 = vector.broadcast %cst_46 : f32 to vector<2x384xf32>
    %136 = arith.mulf %135, %134 : vector<2x384xf32>
    %137 = vector.extract_strided_slice %136 {offsets = [0, 0], sizes = [2, 128], strides = [1, 1]} : vector<2x384xf32> to vector<2x128xf32>
    %138 = vector.extract_strided_slice %136 {offsets = [0, 128], sizes = [2, 128], strides = [1, 1]} : vector<2x384xf32> to vector<2x128xf32>
    %139 = vector.extract_strided_slice %136 {offsets = [0, 256], sizes = [2, 128], strides = [1, 1]} : vector<2x384xf32> to vector<2x128xf32>
    %140 = vector.extract_strided_slice %111 {offsets = [0, 384], sizes = [2, 128], strides = [1, 1]} : vector<2x512xf32> to vector<2x128xf32>
    %141 = math.tanh %140 : vector<2x128xf32>
    %142 = arith.sitofp %127 : i32 to f32
    %cst_47 = arith.constant 2.000000e+01 : f32
    %143 = arith.cmpf olt, %142, %cst_47 : f32
    %144 = arith.sitofp %128 : i32 to f32
    %cst_48 = arith.constant 2.000000e+01 : f32
    %145 = arith.cmpf ogt, %144, %cst_48 : f32
    %146 = arith.andi %143, %145 : i1
    %147 = arith.sitofp %127 : i32 to f32
    %cst_49 = arith.constant 2.000000e+01 : f32
    %148 = arith.cmpf ogt, %147, %cst_49 : f32
    %149 = arith.sitofp %128 : i32 to f32
    %cst_50 = arith.constant 2.000000e+01 : f32
    %150 = arith.cmpf olt, %149, %cst_50 : f32
    %151 = arith.andi %148, %150 : i1
    %152 = arith.mulf %137, %141 : vector<2x128xf32>
    %153 = arith.select %151, %141, %152 : vector<2x128xf32>
    %154 = arith.select %146, %137, %153 : vector<2x128xf32>
    %155 = arith.mulf %138, %53 : vector<2x128xf32>
    %156 = arith.addf %155, %154 : vector<2x128xf32>
    %157 = math.tanh %156 : vector<2x128xf32>
    %158 = arith.mulf %139, %157 : vector<2x128xf32>
    %159 = tpu.concatenate %158, %106 in 1 : vector<2x128xf32>, vector<2x128xf32> -> vector<2x256xf32>
    %c0_51 = arith.constant 0 : index
    %c0_52 = arith.constant 0 : index
    %160 = vector.load %arg2[%c0_51, %c0_52] : memref<256x512xf32, #tpu.memory_space<vmem>>, vector<256x512xf32>
    %cst_53 = arith.constant dense<0.000000e+00> : vector<2x512xf32>
    %161 = tpu.matmul %159, %160, %cst_53 {dimension_numbers = #tpu.dot_dimension_numbers<[1], [0], [0], [1], [0, 0, 1, 1], [], []>} : vector<2x256xf32>, vector<256x512xf32>, vector<2x512xf32> -> vector<2x512xf32>
    %162 = arith.addf %161, %3 : vector<2x512xf32>
    %163 = vector.extract_strided_slice %162 {offsets = [0, 384], sizes = [2, 128], strides = [1, 1]} : vector<2x512xf32> to vector<2x128xf32>
    %cst_54 = arith.constant 0.549306154 : f32
    %164 = vector.broadcast %cst_54 : f32 to vector<2x128xf32>
    %165 = arith.cmpf ogt, %163, %164 : vector<2x128xf32>
    %166 = arith.extui %165 : vector<2x128xi1> to vector<2x128xi32>
    %167 = vector.extract_strided_slice %162 {offsets = [0, 0], sizes = [2, 128], strides = [1, 1]} : vector<2x512xf32> to vector<2x128xf32>
    %cst_55 = arith.constant 0.000000e+00 : f32
    %168 = vector.broadcast %cst_55 : f32 to vector<2x128xf32>
    %169 = arith.cmpf ogt, %167, %168 : vector<2x128xf32>
    %170 = arith.extui %169 : vector<2x128xi1> to vector<2x128xi32>
    %c65536_i32_56 = arith.constant 65536 : i32
    %171 = vector.broadcast %c65536_i32_56 : i32 to vector<2x128xi32>
    %172 = arith.muli %170, %171 : vector<2x128xi32>
    %173 = arith.addi %166, %172 : vector<2x128xi32>
    %174 = vector.shape_cast %173 : vector<2x128xi32> to vector<1x2x128xi32>
    %cst_57 = arith.constant dense<0> : vector<1xi32>
    %175 = vector.multi_reduction <add>, %174, %cst_57 [1, 2] : vector<1x2x128xi32> to vector<1xi32>
    %176 = vector.shape_cast %175 : vector<1xi32> to vector<1x1x1xi32>
    %177 = vector.extract %176[0, 0, 0] : i32 from vector<1x1x1xi32>
    %c65535_i32_58 = arith.constant 65535 : i32
    %178 = arith.andi %177, %c65535_i32_58 : i32
    %c16_i32_59 = arith.constant 16 : i32
    %179 = arith.shrsi %177, %c16_i32_59 : i32
    %180 = vector.extract_strided_slice %162 {offsets = [0, 0], sizes = [2, 384], strides = [1, 1]} : vector<2x512xf32> to vector<2x384xf32>
    %cst_60 = arith.constant 5.000000e-01 : f32
    %181 = vector.broadcast %cst_60 : f32 to vector<2x384xf32>
    %182 = arith.mulf %181, %180 : vector<2x384xf32>
    %183 = math.tanh %182 : vector<2x384xf32>
    %cst_61 = arith.constant 1.000000e+00 : f32
    %184 = vector.broadcast %cst_61 : f32 to vector<2x384xf32>
    %185 = arith.addf %183, %184 : vector<2x384xf32>
    %cst_62 = arith.constant 5.000000e-01 : f32
    %186 = vector.broadcast %cst_62 : f32 to vector<2x384xf32>
    %187 = arith.mulf %186, %185 : vector<2x384xf32>
    %188 = vector.extract_strided_slice %187 {offsets = [0, 0], sizes = [2, 128], strides = [1, 1]} : vector<2x384xf32> to vector<2x128xf32>
    %189 = vector.extract_strided_slice %187 {offsets = [0, 128], sizes = [2, 128], strides = [1, 1]} : vector<2x384xf32> to vector<2x128xf32>
    %190 = vector.extract_strided_slice %187 {offsets = [0, 256], sizes = [2, 128], strides = [1, 1]} : vector<2x384xf32> to vector<2x128xf32>
    %191 = vector.extract_strided_slice %162 {offsets = [0, 384], sizes = [2, 128], strides = [1, 1]} : vector<2x512xf32> to vector<2x128xf32>
    %192 = math.tanh %191 : vector<2x128xf32>
    %193 = arith.sitofp %178 : i32 to f32
    %cst_63 = arith.constant 2.000000e+01 : f32
    %194 = arith.cmpf olt, %193, %cst_63 : f32
    %195 = arith.sitofp %179 : i32 to f32
    %cst_64 = arith.constant 2.000000e+01 : f32
    %196 = arith.cmpf ogt, %195, %cst_64 : f32
    %197 = arith.andi %194, %196 : i1
    %198 = arith.sitofp %178 : i32 to f32
    %cst_65 = arith.constant 2.000000e+01 : f32
    %199 = arith.cmpf ogt, %198, %cst_65 : f32
    %200 = arith.sitofp %179 : i32 to f32
    %cst_66 = arith.constant 2.000000e+01 : f32
    %201 = arith.cmpf olt, %200, %cst_66 : f32
    %202 = arith.andi %199, %201 : i1
    %203 = arith.mulf %188, %192 : vector<2x128xf32>
    %204 = arith.select %202, %192, %203 : vector<2x128xf32>
    %205 = arith.select %197, %188, %204 : vector<2x128xf32>
    %206 = arith.mulf %189, %104 : vector<2x128xf32>
    %207 = arith.addf %206, %205 : vector<2x128xf32>
    %208 = math.tanh %207 : vector<2x128xf32>
    %209 = arith.mulf %190, %208 : vector<2x128xf32>
    %c2 = arith.constant 2 : index
    %c0_67 = arith.constant 0 : index
    %c0_68 = arith.constant 0 : index
    %210 = vector.load %arg0[%c2, %c0_67, %c0_68] : memref<8x2x512xf32, #tpu.memory_space<vmem>>, vector<1x2x512xf32>
    %211 = vector.shape_cast %210 : vector<1x2x512xf32> to vector<2x512xf32>
    %c0_69 = arith.constant 0 : index
    %c0_70 = arith.constant 0 : index
    %212 = vector.load %arg1[%c0_69, %c0_70] : memref<128x512xf32, #tpu.memory_space<vmem>>, vector<128x512xf32>
    %cst_71 = arith.constant dense<0.000000e+00> : vector<2x512xf32>
    %213 = tpu.matmul %158, %212, %cst_71 {dimension_numbers = #tpu.dot_dimension_numbers<[1], [0], [0], [1], [0, 0, 1, 1], [], []>} : vector<2x128xf32>, vector<128x512xf32>, vector<2x512xf32> -> vector<2x512xf32>
    %214 = arith.addf %211, %213 : vector<2x512xf32>
    %215 = vector.extract_strided_slice %214 {offsets = [0, 384], sizes = [2, 128], strides = [1, 1]} : vector<2x512xf32> to vector<2x128xf32>
    %cst_72 = arith.constant 0.549306154 : f32
    %216 = vector.broadcast %cst_72 : f32 to vector<2x128xf32>
    %217 = arith.cmpf ogt, %215, %216 : vector<2x128xf32>
    %218 = arith.extui %217 : vector<2x128xi1> to vector<2x128xi32>
    %219 = vector.extract_strided_slice %214 {offsets = [0, 0], sizes = [2, 128], strides = [1, 1]} : vector<2x512xf32> to vector<2x128xf32>
    %cst_73 = arith.constant 0.000000e+00 : f32
    %220 = vector.broadcast %cst_73 : f32 to vector<2x128xf32>
    %221 = arith.cmpf ogt, %219, %220 : vector<2x128xf32>
    %222 = arith.extui %221 : vector<2x128xi1> to vector<2x128xi32>
    %c65536_i32_74 = arith.constant 65536 : i32
    %223 = vector.broadcast %c65536_i32_74 : i32 to vector<2x128xi32>
    %224 = arith.muli %222, %223 : vector<2x128xi32>
    %225 = arith.addi %218, %224 : vector<2x128xi32>
    %226 = vector.shape_cast %225 : vector<2x128xi32> to vector<1x2x128xi32>
    %cst_75 = arith.constant dense<0> : vector<1xi32>
    %227 = vector.multi_reduction <add>, %226, %cst_75 [1, 2] : vector<1x2x128xi32> to vector<1xi32>
    %228 = vector.shape_cast %227 : vector<1xi32> to vector<1x1x1xi32>
    %229 = vector.extract %228[0, 0, 0] : i32 from vector<1x1x1xi32>
    %c65535_i32_76 = arith.constant 65535 : i32
    %230 = arith.andi %229, %c65535_i32_76 : i32
    %c16_i32_77 = arith.constant 16 : i32
    %231 = arith.shrsi %229, %c16_i32_77 : i32
    %232 = vector.extract_strided_slice %214 {offsets = [0, 0], sizes = [2, 384], strides = [1, 1]} : vector<2x512xf32> to vector<2x384xf32>
    %cst_78 = arith.constant 5.000000e-01 : f32
    %233 = vector.broadcast %cst_78 : f32 to vector<2x384xf32>
    %234 = arith.mulf %233, %232 : vector<2x384xf32>
    %235 = math.tanh %234 : vector<2x384xf32>
    %cst_79 = arith.constant 1.000000e+00 : f32
    %236 = vector.broadcast %cst_79 : f32 to vector<2x384xf32>
    %237 = arith.addf %235, %236 : vector<2x384xf32>
    %cst_80 = arith.constant 5.000000e-01 : f32
    %238 = vector.broadcast %cst_80 : f32 to vector<2x384xf32>
    %239 = arith.mulf %238, %237 : vector<2x384xf32>
    %240 = vector.extract_strided_slice %239 {offsets = [0, 0], sizes = [2, 128], strides = [1, 1]} : vector<2x384xf32> to vector<2x128xf32>
    %241 = vector.extract_strided_slice %239 {offsets = [0, 128], sizes = [2, 128], strides = [1, 1]} : vector<2x384xf32> to vector<2x128xf32>
    %242 = vector.extract_strided_slice %239 {offsets = [0, 256], sizes = [2, 128], strides = [1, 1]} : vector<2x384xf32> to vector<2x128xf32>
    %243 = vector.extract_strided_slice %214 {offsets = [0, 384], sizes = [2, 128], strides = [1, 1]} : vector<2x512xf32> to vector<2x128xf32>
    %244 = math.tanh %243 : vector<2x128xf32>
    %245 = arith.sitofp %230 : i32 to f32
    %cst_81 = arith.constant 2.000000e+01 : f32
    %246 = arith.cmpf olt, %245, %cst_81 : f32
    %247 = arith.sitofp %231 : i32 to f32
    %cst_82 = arith.constant 2.000000e+01 : f32
    %248 = arith.cmpf ogt, %247, %cst_82 : f32
    %249 = arith.andi %246, %248 : i1
    %250 = arith.sitofp %230 : i32 to f32
    %cst_83 = arith.constant 2.000000e+01 : f32
    %251 = arith.cmpf ogt, %250, %cst_83 : f32
    %252 = arith.sitofp %231 : i32 to f32
    %cst_84 = arith.constant 2.000000e+01 : f32
    %253 = arith.cmpf olt, %252, %cst_84 : f32
    %254 = arith.andi %251, %253 : i1
    %255 = arith.mulf %240, %244 : vector<2x128xf32>
    %256 = arith.select %254, %244, %255 : vector<2x128xf32>
    %257 = arith.select %249, %240, %256 : vector<2x128xf32>
    %258 = arith.mulf %241, %156 : vector<2x128xf32>
    %259 = arith.addf %258, %257 : vector<2x128xf32>
    %260 = math.tanh %259 : vector<2x128xf32>
    %261 = arith.mulf %242, %260 : vector<2x128xf32>
    %262 = tpu.concatenate %261, %209 in 1 : vector<2x128xf32>, vector<2x128xf32> -> vector<2x256xf32>
    %c0_85 = arith.constant 0 : index
    %c0_86 = arith.constant 0 : index
    %263 = vector.load %arg2[%c0_85, %c0_86] : memref<256x512xf32, #tpu.memory_space<vmem>>, vector<256x512xf32>
    %cst_87 = arith.constant dense<0.000000e+00> : vector<2x512xf32>
    %264 = tpu.matmul %262, %263, %cst_87 {dimension_numbers = #tpu.dot_dimension_numbers<[1], [0], [0], [1], [0, 0, 1, 1], [], []>} : vector<2x256xf32>, vector<256x512xf32>, vector<2x512xf32> -> vector<2x512xf32>
    %265 = arith.addf %264, %3 : vector<2x512xf32>
    %266 = vector.extract_strided_slice %265 {offsets = [0, 384], sizes = [2, 128], strides = [1, 1]} : vector<2x512xf32> to vector<2x128xf32>
    %cst_88 = arith.constant 0.549306154 : f32
    %267 = vector.broadcast %cst_88 : f32 to vector<2x128xf32>
    %268 = arith.cmpf ogt, %266, %267 : vector<2x128xf32>
    %269 = arith.extui %268 : vector<2x128xi1> to vector<2x128xi32>
    %270 = vector.extract_strided_slice %265 {offsets = [0, 0], sizes = [2, 128], strides = [1, 1]} : vector<2x512xf32> to vector<2x128xf32>
    %cst_89 = arith.constant 0.000000e+00 : f32
    %271 = vector.broadcast %cst_89 : f32 to vector<2x128xf32>
    %272 = arith.cmpf ogt, %270, %271 : vector<2x128xf32>
    %273 = arith.extui %272 : vector<2x128xi1> to vector<2x128xi32>
    %c65536_i32_90 = arith.constant 65536 : i32
    %274 = vector.broadcast %c65536_i32_90 : i32 to vector<2x128xi32>
    %275 = arith.muli %273, %274 : vector<2x128xi32>
    %276 = arith.addi %269, %275 : vector<2x128xi32>
    %277 = vector.shape_cast %276 : vector<2x128xi32> to vector<1x2x128xi32>
    %cst_91 = arith.constant dense<0> : vector<1xi32>
    %278 = vector.multi_reduction <add>, %277, %cst_91 [1, 2] : vector<1x2x128xi32> to vector<1xi32>
    %279 = vector.shape_cast %278 : vector<1xi32> to vector<1x1x1xi32>
    %280 = vector.extract %279[0, 0, 0] : i32 from vector<1x1x1xi32>
    %c65535_i32_92 = arith.constant 65535 : i32
    %281 = arith.andi %280, %c65535_i32_92 : i32
    %c16_i32_93 = arith.constant 16 : i32
    %282 = arith.shrsi %280, %c16_i32_93 : i32
    %283 = vector.extract_strided_slice %265 {offsets = [0, 0], sizes = [2, 384], strides = [1, 1]} : vector<2x512xf32> to vector<2x384xf32>
    %cst_94 = arith.constant 5.000000e-01 : f32
    %284 = vector.broadcast %cst_94 : f32 to vector<2x384xf32>
    %285 = arith.mulf %284, %283 : vector<2x384xf32>
    %286 = math.tanh %285 : vector<2x384xf32>
    %cst_95 = arith.constant 1.000000e+00 : f32
    %287 = vector.broadcast %cst_95 : f32 to vector<2x384xf32>
    %288 = arith.addf %286, %287 : vector<2x384xf32>
    %cst_96 = arith.constant 5.000000e-01 : f32
    %289 = vector.broadcast %cst_96 : f32 to vector<2x384xf32>
    %290 = arith.mulf %289, %288 : vector<2x384xf32>
    %291 = vector.extract_strided_slice %290 {offsets = [0, 0], sizes = [2, 128], strides = [1, 1]} : vector<2x384xf32> to vector<2x128xf32>
    %292 = vector.extract_strided_slice %290 {offsets = [0, 128], sizes = [2, 128], strides = [1, 1]} : vector<2x384xf32> to vector<2x128xf32>
    %293 = vector.extract_strided_slice %290 {offsets = [0, 256], sizes = [2, 128], strides = [1, 1]} : vector<2x384xf32> to vector<2x128xf32>
    %294 = vector.extract_strided_slice %265 {offsets = [0, 384], sizes = [2, 128], strides = [1, 1]} : vector<2x512xf32> to vector<2x128xf32>
    %295 = math.tanh %294 : vector<2x128xf32>
    %296 = arith.sitofp %281 : i32 to f32
    %cst_97 = arith.constant 2.000000e+01 : f32
    %297 = arith.cmpf olt, %296, %cst_97 : f32
    %298 = arith.sitofp %282 : i32 to f32
    %cst_98 = arith.constant 2.000000e+01 : f32
    %299 = arith.cmpf ogt, %298, %cst_98 : f32
    %300 = arith.andi %297, %299 : i1
    %301 = arith.sitofp %281 : i32 to f32
    %cst_99 = arith.constant 2.000000e+01 : f32
    %302 = arith.cmpf ogt, %301, %cst_99 : f32
    %303 = arith.sitofp %282 : i32 to f32
    %cst_100 = arith.constant 2.000000e+01 : f32
    %304 = arith.cmpf olt, %303, %cst_100 : f32
    %305 = arith.andi %302, %304 : i1
    %306 = arith.mulf %291, %295 : vector<2x128xf32>
    %307 = arith.select %305, %295, %306 : vector<2x128xf32>
    %308 = arith.select %300, %291, %307 : vector<2x128xf32>
    %309 = arith.mulf %292, %207 : vector<2x128xf32>
    %310 = arith.addf %309, %308 : vector<2x128xf32>
    %311 = math.tanh %310 : vector<2x128xf32>
    %312 = arith.mulf %293, %311 : vector<2x128xf32>
    %c3 = arith.constant 3 : index
    %c0_101 = arith.constant 0 : index
    %c0_102 = arith.constant 0 : index
    %313 = vector.load %arg0[%c3, %c0_101, %c0_102] : memref<8x2x512xf32, #tpu.memory_space<vmem>>, vector<1x2x512xf32>
    %314 = vector.shape_cast %313 : vector<1x2x512xf32> to vector<2x512xf32>
    %c0_103 = arith.constant 0 : index
    %c0_104 = arith.constant 0 : index
    %315 = vector.load %arg1[%c0_103, %c0_104] : memref<128x512xf32, #tpu.memory_space<vmem>>, vector<128x512xf32>
    %cst_105 = arith.constant dense<0.000000e+00> : vector<2x512xf32>
    %316 = tpu.matmul %261, %315, %cst_105 {dimension_numbers = #tpu.dot_dimension_numbers<[1], [0], [0], [1], [0, 0, 1, 1], [], []>} : vector<2x128xf32>, vector<128x512xf32>, vector<2x512xf32> -> vector<2x512xf32>
    %317 = arith.addf %314, %316 : vector<2x512xf32>
    %318 = vector.extract_strided_slice %317 {offsets = [0, 384], sizes = [2, 128], strides = [1, 1]} : vector<2x512xf32> to vector<2x128xf32>
    %cst_106 = arith.constant 0.549306154 : f32
    %319 = vector.broadcast %cst_106 : f32 to vector<2x128xf32>
    %320 = arith.cmpf ogt, %318, %319 : vector<2x128xf32>
    %321 = arith.extui %320 : vector<2x128xi1> to vector<2x128xi32>
    %322 = vector.extract_strided_slice %317 {offsets = [0, 0], sizes = [2, 128], strides = [1, 1]} : vector<2x512xf32> to vector<2x128xf32>
    %cst_107 = arith.constant 0.000000e+00 : f32
    %323 = vector.broadcast %cst_107 : f32 to vector<2x128xf32>
    %324 = arith.cmpf ogt, %322, %323 : vector<2x128xf32>
    %325 = arith.extui %324 : vector<2x128xi1> to vector<2x128xi32>
    %c65536_i32_108 = arith.constant 65536 : i32
    %326 = vector.broadcast %c65536_i32_108 : i32 to vector<2x128xi32>
    %327 = arith.muli %325, %326 : vector<2x128xi32>
    %328 = arith.addi %321, %327 : vector<2x128xi32>
    %329 = vector.shape_cast %328 : vector<2x128xi32> to vector<1x2x128xi32>
    %cst_109 = arith.constant dense<0> : vector<1xi32>
    %330 = vector.multi_reduction <add>, %329, %cst_109 [1, 2] : vector<1x2x128xi32> to vector<1xi32>
    %331 = vector.shape_cast %330 : vector<1xi32> to vector<1x1x1xi32>
    %332 = vector.extract %331[0, 0, 0] : i32 from vector<1x1x1xi32>
    %c65535_i32_110 = arith.constant 65535 : i32
    %333 = arith.andi %332, %c65535_i32_110 : i32
    %c16_i32_111 = arith.constant 16 : i32
    %334 = arith.shrsi %332, %c16_i32_111 : i32
    %335 = vector.extract_strided_slice %317 {offsets = [0, 0], sizes = [2, 384], strides = [1, 1]} : vector<2x512xf32> to vector<2x384xf32>
    %cst_112 = arith.constant 5.000000e-01 : f32
    %336 = vector.broadcast %cst_112 : f32 to vector<2x384xf32>
    %337 = arith.mulf %336, %335 : vector<2x384xf32>
    %338 = math.tanh %337 : vector<2x384xf32>
    %cst_113 = arith.constant 1.000000e+00 : f32
    %339 = vector.broadcast %cst_113 : f32 to vector<2x384xf32>
    %340 = arith.addf %338, %339 : vector<2x384xf32>
    %cst_114 = arith.constant 5.000000e-01 : f32
    %341 = vector.broadcast %cst_114 : f32 to vector<2x384xf32>
    %342 = arith.mulf %341, %340 : vector<2x384xf32>
    %343 = vector.extract_strided_slice %342 {offsets = [0, 0], sizes = [2, 128], strides = [1, 1]} : vector<2x384xf32> to vector<2x128xf32>
    %344 = vector.extract_strided_slice %342 {offsets = [0, 128], sizes = [2, 128], strides = [1, 1]} : vector<2x384xf32> to vector<2x128xf32>
    %345 = vector.extract_strided_slice %342 {offsets = [0, 256], sizes = [2, 128], strides = [1, 1]} : vector<2x384xf32> to vector<2x128xf32>
    %346 = vector.extract_strided_slice %317 {offsets = [0, 384], sizes = [2, 128], strides = [1, 1]} : vector<2x512xf32> to vector<2x128xf32>
    %347 = math.tanh %346 : vector<2x128xf32>
    %348 = arith.sitofp %333 : i32 to f32
    %cst_115 = arith.constant 2.000000e+01 : f32
    %349 = arith.cmpf olt, %348, %cst_115 : f32
    %350 = arith.sitofp %334 : i32 to f32
    %cst_116 = arith.constant 2.000000e+01 : f32
    %351 = arith.cmpf ogt, %350, %cst_116 : f32
    %352 = arith.andi %349, %351 : i1
    %353 = arith.sitofp %333 : i32 to f32
    %cst_117 = arith.constant 2.000000e+01 : f32
    %354 = arith.cmpf ogt, %353, %cst_117 : f32
    %355 = arith.sitofp %334 : i32 to f32
    %cst_118 = arith.constant 2.000000e+01 : f32
    %356 = arith.cmpf olt, %355, %cst_118 : f32
    %357 = arith.andi %354, %356 : i1
    %358 = arith.mulf %343, %347 : vector<2x128xf32>
    %359 = arith.select %357, %347, %358 : vector<2x128xf32>
    %360 = arith.select %352, %343, %359 : vector<2x128xf32>
    %361 = arith.mulf %344, %259 : vector<2x128xf32>
    %362 = arith.addf %361, %360 : vector<2x128xf32>
    %363 = math.tanh %362 : vector<2x128xf32>
    %364 = arith.mulf %345, %363 : vector<2x128xf32>
    %365 = tpu.concatenate %364, %312 in 1 : vector<2x128xf32>, vector<2x128xf32> -> vector<2x256xf32>
    %c0_119 = arith.constant 0 : index
    %c0_120 = arith.constant 0 : index
    %366 = vector.load %arg2[%c0_119, %c0_120] : memref<256x512xf32, #tpu.memory_space<vmem>>, vector<256x512xf32>
    %cst_121 = arith.constant dense<0.000000e+00> : vector<2x512xf32>
    %367 = tpu.matmul %365, %366, %cst_121 {dimension_numbers = #tpu.dot_dimension_numbers<[1], [0], [0], [1], [0, 0, 1, 1], [], []>} : vector<2x256xf32>, vector<256x512xf32>, vector<2x512xf32> -> vector<2x512xf32>
    %368 = arith.addf %367, %3 : vector<2x512xf32>
    %369 = vector.extract_strided_slice %368 {offsets = [0, 384], sizes = [2, 128], strides = [1, 1]} : vector<2x512xf32> to vector<2x128xf32>
    %cst_122 = arith.constant 0.549306154 : f32
    %370 = vector.broadcast %cst_122 : f32 to vector<2x128xf32>
    %371 = arith.cmpf ogt, %369, %370 : vector<2x128xf32>
    %372 = arith.extui %371 : vector<2x128xi1> to vector<2x128xi32>
    %373 = vector.extract_strided_slice %368 {offsets = [0, 0], sizes = [2, 128], strides = [1, 1]} : vector<2x512xf32> to vector<2x128xf32>
    %cst_123 = arith.constant 0.000000e+00 : f32
    %374 = vector.broadcast %cst_123 : f32 to vector<2x128xf32>
    %375 = arith.cmpf ogt, %373, %374 : vector<2x128xf32>
    %376 = arith.extui %375 : vector<2x128xi1> to vector<2x128xi32>
    %c65536_i32_124 = arith.constant 65536 : i32
    %377 = vector.broadcast %c65536_i32_124 : i32 to vector<2x128xi32>
    %378 = arith.muli %376, %377 : vector<2x128xi32>
    %379 = arith.addi %372, %378 : vector<2x128xi32>
    %380 = vector.shape_cast %379 : vector<2x128xi32> to vector<1x2x128xi32>
    %cst_125 = arith.constant dense<0> : vector<1xi32>
    %381 = vector.multi_reduction <add>, %380, %cst_125 [1, 2] : vector<1x2x128xi32> to vector<1xi32>
    %382 = vector.shape_cast %381 : vector<1xi32> to vector<1x1x1xi32>
    %383 = vector.extract %382[0, 0, 0] : i32 from vector<1x1x1xi32>
    %c65535_i32_126 = arith.constant 65535 : i32
    %384 = arith.andi %383, %c65535_i32_126 : i32
    %c16_i32_127 = arith.constant 16 : i32
    %385 = arith.shrsi %383, %c16_i32_127 : i32
    %386 = vector.extract_strided_slice %368 {offsets = [0, 0], sizes = [2, 384], strides = [1, 1]} : vector<2x512xf32> to vector<2x384xf32>
    %cst_128 = arith.constant 5.000000e-01 : f32
    %387 = vector.broadcast %cst_128 : f32 to vector<2x384xf32>
    %388 = arith.mulf %387, %386 : vector<2x384xf32>
    %389 = math.tanh %388 : vector<2x384xf32>
    %cst_129 = arith.constant 1.000000e+00 : f32
    %390 = vector.broadcast %cst_129 : f32 to vector<2x384xf32>
    %391 = arith.addf %389, %390 : vector<2x384xf32>
    %cst_130 = arith.constant 5.000000e-01 : f32
    %392 = vector.broadcast %cst_130 : f32 to vector<2x384xf32>
    %393 = arith.mulf %392, %391 : vector<2x384xf32>
    %394 = vector.extract_strided_slice %393 {offsets = [0, 0], sizes = [2, 128], strides = [1, 1]} : vector<2x384xf32> to vector<2x128xf32>
    %395 = vector.extract_strided_slice %393 {offsets = [0, 128], sizes = [2, 128], strides = [1, 1]} : vector<2x384xf32> to vector<2x128xf32>
    %396 = vector.extract_strided_slice %393 {offsets = [0, 256], sizes = [2, 128], strides = [1, 1]} : vector<2x384xf32> to vector<2x128xf32>
    %397 = vector.extract_strided_slice %368 {offsets = [0, 384], sizes = [2, 128], strides = [1, 1]} : vector<2x512xf32> to vector<2x128xf32>
    %398 = math.tanh %397 : vector<2x128xf32>
    %399 = arith.sitofp %384 : i32 to f32
    %cst_131 = arith.constant 2.000000e+01 : f32
    %400 = arith.cmpf olt, %399, %cst_131 : f32
    %401 = arith.sitofp %385 : i32 to f32
    %cst_132 = arith.constant 2.000000e+01 : f32
    %402 = arith.cmpf ogt, %401, %cst_132 : f32
    %403 = arith.andi %400, %402 : i1
    %404 = arith.sitofp %384 : i32 to f32
    %cst_133 = arith.constant 2.000000e+01 : f32
    %405 = arith.cmpf ogt, %404, %cst_133 : f32
    %406 = arith.sitofp %385 : i32 to f32
    %cst_134 = arith.constant 2.000000e+01 : f32
    %407 = arith.cmpf olt, %406, %cst_134 : f32
    %408 = arith.andi %405, %407 : i1
    %409 = arith.mulf %394, %398 : vector<2x128xf32>
    %410 = arith.select %408, %398, %409 : vector<2x128xf32>
    %411 = arith.select %403, %394, %410 : vector<2x128xf32>
    %412 = arith.mulf %395, %310 : vector<2x128xf32>
    %413 = arith.addf %412, %411 : vector<2x128xf32>
    %414 = math.tanh %413 : vector<2x128xf32>
    %415 = arith.mulf %396, %414 : vector<2x128xf32>
    %c4 = arith.constant 4 : index
    %c0_135 = arith.constant 0 : index
    %c0_136 = arith.constant 0 : index
    %416 = vector.load %arg0[%c4, %c0_135, %c0_136] : memref<8x2x512xf32, #tpu.memory_space<vmem>>, vector<1x2x512xf32>
    %417 = vector.shape_cast %416 : vector<1x2x512xf32> to vector<2x512xf32>
    %c0_137 = arith.constant 0 : index
    %c0_138 = arith.constant 0 : index
    %418 = vector.load %arg1[%c0_137, %c0_138] : memref<128x512xf32, #tpu.memory_space<vmem>>, vector<128x512xf32>
    %cst_139 = arith.constant dense<0.000000e+00> : vector<2x512xf32>
    %419 = tpu.matmul %364, %418, %cst_139 {dimension_numbers = #tpu.dot_dimension_numbers<[1], [0], [0], [1], [0, 0, 1, 1], [], []>} : vector<2x128xf32>, vector<128x512xf32>, vector<2x512xf32> -> vector<2x512xf32>
    %420 = arith.addf %417, %419 : vector<2x512xf32>
    %421 = vector.extract_strided_slice %420 {offsets = [0, 384], sizes = [2, 128], strides = [1, 1]} : vector<2x512xf32> to vector<2x128xf32>
    %cst_140 = arith.constant 0.549306154 : f32
    %422 = vector.broadcast %cst_140 : f32 to vector<2x128xf32>
    %423 = arith.cmpf ogt, %421, %422 : vector<2x128xf32>
    %424 = arith.extui %423 : vector<2x128xi1> to vector<2x128xi32>
    %425 = vector.extract_strided_slice %420 {offsets = [0, 0], sizes = [2, 128], strides = [1, 1]} : vector<2x512xf32> to vector<2x128xf32>
    %cst_141 = arith.constant 0.000000e+00 : f32
    %426 = vector.broadcast %cst_141 : f32 to vector<2x128xf32>
    %427 = arith.cmpf ogt, %425, %426 : vector<2x128xf32>
    %428 = arith.extui %427 : vector<2x128xi1> to vector<2x128xi32>
    %c65536_i32_142 = arith.constant 65536 : i32
    %429 = vector.broadcast %c65536_i32_142 : i32 to vector<2x128xi32>
    %430 = arith.muli %428, %429 : vector<2x128xi32>
    %431 = arith.addi %424, %430 : vector<2x128xi32>
    %432 = vector.shape_cast %431 : vector<2x128xi32> to vector<1x2x128xi32>
    %cst_143 = arith.constant dense<0> : vector<1xi32>
    %433 = vector.multi_reduction <add>, %432, %cst_143 [1, 2] : vector<1x2x128xi32> to vector<1xi32>
    %434 = vector.shape_cast %433 : vector<1xi32> to vector<1x1x1xi32>
    %435 = vector.extract %434[0, 0, 0] : i32 from vector<1x1x1xi32>
    %c65535_i32_144 = arith.constant 65535 : i32
    %436 = arith.andi %435, %c65535_i32_144 : i32
    %c16_i32_145 = arith.constant 16 : i32
    %437 = arith.shrsi %435, %c16_i32_145 : i32
    %438 = vector.extract_strided_slice %420 {offsets = [0, 0], sizes = [2, 384], strides = [1, 1]} : vector<2x512xf32> to vector<2x384xf32>
    %cst_146 = arith.constant 5.000000e-01 : f32
    %439 = vector.broadcast %cst_146 : f32 to vector<2x384xf32>
    %440 = arith.mulf %439, %438 : vector<2x384xf32>
    %441 = math.tanh %440 : vector<2x384xf32>
    %cst_147 = arith.constant 1.000000e+00 : f32
    %442 = vector.broadcast %cst_147 : f32 to vector<2x384xf32>
    %443 = arith.addf %441, %442 : vector<2x384xf32>
    %cst_148 = arith.constant 5.000000e-01 : f32
    %444 = vector.broadcast %cst_148 : f32 to vector<2x384xf32>
    %445 = arith.mulf %444, %443 : vector<2x384xf32>
    %446 = vector.extract_strided_slice %445 {offsets = [0, 0], sizes = [2, 128], strides = [1, 1]} : vector<2x384xf32> to vector<2x128xf32>
    %447 = vector.extract_strided_slice %445 {offsets = [0, 128], sizes = [2, 128], strides = [1, 1]} : vector<2x384xf32> to vector<2x128xf32>
    %448 = vector.extract_strided_slice %445 {offsets = [0, 256], sizes = [2, 128], strides = [1, 1]} : vector<2x384xf32> to vector<2x128xf32>
    %449 = vector.extract_strided_slice %420 {offsets = [0, 384], sizes = [2, 128], strides = [1, 1]} : vector<2x512xf32> to vector<2x128xf32>
    %450 = math.tanh %449 : vector<2x128xf32>
    %451 = arith.sitofp %436 : i32 to f32
    %cst_149 = arith.constant 2.000000e+01 : f32
    %452 = arith.cmpf olt, %451, %cst_149 : f32
    %453 = arith.sitofp %437 : i32 to f32
    %cst_150 = arith.constant 2.000000e+01 : f32
    %454 = arith.cmpf ogt, %453, %cst_150 : f32
    %455 = arith.andi %452, %454 : i1
    %456 = arith.sitofp %436 : i32 to f32
    %cst_151 = arith.constant 2.000000e+01 : f32
    %457 = arith.cmpf ogt, %456, %cst_151 : f32
    %458 = arith.sitofp %437 : i32 to f32
    %cst_152 = arith.constant 2.000000e+01 : f32
    %459 = arith.cmpf olt, %458, %cst_152 : f32
    %460 = arith.andi %457, %459 : i1
    %461 = arith.mulf %446, %450 : vector<2x128xf32>
    %462 = arith.select %460, %450, %461 : vector<2x128xf32>
    %463 = arith.select %455, %446, %462 : vector<2x128xf32>
    %464 = arith.mulf %447, %362 : vector<2x128xf32>
    %465 = arith.addf %464, %463 : vector<2x128xf32>
    %466 = math.tanh %465 : vector<2x128xf32>
    %467 = arith.mulf %448, %466 : vector<2x128xf32>
    %468 = tpu.concatenate %467, %415 in 1 : vector<2x128xf32>, vector<2x128xf32> -> vector<2x256xf32>
    %c0_153 = arith.constant 0 : index
    %c0_154 = arith.constant 0 : index
    %469 = vector.load %arg2[%c0_153, %c0_154] : memref<256x512xf32, #tpu.memory_space<vmem>>, vector<256x512xf32>
    %cst_155 = arith.constant dense<0.000000e+00> : vector<2x512xf32>
    %470 = tpu.matmul %468, %469, %cst_155 {dimension_numbers = #tpu.dot_dimension_numbers<[1], [0], [0], [1], [0, 0, 1, 1], [], []>} : vector<2x256xf32>, vector<256x512xf32>, vector<2x512xf32> -> vector<2x512xf32>
    %471 = arith.addf %470, %3 : vector<2x512xf32>
    %472 = vector.extract_strided_slice %471 {offsets = [0, 384], sizes = [2, 128], strides = [1, 1]} : vector<2x512xf32> to vector<2x128xf32>
    %cst_156 = arith.constant 0.549306154 : f32
    %473 = vector.broadcast %cst_156 : f32 to vector<2x128xf32>
    %474 = arith.cmpf ogt, %472, %473 : vector<2x128xf32>
    %475 = arith.extui %474 : vector<2x128xi1> to vector<2x128xi32>
    %476 = vector.extract_strided_slice %471 {offsets = [0, 0], sizes = [2, 128], strides = [1, 1]} : vector<2x512xf32> to vector<2x128xf32>
    %cst_157 = arith.constant 0.000000e+00 : f32
    %477 = vector.broadcast %cst_157 : f32 to vector<2x128xf32>
    %478 = arith.cmpf ogt, %476, %477 : vector<2x128xf32>
    %479 = arith.extui %478 : vector<2x128xi1> to vector<2x128xi32>
    %c65536_i32_158 = arith.constant 65536 : i32
    %480 = vector.broadcast %c65536_i32_158 : i32 to vector<2x128xi32>
    %481 = arith.muli %479, %480 : vector<2x128xi32>
    %482 = arith.addi %475, %481 : vector<2x128xi32>
    %483 = vector.shape_cast %482 : vector<2x128xi32> to vector<1x2x128xi32>
    %cst_159 = arith.constant dense<0> : vector<1xi32>
    %484 = vector.multi_reduction <add>, %483, %cst_159 [1, 2] : vector<1x2x128xi32> to vector<1xi32>
    %485 = vector.shape_cast %484 : vector<1xi32> to vector<1x1x1xi32>
    %486 = vector.extract %485[0, 0, 0] : i32 from vector<1x1x1xi32>
    %c65535_i32_160 = arith.constant 65535 : i32
    %487 = arith.andi %486, %c65535_i32_160 : i32
    %c16_i32_161 = arith.constant 16 : i32
    %488 = arith.shrsi %486, %c16_i32_161 : i32
    %489 = vector.extract_strided_slice %471 {offsets = [0, 0], sizes = [2, 384], strides = [1, 1]} : vector<2x512xf32> to vector<2x384xf32>
    %cst_162 = arith.constant 5.000000e-01 : f32
    %490 = vector.broadcast %cst_162 : f32 to vector<2x384xf32>
    %491 = arith.mulf %490, %489 : vector<2x384xf32>
    %492 = math.tanh %491 : vector<2x384xf32>
    %cst_163 = arith.constant 1.000000e+00 : f32
    %493 = vector.broadcast %cst_163 : f32 to vector<2x384xf32>
    %494 = arith.addf %492, %493 : vector<2x384xf32>
    %cst_164 = arith.constant 5.000000e-01 : f32
    %495 = vector.broadcast %cst_164 : f32 to vector<2x384xf32>
    %496 = arith.mulf %495, %494 : vector<2x384xf32>
    %497 = vector.extract_strided_slice %496 {offsets = [0, 0], sizes = [2, 128], strides = [1, 1]} : vector<2x384xf32> to vector<2x128xf32>
    %498 = vector.extract_strided_slice %496 {offsets = [0, 128], sizes = [2, 128], strides = [1, 1]} : vector<2x384xf32> to vector<2x128xf32>
    %499 = vector.extract_strided_slice %496 {offsets = [0, 256], sizes = [2, 128], strides = [1, 1]} : vector<2x384xf32> to vector<2x128xf32>
    %500 = vector.extract_strided_slice %471 {offsets = [0, 384], sizes = [2, 128], strides = [1, 1]} : vector<2x512xf32> to vector<2x128xf32>
    %501 = math.tanh %500 : vector<2x128xf32>
    %502 = arith.sitofp %487 : i32 to f32
    %cst_165 = arith.constant 2.000000e+01 : f32
    %503 = arith.cmpf olt, %502, %cst_165 : f32
    %504 = arith.sitofp %488 : i32 to f32
    %cst_166 = arith.constant 2.000000e+01 : f32
    %505 = arith.cmpf ogt, %504, %cst_166 : f32
    %506 = arith.andi %503, %505 : i1
    %507 = arith.sitofp %487 : i32 to f32
    %cst_167 = arith.constant 2.000000e+01 : f32
    %508 = arith.cmpf ogt, %507, %cst_167 : f32
    %509 = arith.sitofp %488 : i32 to f32
    %cst_168 = arith.constant 2.000000e+01 : f32
    %510 = arith.cmpf olt, %509, %cst_168 : f32
    %511 = arith.andi %508, %510 : i1
    %512 = arith.mulf %497, %501 : vector<2x128xf32>
    %513 = arith.select %511, %501, %512 : vector<2x128xf32>
    %514 = arith.select %506, %497, %513 : vector<2x128xf32>
    %515 = arith.mulf %498, %413 : vector<2x128xf32>
    %516 = arith.addf %515, %514 : vector<2x128xf32>
    %517 = math.tanh %516 : vector<2x128xf32>
    %518 = arith.mulf %499, %517 : vector<2x128xf32>
    %c5 = arith.constant 5 : index
    %c0_169 = arith.constant 0 : index
    %c0_170 = arith.constant 0 : index
    %519 = vector.load %arg0[%c5, %c0_169, %c0_170] : memref<8x2x512xf32, #tpu.memory_space<vmem>>, vector<1x2x512xf32>
    %520 = vector.shape_cast %519 : vector<1x2x512xf32> to vector<2x512xf32>
    %c0_171 = arith.constant 0 : index
    %c0_172 = arith.constant 0 : index
    %521 = vector.load %arg1[%c0_171, %c0_172] : memref<128x512xf32, #tpu.memory_space<vmem>>, vector<128x512xf32>
    %cst_173 = arith.constant dense<0.000000e+00> : vector<2x512xf32>
    %522 = tpu.matmul %467, %521, %cst_173 {dimension_numbers = #tpu.dot_dimension_numbers<[1], [0], [0], [1], [0, 0, 1, 1], [], []>} : vector<2x128xf32>, vector<128x512xf32>, vector<2x512xf32> -> vector<2x512xf32>
    %523 = arith.addf %520, %522 : vector<2x512xf32>
    %524 = vector.extract_strided_slice %523 {offsets = [0, 384], sizes = [2, 128], strides = [1, 1]} : vector<2x512xf32> to vector<2x128xf32>
    %cst_174 = arith.constant 0.549306154 : f32
    %525 = vector.broadcast %cst_174 : f32 to vector<2x128xf32>
    %526 = arith.cmpf ogt, %524, %525 : vector<2x128xf32>
    %527 = arith.extui %526 : vector<2x128xi1> to vector<2x128xi32>
    %528 = vector.extract_strided_slice %523 {offsets = [0, 0], sizes = [2, 128], strides = [1, 1]} : vector<2x512xf32> to vector<2x128xf32>
    %cst_175 = arith.constant 0.000000e+00 : f32
    %529 = vector.broadcast %cst_175 : f32 to vector<2x128xf32>
    %530 = arith.cmpf ogt, %528, %529 : vector<2x128xf32>
    %531 = arith.extui %530 : vector<2x128xi1> to vector<2x128xi32>
    %c65536_i32_176 = arith.constant 65536 : i32
    %532 = vector.broadcast %c65536_i32_176 : i32 to vector<2x128xi32>
    %533 = arith.muli %531, %532 : vector<2x128xi32>
    %534 = arith.addi %527, %533 : vector<2x128xi32>
    %535 = vector.shape_cast %534 : vector<2x128xi32> to vector<1x2x128xi32>
    %cst_177 = arith.constant dense<0> : vector<1xi32>
    %536 = vector.multi_reduction <add>, %535, %cst_177 [1, 2] : vector<1x2x128xi32> to vector<1xi32>
    %537 = vector.shape_cast %536 : vector<1xi32> to vector<1x1x1xi32>
    %538 = vector.extract %537[0, 0, 0] : i32 from vector<1x1x1xi32>
    %c65535_i32_178 = arith.constant 65535 : i32
    %539 = arith.andi %538, %c65535_i32_178 : i32
    %c16_i32_179 = arith.constant 16 : i32
    %540 = arith.shrsi %538, %c16_i32_179 : i32
    %541 = vector.extract_strided_slice %523 {offsets = [0, 0], sizes = [2, 384], strides = [1, 1]} : vector<2x512xf32> to vector<2x384xf32>
    %cst_180 = arith.constant 5.000000e-01 : f32
    %542 = vector.broadcast %cst_180 : f32 to vector<2x384xf32>
    %543 = arith.mulf %542, %541 : vector<2x384xf32>
    %544 = math.tanh %543 : vector<2x384xf32>
    %cst_181 = arith.constant 1.000000e+00 : f32
    %545 = vector.broadcast %cst_181 : f32 to vector<2x384xf32>
    %546 = arith.addf %544, %545 : vector<2x384xf32>
    %cst_182 = arith.constant 5.000000e-01 : f32
    %547 = vector.broadcast %cst_182 : f32 to vector<2x384xf32>
    %548 = arith.mulf %547, %546 : vector<2x384xf32>
    %549 = vector.extract_strided_slice %548 {offsets = [0, 0], sizes = [2, 128], strides = [1, 1]} : vector<2x384xf32> to vector<2x128xf32>
    %550 = vector.extract_strided_slice %548 {offsets = [0, 128], sizes = [2, 128], strides = [1, 1]} : vector<2x384xf32> to vector<2x128xf32>
    %551 = vector.extract_strided_slice %548 {offsets = [0, 256], sizes = [2, 128], strides = [1, 1]} : vector<2x384xf32> to vector<2x128xf32>
    %552 = vector.extract_strided_slice %523 {offsets = [0, 384], sizes = [2, 128], strides = [1, 1]} : vector<2x512xf32> to vector<2x128xf32>
    %553 = math.tanh %552 : vector<2x128xf32>
    %554 = arith.sitofp %539 : i32 to f32
    %cst_183 = arith.constant 2.000000e+01 : f32
    %555 = arith.cmpf olt, %554, %cst_183 : f32
    %556 = arith.sitofp %540 : i32 to f32
    %cst_184 = arith.constant 2.000000e+01 : f32
    %557 = arith.cmpf ogt, %556, %cst_184 : f32
    %558 = arith.andi %555, %557 : i1
    %559 = arith.sitofp %539 : i32 to f32
    %cst_185 = arith.constant 2.000000e+01 : f32
    %560 = arith.cmpf ogt, %559, %cst_185 : f32
    %561 = arith.sitofp %540 : i32 to f32
    %cst_186 = arith.constant 2.000000e+01 : f32
    %562 = arith.cmpf olt, %561, %cst_186 : f32
    %563 = arith.andi %560, %562 : i1
    %564 = arith.mulf %549, %553 : vector<2x128xf32>
    %565 = arith.select %563, %553, %564 : vector<2x128xf32>
    %566 = arith.select %558, %549, %565 : vector<2x128xf32>
    %567 = arith.mulf %550, %465 : vector<2x128xf32>
    %568 = arith.addf %567, %566 : vector<2x128xf32>
    %569 = math.tanh %568 : vector<2x128xf32>
    %570 = arith.mulf %551, %569 : vector<2x128xf32>
    %571 = tpu.concatenate %570, %518 in 1 : vector<2x128xf32>, vector<2x128xf32> -> vector<2x256xf32>
    %c0_187 = arith.constant 0 : index
    %c0_188 = arith.constant 0 : index
    %572 = vector.load %arg2[%c0_187, %c0_188] : memref<256x512xf32, #tpu.memory_space<vmem>>, vector<256x512xf32>
    %cst_189 = arith.constant dense<0.000000e+00> : vector<2x512xf32>
    %573 = tpu.matmul %571, %572, %cst_189 {dimension_numbers = #tpu.dot_dimension_numbers<[1], [0], [0], [1], [0, 0, 1, 1], [], []>} : vector<2x256xf32>, vector<256x512xf32>, vector<2x512xf32> -> vector<2x512xf32>
    %574 = arith.addf %573, %3 : vector<2x512xf32>
    %575 = vector.extract_strided_slice %574 {offsets = [0, 384], sizes = [2, 128], strides = [1, 1]} : vector<2x512xf32> to vector<2x128xf32>
    %cst_190 = arith.constant 0.549306154 : f32
    %576 = vector.broadcast %cst_190 : f32 to vector<2x128xf32>
    %577 = arith.cmpf ogt, %575, %576 : vector<2x128xf32>
    %578 = arith.extui %577 : vector<2x128xi1> to vector<2x128xi32>
    %579 = vector.extract_strided_slice %574 {offsets = [0, 0], sizes = [2, 128], strides = [1, 1]} : vector<2x512xf32> to vector<2x128xf32>
    %cst_191 = arith.constant 0.000000e+00 : f32
    %580 = vector.broadcast %cst_191 : f32 to vector<2x128xf32>
    %581 = arith.cmpf ogt, %579, %580 : vector<2x128xf32>
    %582 = arith.extui %581 : vector<2x128xi1> to vector<2x128xi32>
    %c65536_i32_192 = arith.constant 65536 : i32
    %583 = vector.broadcast %c65536_i32_192 : i32 to vector<2x128xi32>
    %584 = arith.muli %582, %583 : vector<2x128xi32>
    %585 = arith.addi %578, %584 : vector<2x128xi32>
    %586 = vector.shape_cast %585 : vector<2x128xi32> to vector<1x2x128xi32>
    %cst_193 = arith.constant dense<0> : vector<1xi32>
    %587 = vector.multi_reduction <add>, %586, %cst_193 [1, 2] : vector<1x2x128xi32> to vector<1xi32>
    %588 = vector.shape_cast %587 : vector<1xi32> to vector<1x1x1xi32>
    %589 = vector.extract %588[0, 0, 0] : i32 from vector<1x1x1xi32>
    %c65535_i32_194 = arith.constant 65535 : i32
    %590 = arith.andi %589, %c65535_i32_194 : i32
    %c16_i32_195 = arith.constant 16 : i32
    %591 = arith.shrsi %589, %c16_i32_195 : i32
    %592 = vector.extract_strided_slice %574 {offsets = [0, 0], sizes = [2, 384], strides = [1, 1]} : vector<2x512xf32> to vector<2x384xf32>
    %cst_196 = arith.constant 5.000000e-01 : f32
    %593 = vector.broadcast %cst_196 : f32 to vector<2x384xf32>
    %594 = arith.mulf %593, %592 : vector<2x384xf32>
    %595 = math.tanh %594 : vector<2x384xf32>
    %cst_197 = arith.constant 1.000000e+00 : f32
    %596 = vector.broadcast %cst_197 : f32 to vector<2x384xf32>
    %597 = arith.addf %595, %596 : vector<2x384xf32>
    %cst_198 = arith.constant 5.000000e-01 : f32
    %598 = vector.broadcast %cst_198 : f32 to vector<2x384xf32>
    %599 = arith.mulf %598, %597 : vector<2x384xf32>
    %600 = vector.extract_strided_slice %599 {offsets = [0, 0], sizes = [2, 128], strides = [1, 1]} : vector<2x384xf32> to vector<2x128xf32>
    %601 = vector.extract_strided_slice %599 {offsets = [0, 128], sizes = [2, 128], strides = [1, 1]} : vector<2x384xf32> to vector<2x128xf32>
    %602 = vector.extract_strided_slice %599 {offsets = [0, 256], sizes = [2, 128], strides = [1, 1]} : vector<2x384xf32> to vector<2x128xf32>
    %603 = vector.extract_strided_slice %574 {offsets = [0, 384], sizes = [2, 128], strides = [1, 1]} : vector<2x512xf32> to vector<2x128xf32>
    %604 = math.tanh %603 : vector<2x128xf32>
    %605 = arith.sitofp %590 : i32 to f32
    %cst_199 = arith.constant 2.000000e+01 : f32
    %606 = arith.cmpf olt, %605, %cst_199 : f32
    %607 = arith.sitofp %591 : i32 to f32
    %cst_200 = arith.constant 2.000000e+01 : f32
    %608 = arith.cmpf ogt, %607, %cst_200 : f32
    %609 = arith.andi %606, %608 : i1
    %610 = arith.sitofp %590 : i32 to f32
    %cst_201 = arith.constant 2.000000e+01 : f32
    %611 = arith.cmpf ogt, %610, %cst_201 : f32
    %612 = arith.sitofp %591 : i32 to f32
    %cst_202 = arith.constant 2.000000e+01 : f32
    %613 = arith.cmpf olt, %612, %cst_202 : f32
    %614 = arith.andi %611, %613 : i1
    %615 = arith.mulf %600, %604 : vector<2x128xf32>
    %616 = arith.select %614, %604, %615 : vector<2x128xf32>
    %617 = arith.select %609, %600, %616 : vector<2x128xf32>
    %618 = arith.mulf %601, %516 : vector<2x128xf32>
    %619 = arith.addf %618, %617 : vector<2x128xf32>
    %620 = math.tanh %619 : vector<2x128xf32>
    %621 = arith.mulf %602, %620 : vector<2x128xf32>
    %c6 = arith.constant 6 : index
    %c0_203 = arith.constant 0 : index
    %c0_204 = arith.constant 0 : index
    %622 = vector.load %arg0[%c6, %c0_203, %c0_204] : memref<8x2x512xf32, #tpu.memory_space<vmem>>, vector<1x2x512xf32>
    %623 = vector.shape_cast %622 : vector<1x2x512xf32> to vector<2x512xf32>
    %c0_205 = arith.constant 0 : index
    %c0_206 = arith.constant 0 : index
    %624 = vector.load %arg1[%c0_205, %c0_206] : memref<128x512xf32, #tpu.memory_space<vmem>>, vector<128x512xf32>
    %cst_207 = arith.constant dense<0.000000e+00> : vector<2x512xf32>
    %625 = tpu.matmul %570, %624, %cst_207 {dimension_numbers = #tpu.dot_dimension_numbers<[1], [0], [0], [1], [0, 0, 1, 1], [], []>} : vector<2x128xf32>, vector<128x512xf32>, vector<2x512xf32> -> vector<2x512xf32>
    %626 = arith.addf %623, %625 : vector<2x512xf32>
    %627 = vector.extract_strided_slice %626 {offsets = [0, 384], sizes = [2, 128], strides = [1, 1]} : vector<2x512xf32> to vector<2x128xf32>
    %cst_208 = arith.constant 0.549306154 : f32
    %628 = vector.broadcast %cst_208 : f32 to vector<2x128xf32>
    %629 = arith.cmpf ogt, %627, %628 : vector<2x128xf32>
    %630 = arith.extui %629 : vector<2x128xi1> to vector<2x128xi32>
    %631 = vector.extract_strided_slice %626 {offsets = [0, 0], sizes = [2, 128], strides = [1, 1]} : vector<2x512xf32> to vector<2x128xf32>
    %cst_209 = arith.constant 0.000000e+00 : f32
    %632 = vector.broadcast %cst_209 : f32 to vector<2x128xf32>
    %633 = arith.cmpf ogt, %631, %632 : vector<2x128xf32>
    %634 = arith.extui %633 : vector<2x128xi1> to vector<2x128xi32>
    %c65536_i32_210 = arith.constant 65536 : i32
    %635 = vector.broadcast %c65536_i32_210 : i32 to vector<2x128xi32>
    %636 = arith.muli %634, %635 : vector<2x128xi32>
    %637 = arith.addi %630, %636 : vector<2x128xi32>
    %638 = vector.shape_cast %637 : vector<2x128xi32> to vector<1x2x128xi32>
    %cst_211 = arith.constant dense<0> : vector<1xi32>
    %639 = vector.multi_reduction <add>, %638, %cst_211 [1, 2] : vector<1x2x128xi32> to vector<1xi32>
    %640 = vector.shape_cast %639 : vector<1xi32> to vector<1x1x1xi32>
    %641 = vector.extract %640[0, 0, 0] : i32 from vector<1x1x1xi32>
    %c65535_i32_212 = arith.constant 65535 : i32
    %642 = arith.andi %641, %c65535_i32_212 : i32
    %c16_i32_213 = arith.constant 16 : i32
    %643 = arith.shrsi %641, %c16_i32_213 : i32
    %644 = vector.extract_strided_slice %626 {offsets = [0, 0], sizes = [2, 384], strides = [1, 1]} : vector<2x512xf32> to vector<2x384xf32>
    %cst_214 = arith.constant 5.000000e-01 : f32
    %645 = vector.broadcast %cst_214 : f32 to vector<2x384xf32>
    %646 = arith.mulf %645, %644 : vector<2x384xf32>
    %647 = math.tanh %646 : vector<2x384xf32>
    %cst_215 = arith.constant 1.000000e+00 : f32
    %648 = vector.broadcast %cst_215 : f32 to vector<2x384xf32>
    %649 = arith.addf %647, %648 : vector<2x384xf32>
    %cst_216 = arith.constant 5.000000e-01 : f32
    %650 = vector.broadcast %cst_216 : f32 to vector<2x384xf32>
    %651 = arith.mulf %650, %649 : vector<2x384xf32>
    %652 = vector.extract_strided_slice %651 {offsets = [0, 0], sizes = [2, 128], strides = [1, 1]} : vector<2x384xf32> to vector<2x128xf32>
    %653 = vector.extract_strided_slice %651 {offsets = [0, 128], sizes = [2, 128], strides = [1, 1]} : vector<2x384xf32> to vector<2x128xf32>
    %654 = vector.extract_strided_slice %651 {offsets = [0, 256], sizes = [2, 128], strides = [1, 1]} : vector<2x384xf32> to vector<2x128xf32>
    %655 = vector.extract_strided_slice %626 {offsets = [0, 384], sizes = [2, 128], strides = [1, 1]} : vector<2x512xf32> to vector<2x128xf32>
    %656 = math.tanh %655 : vector<2x128xf32>
    %657 = arith.sitofp %642 : i32 to f32
    %cst_217 = arith.constant 2.000000e+01 : f32
    %658 = arith.cmpf olt, %657, %cst_217 : f32
    %659 = arith.sitofp %643 : i32 to f32
    %cst_218 = arith.constant 2.000000e+01 : f32
    %660 = arith.cmpf ogt, %659, %cst_218 : f32
    %661 = arith.andi %658, %660 : i1
    %662 = arith.sitofp %642 : i32 to f32
    %cst_219 = arith.constant 2.000000e+01 : f32
    %663 = arith.cmpf ogt, %662, %cst_219 : f32
    %664 = arith.sitofp %643 : i32 to f32
    %cst_220 = arith.constant 2.000000e+01 : f32
    %665 = arith.cmpf olt, %664, %cst_220 : f32
    %666 = arith.andi %663, %665 : i1
    %667 = arith.mulf %652, %656 : vector<2x128xf32>
    %668 = arith.select %666, %656, %667 : vector<2x128xf32>
    %669 = arith.select %661, %652, %668 : vector<2x128xf32>
    %670 = arith.mulf %653, %568 : vector<2x128xf32>
    %671 = arith.addf %670, %669 : vector<2x128xf32>
    %672 = math.tanh %671 : vector<2x128xf32>
    %673 = arith.mulf %654, %672 : vector<2x128xf32>
    %674 = tpu.concatenate %673, %621 in 1 : vector<2x128xf32>, vector<2x128xf32> -> vector<2x256xf32>
    %c0_221 = arith.constant 0 : index
    %c0_222 = arith.constant 0 : index
    %675 = vector.load %arg2[%c0_221, %c0_222] : memref<256x512xf32, #tpu.memory_space<vmem>>, vector<256x512xf32>
    %cst_223 = arith.constant dense<0.000000e+00> : vector<2x512xf32>
    %676 = tpu.matmul %674, %675, %cst_223 {dimension_numbers = #tpu.dot_dimension_numbers<[1], [0], [0], [1], [0, 0, 1, 1], [], []>} : vector<2x256xf32>, vector<256x512xf32>, vector<2x512xf32> -> vector<2x512xf32>
    %677 = arith.addf %676, %3 : vector<2x512xf32>
    %678 = vector.extract_strided_slice %677 {offsets = [0, 384], sizes = [2, 128], strides = [1, 1]} : vector<2x512xf32> to vector<2x128xf32>
    %cst_224 = arith.constant 0.549306154 : f32
    %679 = vector.broadcast %cst_224 : f32 to vector<2x128xf32>
    %680 = arith.cmpf ogt, %678, %679 : vector<2x128xf32>
    %681 = arith.extui %680 : vector<2x128xi1> to vector<2x128xi32>
    %682 = vector.extract_strided_slice %677 {offsets = [0, 0], sizes = [2, 128], strides = [1, 1]} : vector<2x512xf32> to vector<2x128xf32>
    %cst_225 = arith.constant 0.000000e+00 : f32
    %683 = vector.broadcast %cst_225 : f32 to vector<2x128xf32>
    %684 = arith.cmpf ogt, %682, %683 : vector<2x128xf32>
    %685 = arith.extui %684 : vector<2x128xi1> to vector<2x128xi32>
    %c65536_i32_226 = arith.constant 65536 : i32
    %686 = vector.broadcast %c65536_i32_226 : i32 to vector<2x128xi32>
    %687 = arith.muli %685, %686 : vector<2x128xi32>
    %688 = arith.addi %681, %687 : vector<2x128xi32>
    %689 = vector.shape_cast %688 : vector<2x128xi32> to vector<1x2x128xi32>
    %cst_227 = arith.constant dense<0> : vector<1xi32>
    %690 = vector.multi_reduction <add>, %689, %cst_227 [1, 2] : vector<1x2x128xi32> to vector<1xi32>
    %691 = vector.shape_cast %690 : vector<1xi32> to vector<1x1x1xi32>
    %692 = vector.extract %691[0, 0, 0] : i32 from vector<1x1x1xi32>
    %c65535_i32_228 = arith.constant 65535 : i32
    %693 = arith.andi %692, %c65535_i32_228 : i32
    %c16_i32_229 = arith.constant 16 : i32
    %694 = arith.shrsi %692, %c16_i32_229 : i32
    %695 = vector.extract_strided_slice %677 {offsets = [0, 0], sizes = [2, 384], strides = [1, 1]} : vector<2x512xf32> to vector<2x384xf32>
    %cst_230 = arith.constant 5.000000e-01 : f32
    %696 = vector.broadcast %cst_230 : f32 to vector<2x384xf32>
    %697 = arith.mulf %696, %695 : vector<2x384xf32>
    %698 = math.tanh %697 : vector<2x384xf32>
    %cst_231 = arith.constant 1.000000e+00 : f32
    %699 = vector.broadcast %cst_231 : f32 to vector<2x384xf32>
    %700 = arith.addf %698, %699 : vector<2x384xf32>
    %cst_232 = arith.constant 5.000000e-01 : f32
    %701 = vector.broadcast %cst_232 : f32 to vector<2x384xf32>
    %702 = arith.mulf %701, %700 : vector<2x384xf32>
    %703 = vector.extract_strided_slice %702 {offsets = [0, 0], sizes = [2, 128], strides = [1, 1]} : vector<2x384xf32> to vector<2x128xf32>
    %704 = vector.extract_strided_slice %702 {offsets = [0, 128], sizes = [2, 128], strides = [1, 1]} : vector<2x384xf32> to vector<2x128xf32>
    %705 = vector.extract_strided_slice %702 {offsets = [0, 256], sizes = [2, 128], strides = [1, 1]} : vector<2x384xf32> to vector<2x128xf32>
    %706 = vector.extract_strided_slice %677 {offsets = [0, 384], sizes = [2, 128], strides = [1, 1]} : vector<2x512xf32> to vector<2x128xf32>
    %707 = math.tanh %706 : vector<2x128xf32>
    %708 = arith.sitofp %693 : i32 to f32
    %cst_233 = arith.constant 2.000000e+01 : f32
    %709 = arith.cmpf olt, %708, %cst_233 : f32
    %710 = arith.sitofp %694 : i32 to f32
    %cst_234 = arith.constant 2.000000e+01 : f32
    %711 = arith.cmpf ogt, %710, %cst_234 : f32
    %712 = arith.andi %709, %711 : i1
    %713 = arith.sitofp %693 : i32 to f32
    %cst_235 = arith.constant 2.000000e+01 : f32
    %714 = arith.cmpf ogt, %713, %cst_235 : f32
    %715 = arith.sitofp %694 : i32 to f32
    %cst_236 = arith.constant 2.000000e+01 : f32
    %716 = arith.cmpf olt, %715, %cst_236 : f32
    %717 = arith.andi %714, %716 : i1
    %718 = arith.mulf %703, %707 : vector<2x128xf32>
    %719 = arith.select %717, %707, %718 : vector<2x128xf32>
    %720 = arith.select %712, %703, %719 : vector<2x128xf32>
    %721 = arith.mulf %704, %619 : vector<2x128xf32>
    %722 = arith.addf %721, %720 : vector<2x128xf32>
    %723 = math.tanh %722 : vector<2x128xf32>
    %724 = arith.mulf %705, %723 : vector<2x128xf32>
    %c7 = arith.constant 7 : index
    %c0_237 = arith.constant 0 : index
    %c0_238 = arith.constant 0 : index
    %725 = vector.load %arg0[%c7, %c0_237, %c0_238] : memref<8x2x512xf32, #tpu.memory_space<vmem>>, vector<1x2x512xf32>
    %726 = vector.shape_cast %725 : vector<1x2x512xf32> to vector<2x512xf32>
    %c0_239 = arith.constant 0 : index
    %c0_240 = arith.constant 0 : index
    %727 = vector.load %arg1[%c0_239, %c0_240] : memref<128x512xf32, #tpu.memory_space<vmem>>, vector<128x512xf32>
    %cst_241 = arith.constant dense<0.000000e+00> : vector<2x512xf32>
    %728 = tpu.matmul %673, %727, %cst_241 {dimension_numbers = #tpu.dot_dimension_numbers<[1], [0], [0], [1], [0, 0, 1, 1], [], []>} : vector<2x128xf32>, vector<128x512xf32>, vector<2x512xf32> -> vector<2x512xf32>
    %729 = arith.addf %726, %728 : vector<2x512xf32>
    %730 = vector.extract_strided_slice %729 {offsets = [0, 384], sizes = [2, 128], strides = [1, 1]} : vector<2x512xf32> to vector<2x128xf32>
    %cst_242 = arith.constant 0.549306154 : f32
    %731 = vector.broadcast %cst_242 : f32 to vector<2x128xf32>
    %732 = arith.cmpf ogt, %730, %731 : vector<2x128xf32>
    %733 = arith.extui %732 : vector<2x128xi1> to vector<2x128xi32>
    %734 = vector.extract_strided_slice %729 {offsets = [0, 0], sizes = [2, 128], strides = [1, 1]} : vector<2x512xf32> to vector<2x128xf32>
    %cst_243 = arith.constant 0.000000e+00 : f32
    %735 = vector.broadcast %cst_243 : f32 to vector<2x128xf32>
    %736 = arith.cmpf ogt, %734, %735 : vector<2x128xf32>
    %737 = arith.extui %736 : vector<2x128xi1> to vector<2x128xi32>
    %c65536_i32_244 = arith.constant 65536 : i32
    %738 = vector.broadcast %c65536_i32_244 : i32 to vector<2x128xi32>
    %739 = arith.muli %737, %738 : vector<2x128xi32>
    %740 = arith.addi %733, %739 : vector<2x128xi32>
    %741 = vector.shape_cast %740 : vector<2x128xi32> to vector<1x2x128xi32>
    %cst_245 = arith.constant dense<0> : vector<1xi32>
    %742 = vector.multi_reduction <add>, %741, %cst_245 [1, 2] : vector<1x2x128xi32> to vector<1xi32>
    %743 = vector.shape_cast %742 : vector<1xi32> to vector<1x1x1xi32>
    %744 = vector.extract %743[0, 0, 0] : i32 from vector<1x1x1xi32>
    %c65535_i32_246 = arith.constant 65535 : i32
    %745 = arith.andi %744, %c65535_i32_246 : i32
    %c16_i32_247 = arith.constant 16 : i32
    %746 = arith.shrsi %744, %c16_i32_247 : i32
    %747 = vector.extract_strided_slice %729 {offsets = [0, 0], sizes = [2, 384], strides = [1, 1]} : vector<2x512xf32> to vector<2x384xf32>
    %cst_248 = arith.constant 5.000000e-01 : f32
    %748 = vector.broadcast %cst_248 : f32 to vector<2x384xf32>
    %749 = arith.mulf %748, %747 : vector<2x384xf32>
    %750 = math.tanh %749 : vector<2x384xf32>
    %cst_249 = arith.constant 1.000000e+00 : f32
    %751 = vector.broadcast %cst_249 : f32 to vector<2x384xf32>
    %752 = arith.addf %750, %751 : vector<2x384xf32>
    %cst_250 = arith.constant 5.000000e-01 : f32
    %753 = vector.broadcast %cst_250 : f32 to vector<2x384xf32>
    %754 = arith.mulf %753, %752 : vector<2x384xf32>
    %755 = vector.extract_strided_slice %754 {offsets = [0, 0], sizes = [2, 128], strides = [1, 1]} : vector<2x384xf32> to vector<2x128xf32>
    %756 = vector.extract_strided_slice %754 {offsets = [0, 128], sizes = [2, 128], strides = [1, 1]} : vector<2x384xf32> to vector<2x128xf32>
    %757 = vector.extract_strided_slice %754 {offsets = [0, 256], sizes = [2, 128], strides = [1, 1]} : vector<2x384xf32> to vector<2x128xf32>
    %758 = vector.extract_strided_slice %729 {offsets = [0, 384], sizes = [2, 128], strides = [1, 1]} : vector<2x512xf32> to vector<2x128xf32>
    %759 = math.tanh %758 : vector<2x128xf32>
    %760 = arith.sitofp %745 : i32 to f32
    %cst_251 = arith.constant 2.000000e+01 : f32
    %761 = arith.cmpf olt, %760, %cst_251 : f32
    %762 = arith.sitofp %746 : i32 to f32
    %cst_252 = arith.constant 2.000000e+01 : f32
    %763 = arith.cmpf ogt, %762, %cst_252 : f32
    %764 = arith.andi %761, %763 : i1
    %765 = arith.sitofp %745 : i32 to f32
    %cst_253 = arith.constant 2.000000e+01 : f32
    %766 = arith.cmpf ogt, %765, %cst_253 : f32
    %767 = arith.sitofp %746 : i32 to f32
    %cst_254 = arith.constant 2.000000e+01 : f32
    %768 = arith.cmpf olt, %767, %cst_254 : f32
    %769 = arith.andi %766, %768 : i1
    %770 = arith.mulf %755, %759 : vector<2x128xf32>
    %771 = arith.select %769, %759, %770 : vector<2x128xf32>
    %772 = arith.select %764, %755, %771 : vector<2x128xf32>
    %773 = arith.mulf %756, %671 : vector<2x128xf32>
    %774 = arith.addf %773, %772 : vector<2x128xf32>
    %775 = math.tanh %774 : vector<2x128xf32>
    %776 = arith.mulf %757, %775 : vector<2x128xf32>
    %777 = tpu.concatenate %776, %724 in 1 : vector<2x128xf32>, vector<2x128xf32> -> vector<2x256xf32>
    %c0_255 = arith.constant 0 : index
    %c0_256 = arith.constant 0 : index
    %778 = vector.load %arg2[%c0_255, %c0_256] : memref<256x512xf32, #tpu.memory_space<vmem>>, vector<256x512xf32>
    %cst_257 = arith.constant dense<0.000000e+00> : vector<2x512xf32>
    %779 = tpu.matmul %777, %778, %cst_257 {dimension_numbers = #tpu.dot_dimension_numbers<[1], [0], [0], [1], [0, 0, 1, 1], [], []>} : vector<2x256xf32>, vector<256x512xf32>, vector<2x512xf32> -> vector<2x512xf32>
    %780 = arith.addf %779, %3 : vector<2x512xf32>
    %781 = vector.extract_strided_slice %780 {offsets = [0, 384], sizes = [2, 128], strides = [1, 1]} : vector<2x512xf32> to vector<2x128xf32>
    %cst_258 = arith.constant 0.549306154 : f32
    %782 = vector.broadcast %cst_258 : f32 to vector<2x128xf32>
    %783 = arith.cmpf ogt, %781, %782 : vector<2x128xf32>
    %784 = arith.extui %783 : vector<2x128xi1> to vector<2x128xi32>
    %785 = vector.extract_strided_slice %780 {offsets = [0, 0], sizes = [2, 128], strides = [1, 1]} : vector<2x512xf32> to vector<2x128xf32>
    %cst_259 = arith.constant 0.000000e+00 : f32
    %786 = vector.broadcast %cst_259 : f32 to vector<2x128xf32>
    %787 = arith.cmpf ogt, %785, %786 : vector<2x128xf32>
    %788 = arith.extui %787 : vector<2x128xi1> to vector<2x128xi32>
    %c65536_i32_260 = arith.constant 65536 : i32
    %789 = vector.broadcast %c65536_i32_260 : i32 to vector<2x128xi32>
    %790 = arith.muli %788, %789 : vector<2x128xi32>
    %791 = arith.addi %784, %790 : vector<2x128xi32>
    %792 = vector.shape_cast %791 : vector<2x128xi32> to vector<1x2x128xi32>
    %cst_261 = arith.constant dense<0> : vector<1xi32>
    %793 = vector.multi_reduction <add>, %792, %cst_261 [1, 2] : vector<1x2x128xi32> to vector<1xi32>
    %794 = vector.shape_cast %793 : vector<1xi32> to vector<1x1x1xi32>
    %795 = vector.extract %794[0, 0, 0] : i32 from vector<1x1x1xi32>
    %c65535_i32_262 = arith.constant 65535 : i32
    %796 = arith.andi %795, %c65535_i32_262 : i32
    %c16_i32_263 = arith.constant 16 : i32
    %797 = arith.shrsi %795, %c16_i32_263 : i32
    %798 = vector.extract_strided_slice %780 {offsets = [0, 0], sizes = [2, 384], strides = [1, 1]} : vector<2x512xf32> to vector<2x384xf32>
    %cst_264 = arith.constant 5.000000e-01 : f32
    %799 = vector.broadcast %cst_264 : f32 to vector<2x384xf32>
    %800 = arith.mulf %799, %798 : vector<2x384xf32>
    %801 = math.tanh %800 : vector<2x384xf32>
    %cst_265 = arith.constant 1.000000e+00 : f32
    %802 = vector.broadcast %cst_265 : f32 to vector<2x384xf32>
    %803 = arith.addf %801, %802 : vector<2x384xf32>
    %cst_266 = arith.constant 5.000000e-01 : f32
    %804 = vector.broadcast %cst_266 : f32 to vector<2x384xf32>
    %805 = arith.mulf %804, %803 : vector<2x384xf32>
    %806 = vector.extract_strided_slice %805 {offsets = [0, 0], sizes = [2, 128], strides = [1, 1]} : vector<2x384xf32> to vector<2x128xf32>
    %807 = vector.extract_strided_slice %805 {offsets = [0, 128], sizes = [2, 128], strides = [1, 1]} : vector<2x384xf32> to vector<2x128xf32>
    %808 = vector.extract_strided_slice %805 {offsets = [0, 256], sizes = [2, 128], strides = [1, 1]} : vector<2x384xf32> to vector<2x128xf32>
    %809 = vector.extract_strided_slice %780 {offsets = [0, 384], sizes = [2, 128], strides = [1, 1]} : vector<2x512xf32> to vector<2x128xf32>
    %810 = math.tanh %809 : vector<2x128xf32>
    %811 = arith.sitofp %796 : i32 to f32
    %cst_267 = arith.constant 2.000000e+01 : f32
    %812 = arith.cmpf olt, %811, %cst_267 : f32
    %813 = arith.sitofp %797 : i32 to f32
    %cst_268 = arith.constant 2.000000e+01 : f32
    %814 = arith.cmpf ogt, %813, %cst_268 : f32
    %815 = arith.andi %812, %814 : i1
    %816 = arith.sitofp %796 : i32 to f32
    %cst_269 = arith.constant 2.000000e+01 : f32
    %817 = arith.cmpf ogt, %816, %cst_269 : f32
    %818 = arith.sitofp %797 : i32 to f32
    %cst_270 = arith.constant 2.000000e+01 : f32
    %819 = arith.cmpf olt, %818, %cst_270 : f32
    %820 = arith.andi %817, %819 : i1
    %821 = arith.mulf %806, %810 : vector<2x128xf32>
    %822 = arith.select %820, %810, %821 : vector<2x128xf32>
    %823 = arith.select %815, %806, %822 : vector<2x128xf32>
    %824 = arith.mulf %807, %722 : vector<2x128xf32>
    %825 = arith.addf %824, %823 : vector<2x128xf32>
    %826 = math.tanh %825 : vector<2x128xf32>
    %827 = arith.mulf %808, %826 : vector<2x128xf32>
    %c0_271 = arith.constant 0 : index
    %c0_272 = arith.constant 0 : index
    %828 = vector.load %arg4[%c0_271, %c0_272] : memref<128x4xf32, #tpu.memory_space<vmem>>, vector<128x4xf32>
    %cst_273 = arith.constant dense<0.000000e+00> : vector<2x4xf32>
    %829 = tpu.matmul %827, %828, %cst_273 {dimension_numbers = #tpu.dot_dimension_numbers<[1], [0], [0], [1], [0, 0, 1, 1], [], []>} : vector<2x128xf32>, vector<128x4xf32>, vector<2x4xf32> -> vector<2x4xf32>
    %c0_274 = arith.constant 0 : index
    %c0_275 = arith.constant 0 : index
    %830 = vector.load %arg5[%c0_274, %c0_275] : memref<1x4xf32, #tpu.memory_space<vmem>>, vector<1x4xf32>
    %831 = vector.broadcast %830 : vector<1x4xf32> to vector<2x4xf32>
    %832 = arith.addf %829, %831 : vector<2x4xf32>
    %c0_276 = arith.constant 0 : index
    %c0_277 = arith.constant 0 : index
    %833 = vector.load %arg6[%c0_276, %c0_277] : memref<2x4xf32, #tpu.memory_space<vmem>>, vector<2x4xf32>
    tpu.vector_store %arg6[%c0_276, %c0_277], %832 {strides = array<i32>} : memref<2x4xf32, #tpu.memory_space<vmem>>, vector<2x4xf32>,
    return
  }
}

</mosaic_0001>

<llo_original>
// kernel: lstm_predictor.1
$region0: #{lstm_predictor.1}
  #allocation0 [shape = 'u32[]', space=smem, size = 0x4, offset = 0x4, fixed_abs, tag = 'smem constant byte address 0x4 - core index']
  #allocation1 [shape = 'u32[144,128]{1,0:T(1,128)}', space=vmem, size = 0x12000, scoped, tag = 'internal scratch']
  %s0 = inlined_call_operand.vmem [shape: f32[8,2,512], index: 0, kind: input, shape index: {}]
  %s1 = inlined_call_operand.vmem [shape: f32[128,512], index: 1, kind: input, shape index: {}]
  %s2 = inlined_call_operand.vmem [shape: f32[256,512], index: 2, kind: input, shape index: {}]
  %s3 = inlined_call_operand.vmem [shape: f32[1,512], index: 3, kind: input, shape index: {}]
  %s4 = inlined_call_operand.vmem [shape: f32[128,4], index: 4, kind: input, shape index: {}]
  %s5 = inlined_call_operand.vmem [shape: f32[1,4], index: 5, kind: input, shape index: {}]
  %s6 = inlined_call_operand.hbm [shape: f32[2,4], index: 6, kind: output, shape index: {}]
  %s7 = sld [smem:[#allocation0]]
  $region34: #{lstm_predictor.1} parent=0
    _
  %s9 = ssub.s32 1, %s7
  %s10 = scalar_select 0, %s9, %s7
  $region1: #{lstm_predictor.1} parent=0
    #allocation2 [shape = 'u8[1024]{0}', space=vmem, size = 0x400, scoped, tag = 'output window, operand 0, single buffered']
    #allocation3 [shape = 's32[1]{0}', space=sflag, size = 0x4, scoped, tag = 'scoped memory for lstm_predictor.1']
    %11 = vsyncpa [#allocation3], 0
    // Predicated region
    $region2: #{lstm_predictor.1} parent=1 // pred_check
      _
    $region3: #{lstm_predictor.1} parent=1 // pred_check_branch
      %13 = sbr.rel (0) target = $region5
    $region4: #{lstm_predictor.1} parent=1 // pred_region
      _
    $region5: #{lstm_predictor.1} parent=1 // pred_fallthru
      _
    // Predicated region
    $region6: #{lstm_predictor.1} parent=1 // pred_check
      _
    $region7: #{lstm_predictor.1} parent=1 // pred_check_branch
      %15 = sbr.rel (0) target = $region9
    $region8: #{lstm_predictor.1} parent=1 // pred_region
      _
    $region9: #{lstm_predictor.1} parent=1 // pred_fallthru
      _
    // Predicated region
    $region10: #{lstm_predictor.1} parent=1 // pred_check
      _
    $region11: #{lstm_predictor.1} parent=1 // pred_check_branch
      %17 = sbr.rel (0) target = $region13
    $region12: #{lstm_predictor.1} parent=1 // pred_region
      _
    $region13: #{lstm_predictor.1} parent=1 // pred_fallthru
      _
    // Predicated region
    $region14: #{lstm_predictor.1} parent=1 // pred_check
      _
    $region15: #{lstm_predictor.1} parent=1 // pred_check_branch
      %19 = sbr.rel (0) target = $region17
    $region16: #{lstm_predictor.1} parent=1 // pred_region
      _
    $region17: #{lstm_predictor.1} parent=1 // pred_fallthru
      _
    // Predicated region
    $region18: #{lstm_predictor.1} parent=1 // pred_check
      _
    $region19: #{lstm_predictor.1} parent=1 // pred_check_branch
      %21 = sbr.rel (0) target = $region21
    $region20: #{lstm_predictor.1} parent=1 // pred_region
      _
    $region21: #{lstm_predictor.1} parent=1 // pred_fallthru
      _
    // Predicated region
    $region22: #{lstm_predictor.1} parent=1 // pred_check
      _
    $region23: #{lstm_predictor.1} parent=1 // pred_check_branch
      %23 = sbr.rel (0) target = $region25
    $region24: #{lstm_predictor.1} parent=1 // pred_region
      _
    $region25: #{lstm_predictor.1} parent=1 // pred_fallthru
      _
    %v24 = vld [vmem:[%s3] sm:$0xf]
    %v26 = vlaneseq
    %v27 = vshrl.u32 %v26, 7
    %v28 = vsub.s32 0, %v27
    %v29 = vrot.slane %v24, %v28
    %v30 = vlaneseq
    %v31 = vshrl.u32 %v30, 7
    %v32 = vsub.s32 1, %v31
    %v33 = vrot.slane %v24, %v32
    %v34 = vlaneseq
    %v35 = vshrl.u32 %v34, 7
    %v36 = vsub.s32 2, %v35
    %v37 = vrot.slane %v24, %v36
    %v38 = vlaneseq
    %v39 = vshrl.u32 %v38, 7
    %v40 = vsub.s32 3, %v39
    %v41 = vrot.slane %v24, %v40
    %v46 = vld [vmem:[%s0] sm:$0xff]
    %v47 = vld [vmem:[%s1] sm:$0xff]
    %v48 = vld [vmem:[%s1 + $0x8] sm:$0xff]
    %v49 = vld [vmem:[%s1 + $0x10] sm:$0xff]
    %v50 = vld [vmem:[%s1 + $0x18] sm:$0xff]
    %v51 = vld [vmem:[%s1 + $0x20] sm:$0xff]
    %v52 = vld [vmem:[%s1 + $0x28] sm:$0xff]
    %v53 = vld [vmem:[%s1 + $0x30] sm:$0xff]
    %v54 = vld [vmem:[%s1 + $0x38] sm:$0xff]
    %v55 = vld [vmem:[%s1 + $0x40] sm:$0xff]
    %v56 = vld [vmem:[%s1 + $0x48] sm:$0xff]
    %v57 = vld [vmem:[%s1 + $0x50] sm:$0xff]
    %v58 = vld [vmem:[%s1 + $0x58] sm:$0xff]
    %v59 = vld [vmem:[%s1 + $0x60] sm:$0xff]
    %v60 = vld [vmem:[%s1 + $0x68] sm:$0xff]
    %v61 = vld [vmem:[%s1 + $0x70] sm:$0xff]
    %v62 = vld [vmem:[%s1 + $0x78] sm:$0xff]
    %v63 = vld [vmem:[%s1 + $0x80] sm:$0xff]
    %v64 = vld [vmem:[%s1 + $0x88] sm:$0xff]
    %v65 = vld [vmem:[%s1 + $0x90] sm:$0xff]
    %v66 = vld [vmem:[%s1 + $0x98] sm:$0xff]
    %v67 = vld [vmem:[%s1 + $0xa0] sm:$0xff]
    %v68 = vld [vmem:[%s1 + $0xa8] sm:$0xff]
    %v69 = vld [vmem:[%s1 + $0xb0] sm:$0xff]
    %v70 = vld [vmem:[%s1 + $0xb8] sm:$0xff]
    %v71 = vld [vmem:[%s1 + $0xc0] sm:$0xff]
    %v72 = vld [vmem:[%s1 + $0xc8] sm:$0xff]
    %v73 = vld [vmem:[%s1 + $0xd0] sm:$0xff]
    %v74 = vld [vmem:[%s1 + $0xd8] sm:$0xff]
    %v75 = vld [vmem:[%s1 + $0xe0] sm:$0xff]
    %v76 = vld [vmem:[%s1 + $0xe8] sm:$0xff]
    %v77 = vld [vmem:[%s1 + $0xf0] sm:$0xff]
    %v78 = vld [vmem:[%s1 + $0xf8] sm:$0xff]
    %v79 = vld [vmem:[%s1 + $0x100] sm:$0xff]
    %v80 = vld [vmem:[%s1 + $0x108] sm:$0xff]
    %v81 = vld [vmem:[%s1 + $0x110] sm:$0xff]
    %v82 = vld [vmem:[%s1 + $0x118] sm:$0xff]
    %v83 = vld [vmem:[%s1 + $0x120] sm:$0xff]
    %v84 = vld [vmem:[%s1 + $0x128] sm:$0xff]
    %v85 = vld [vmem:[%s1 + $0x130] sm:$0xff]
    %v86 = vld [vmem:[%s1 + $0x138] sm:$0xff]
    %v87 = vld [vmem:[%s1 + $0x140] sm:$0xff]
    %v88 = vld [vmem:[%s1 + $0x148] sm:$0xff]
    %v89 = vld [vmem:[%s1 + $0x150] sm:$0xff]
    %v90 = vld [vmem:[%s1 + $0x158] sm:$0xff]
    %v91 = vld [vmem:[%s1 + $0x160] sm:$0xff]
    %v92 = vld [vmem:[%s1 + $0x168] sm:$0xff]
    %v93 = vld [vmem:[%s1 + $0x170] sm:$0xff]
    %v94 = vld [vmem:[%s1 + $0x178] sm:$0xff]
    %v95 = vld [vmem:[%s1 + $0x180] sm:$0xff]
    %v96 = vld [vmem:[%s1 + $0x188] sm:$0xff]
    %v97 = vld [vmem:[%s1 + $0x190] sm:$0xff]
    %v98 = vld [vmem:[%s1 + $0x198] sm:$0xff]
    %v99 = vld [vmem:[%s1 + $0x1a0] sm:$0xff]
    %v100 = vld [vmem:[%s1 + $0x1a8] sm:$0xff]
    %v101 = vld [vmem:[%s1 + $0x1b0] sm:$0xff]
    %v102 = vld [vmem:[%s1 + $0x1b8] sm:$0xff]
    %v103 = vld [vmem:[%s1 + $0x1c0] sm:$0xff]
    %v104 = vld [vmem:[%s1 + $0x1c8] sm:$0xff]
    %v105 = vld [vmem:[%s1 + $0x1d0] sm:$0xff]
    %v106 = vld [vmem:[%s1 + $0x1d8] sm:$0xff]
    %v107 = vld [vmem:[%s1 + $0x1e0] sm:$0xff]
    %v108 = vld [vmem:[%s1 + $0x1e8] sm:$0xff]
    %v109 = vld [vmem:[%s1 + $0x1f0] sm:$0xff]
    %v110 = vld [vmem:[%s1 + $0x1f8] sm:$0xff]
    %111 = vmatprep.subr.mxu0 %v48
    %112 = vmatpush1.msra.mxu0 %v47
    %113 = vmatprep.subr.mxu0 %v52
    %114 = vmatpush1.msra.mxu0 %v51
    %115 = vmatprep.subr.mxu0 %v56
    %116 = vmatpush1.msra.mxu0 %v55
    %117 = vmatprep.subr.mxu0 %v60
    %118 = vmatpush1.msra.mxu0 %v59
    %119 = vmatprep.subr.mxu0 %v64
    %120 = vmatpush1.msra.mxu0 %v63
    %121 = vmatprep.subr.mxu0 %v68
    %122 = vmatpush1.msra.mxu0 %v67
    %123 = vmatprep.subr.mxu0 %v72
    %124 = vmatpush1.msra.mxu0 %v71
    %125 = vmatprep.subr.mxu0 %v76
    %126 = vmatpush1.msra.mxu0 %v75
    %127 = vmatprep.subr.mxu0 %v80
    %128 = vmatpush1.msra.mxu0 %v79
    %129 = vmatprep.subr.mxu0 %v84
    %130 = vmatpush1.msra.mxu0 %v83
    %131 = vmatprep.subr.mxu0 %v88
    %132 = vmatpush1.msra.mxu0 %v87
    %133 = vmatprep.subr.mxu0 %v92
    %134 = vmatpush1.msra.mxu0 %v91
    %135 = vmatprep.subr.mxu0 %v96
    %136 = vmatpush1.msra.mxu0 %v95
    %137 = vmatprep.subr.mxu0 %v100
    %138 = vmatpush1.msra.mxu0 %v99
    %139 = vmatprep.subr.mxu0 %v104
    %140 = vmatpush1.msra.mxu0 %v103
    %141 = vmatprep.subr.mxu0 %v108
    %142 = vmatpush1.msra.mxu0 %v107
    %143 = vmatprep.subr.mxu0 0.0
    %144 = vmatpush1.msra.mxu0 0.0
    %145 = vmatprep.subr.mxu0 0.0
    %146 = vmatpush1.msra.mxu0 0.0
    %147 = vmatprep.subr.mxu0 0.0
    %148 = vmatpush1.msra.mxu0 0.0
    %149 = vmatprep.subr.mxu0 0.0
    %150 = vmatpush1.msra.mxu0 0.0
    %151 = vmatprep.subr.mxu0 0.0
    %152 = vmatpush1.msra.mxu0 0.0
    %153 = vmatprep.subr.mxu0 0.0
    %154 = vmatpush1.msra.mxu0 0.0
    %155 = vmatprep.subr.mxu0 0.0
    %156 = vmatpush1.msra.mxu0 0.0
    %157 = vmatprep.subr.mxu0 0.0
    %158 = vmatpush1.msra.mxu0 0.0
    %159 = vmatprep.subr.mxu0 0.0
    %160 = vmatpush1.msra.mxu0 0.0
    %161 = vmatprep.subr.mxu0 0.0
    %162 = vmatpush1.msra.mxu0 0.0
    %163 = vmatprep.subr.mxu0 0.0
    %164 = vmatpush1.msra.mxu0 0.0
    %165 = vmatprep.subr.mxu0 0.0
    %166 = vmatpush1.msra.mxu0 0.0
    %167 = vmatprep.subr.mxu0 0.0
    %168 = vmatpush1.msra.mxu0 0.0
    %169 = vmatprep.subr.mxu0 0.0
    %170 = vmatpush1.msra.mxu0 0.0
    %171 = vmatprep.subr.mxu0 0.0
    %172 = vmatpush1.msra.mxu0 0.0
    %173 = vmatprep.subr.mxu0 0.0
    %174 = vmatpush1.msra.mxu0 0.0
    %175 = vmatprep.mubr.f32.mxu0 0.0
    %176 = vmatmul.mubr.f32.gmra.mrb[0].mxu0 0.0
    %v177 = vpop.f32.mrb[0].mxu0
    %v178 = vadd.f32 0.0, %v177
    %v179 = vpop.f32.mrb[0].mxu0
    %v180 = vadd.f32 0.0, %v179
    %181 = vdwg.mxu0
    %182 = vmatprep.subr.mxu0 %v50
    %183 = vmatpush1.msra.mxu0 %v49
    %184 = vmatprep.subr.mxu0 %v54
    %185 = vmatpush1.msra.mxu0 %v53
    %186 = vmatprep.subr.mxu0 %v58
    %187 = vmatpush1.msra.mxu0 %v57
    %188 = vmatprep.subr.mxu0 %v62
    %189 = vmatpush1.msra.mxu0 %v61
    %190 = vmatprep.subr.mxu0 %v66
    %191 = vmatpush1.msra.mxu0 %v65
    %192 = vmatprep.subr.mxu0 %v70
    %193 = vmatpush1.msra.mxu0 %v69
    %194 = vmatprep.subr.mxu0 %v74
    %195 = vmatpush1.msra.mxu0 %v73
    %196 = vmatprep.subr.mxu0 %v78
    %197 = vmatpush1.msra.mxu0 %v77
    %198 = vmatprep.subr.mxu0 %v82
    %199 = vmatpush1.msra.mxu0 %v81
    %200 = vmatprep.subr.mxu0 %v86
    %201 = vmatpush1.msra.mxu0 %v85
    %202 = vmatprep.subr.mxu0 %v90
    %203 = vmatpush1.msra.mxu0 %v89
    %204 = vmatprep.subr.mxu0 %v94
    %205 = vmatpush1.msra.mxu0 %v93
    %206 = vmatprep.subr.mxu0 %v98
    %207 = vmatpush1.msra.mxu0 %v97
    %208 = vmatprep.subr.mxu0 %v102
    %209 = vmatpush1.msra.mxu0 %v101
    %210 = vmatprep.subr.mxu0 %v106
    %211 = vmatpush1.msra.mxu0 %v105
    %212 = vmatprep.subr.mxu0 %v110
    %213 = vmatpush1.msra.mxu0 %v109
    %214 = vmatprep.subr.mxu0 0.0
    %215 = vmatpush1.msra.mxu0 0.0
    %216 = vmatprep.subr.mxu0 0.0
    %217 = vmatpush1.msra.mxu0 0.0
    %218 = vmatprep.subr.mxu0 0.0
    %219 = vmatpush1.msra.mxu0 0.0
    %220 = vmatprep.subr.mxu0 0.0
    %221 = vmatpush1.msra.mxu0 0.0
    %222 = vmatprep.subr.mxu0 0.0
    %223 = vmatpush1.msra.mxu0 0.0
    %224 = vmatprep.subr.mxu0 0.0
    %225 = vmatpush1.msra.mxu0 0.0
    %226 = vmatprep.subr.mxu0 0.0
    %227 = vmatpush1.msra.mxu0 0.0
    %228 = vmatprep.subr.mxu0 0.0
    %229 = vmatpush1.msra.mxu0 0.0
    %230 = vmatprep.subr.mxu0 0.0
    %231 = vmatpush1.msra.mxu0 0.0
    %232 = vmatprep.subr.mxu0 0.0
    %233 = vmatpush1.msra.mxu0 0.0
    %234 = vmatprep.subr.mxu0 0.0
    %235 = vmatpush1.msra.mxu0 0.0
    %236 = vmatprep.subr.mxu0 0.0
    %237 = vmatpush1.msra.mxu0 0.0
    %238 = vmatprep.subr.mxu0 0.0
    %239 = vmatpush1.msra.mxu0 0.0
    %240 = vmatprep.subr.mxu0 0.0
    %241 = vmatpush1.msra.mxu0 0.0
    %242 = vmatprep.subr.mxu0 0.0
    %243 = vmatpush1.msra.mxu0 0.0
    %244 = vmatprep.subr.mxu0 0.0
    %245 = vmatpush1.msra.mxu0 0.0
    %246 = vmatprep.mubr.f32.mxu0 0.0
    %247 = vmatmul.mubr.f32.gmra.mrb[0].mxu0 0.0
    %v248 = vpop.f32.mrb[0].mxu0
    %v249 = vadd.f32 0.0, %v248
    %v250 = vpop.f32.mrb[0].mxu0
    %v251 = vadd.f32 0.0, %v250
    %252 = vdwg.mxu0
    %v257 = vcombine.low %v178, %v180
    %v258 = vcombine.low %v249, %v251
    %v260 = vunpack.c.l.s4 1983009808
    %v261 = vunpack.c.0.s8 %v260
    %v262 = vlaneseq
    %v263 = vshrl.u32 %v262, 7
    %v264 = vsub.s32 %v261, %v263
    %v265 = vrot.slane %v257, %v264
    %v267 = vunpack.c.l.s4 1983009808
    %v268 = vunpack.c.0.s8 %v267
    %v269 = vlaneseq
    %v270 = vshrl.u32 %v269, 7
    %v271 = vsub.s32 %v268, %v270
    %v272 = vrot.slane %v258, %v271
    %v273 = vcombine.low %v265, %v272
    %v275 = vadd.f32 %v46, %v273
    %v277 = vrot.slane %v275, 6
    %vm279 = vcmp.gt.f32.partialorder %v277, 0.54930615
    %v280 = vsel %vm279, 1, 0
    %vm281 = vcmp.gt.f32.partialorder %v275, 0.0
    %v282 = vsel %vm281, 1, 0
    %v283 = vmul.u32 %v282, 65536
    %v284 = vadd.s32 %v280, %v283
    %vm285 = vcmask 1041408
    %v286 = vsel %vm285, %v284, 0
    %v287 = vand.u32 %v286, 65535
    %v288 = vshrl.u32 %v286, 16
    %v289 = vcvt.s32.f32 %v287
    %v290 = vcvt.s32.f32 %v288
    %291 = vadd.xlane.f32.xlu0 %v289
    %v292 = vpop.xlane.xlu0 %291
    %293 = vadd.xlane.f32.xlu0 %v290
    %v294 = vpop.xlane.xlu0 %293
    %v295 = vcvt.f32.s32 %v292
    %v296 = vcvt.f32.s32 %v294
    %v297 = vshll.u32 %v296, 16
    %v298 = vadd.s32 %v297, %v295
    %v299 = vrot.slane %v298, 4
    %v300 = vadd.s32 %v298, %v299
    %v301 = vrot.slane %v300, 2
    %v302 = vadd.s32 %v300, %v301
    %v303 = vrot.slane %v302, 1
    %v304 = vadd.s32 %v302, %v303
    %s305 = vtos %v304
    %s306 = sand.u32 %s305, 65535
    %s307 = sshra.s32 %s305, 16
    %v308 = vmul.f32 %v275, 0.5
    %v309 = vtanh.pop %v308
    %v310 = vadd.f32 %v309, 1.0
    %v311 = vmul.f32 %v310, 0.5
    %v312 = vtanh.pop %v277
    %p313 = scmp.lt.s32.totalorder %s306, 20
    %p314 = scmp.gt.s32.totalorder %s307, 20
    %p315 = pnand %p313, %p314
    %p316 = pneg %p315
    %p317 = scmp.gt.s32.totalorder %s306, 20
    %p318 = scmp.lt.s32.totalorder %s307, 20
    %p319 = pnand %p317, %p318
    %p320 = pneg %p319
    %v321 = vmul.f32 %v311, %v312
    %s322 = scalar_select %p320, 1, 0
    %v323 = vstv %s322
    %vm324 = vcmp.eq.s32.totalorder %v323, 1
    %v325 = vsel %vm324, %v312, %v321
    %s326 = scalar_select %p316, 1, 0
    %v327 = vstv %s326
    %vm328 = vcmp.eq.s32.totalorder %v327, 1
    %v329 = vsel %vm328, %v311, %v325
    %v331 = vrot.slane %v311, 2
    %v333 = vmul.f32 %v331, 0.0
    %v334 = vadd.f32 %v333, %v329
    %v335 = vtanh.pop %v334
    %v336 = vrot.slane %v311, 4
    %v338 = vmul.f32 %v336, %v335
    %v339 = vld [vmem:[%s2] sm:$0xff]
    %v340 = vld [vmem:[%s2 + $0x8] sm:$0xff]
    %v341 = vld [vmem:[%s2 + $0x10] sm:$0xff]
    %v342 = vld [vmem:[%s2 + $0x18] sm:$0xff]
    %v343 = vld [vmem:[%s2 + $0x20] sm:$0xff]
    %v344 = vld [vmem:[%s2 + $0x28] sm:$0xff]
    %v345 = vld [vmem:[%s2 + $0x30] sm:$0xff]
    %v346 = vld [vmem:[%s2 + $0x38] sm:$0xff]
    %v347 = vld [vmem:[%s2 + $0x40] sm:$0xff]
    %v348 = vld [vmem:[%s2 + $0x48] sm:$0xff]
    %v349 = vld [vmem:[%s2 + $0x50] sm:$0xff]
    %v350 = vld [vmem:[%s2 + $0x58] sm:$0xff]
    %v351 = vld [vmem:[%s2 + $0x60] sm:$0xff]
    %v352 = vld [vmem:[%s2 + $0x68] sm:$0xff]
    %v353 = vld [vmem:[%s2 + $0x70] sm:$0xff]
    %v354 = vld [vmem:[%s2 + $0x78] sm:$0xff]
    %v355 = vld [vmem:[%s2 + $0x80] sm:$0xff]
    %v356 = vld [vmem:[%s2 + $0x88] sm:$0xff]
    %v357 = vld [vmem:[%s2 + $0x90] sm:$0xff]
    %v358 = vld [vmem:[%s2 + $0x98] sm:$0xff]
    %v359 = vld [vmem:[%s2 + $0xa0] sm:$0xff]
    %v360 = vld [vmem:[%s2 + $0xa8] sm:$0xff]
    %v361 = vld [vmem:[%s2 + $0xb0] sm:$0xff]
    %v362 = vld [vmem:[%s2 + $0xb8] sm:$0xff]
    %v363 = vld [vmem:[%s2 + $0xc0] sm:$0xff]
    %v364 = vld [vmem:[%s2 + $0xc8] sm:$0xff]
    %v365 = vld [vmem:[%s2 + $0xd0] sm:$0xff]
    %v366 = vld [vmem:[%s2 + $0xd8] sm:$0xff]
    %v367 = vld [vmem:[%s2 + $0xe0] sm:$0xff]
    %v368 = vld [vmem:[%s2 + $0xe8] sm:$0xff]
    %v369 = vld [vmem:[%s2 + $0xf0] sm:$0xff]
    %v370 = vld [vmem:[%s2 + $0xf8] sm:$0xff]
    %v371 = vld [vmem:[%s2 + $0x100] sm:$0xff]
    %v372 = vld [vmem:[%s2 + $0x108] sm:$0xff]
    %v373 = vld [vmem:[%s2 + $0x110] sm:$0xff]
    %v374 = vld [vmem:[%s2 + $0x118] sm:$0xff]
    %v375 = vld [vmem:[%s2 + $0x120] sm:$0xff]
    %v376 = vld [vmem:[%s2 + $0x128] sm:$0xff]
    %v377 = vld [vmem:[%s2 + $0x130] sm:$0xff]
    %v378 = vld [vmem:[%s2 + $0x138] sm:$0xff]
    %v379 = vld [vmem:[%s2 + $0x140] sm:$0xff]
    %v380 = vld [vmem:[%s2 + $0x148] sm:$0xff]
    %v381 = vld [vmem:[%s2 + $0x150] sm:$0xff]
    %v382 = vld [vmem:[%s2 + $0x158] sm:$0xff]
    %v383 = vld [vmem:[%s2 + $0x160] sm:$0xff]
    %v384 = vld [vmem:[%s2 + $0x168] sm:$0xff]
    %v385 = vld [vmem:[%s2 + $0x170] sm:$0xff]
    %v386 = vld [vmem:[%s2 + $0x178] sm:$0xff]
    %v387 = vld [vmem:[%s2 + $0x180] sm:$0xff]
    %v388 = vld [vmem:[%s2 + $0x188] sm:$0xff]
    %v389 = vld [vmem:[%s2 + $0x190] sm:$0xff]
    %v390 = vld [vmem:[%s2 + $0x198] sm:$0xff]
    %v391 = vld [vmem:[%s2 + $0x1a0] sm:$0xff]
    %v392 = vld [vmem:[%s2 + $0x1a8] sm:$0xff]
    %v393 = vld [vmem:[%s2 + $0x1b0] sm:$0xff]
    %v394 = vld [vmem:[%s2 + $0x1b8] sm:$0xff]
    %v395 = vld [vmem:[%s2 + $0x1c0] sm:$0xff]
    %v396 = vld [vmem:[%s2 + $0x1c8] sm:$0xff]
    %v397 = vld [vmem:[%s2 + $0x1d0] sm:$0xff]
    %v398 = vld [vmem:[%s2 + $0x1d8] sm:$0xff]
    %v399 = vld [vmem:[%s2 + $0x1e0] sm:$0xff]
    %v400 = vld [vmem:[%s2 + $0x1e8] sm:$0xff]
    %v401 = vld [vmem:[%s2 + $0x1f0] sm:$0xff]
    %v402 = vld [vmem:[%s2 + $0x1f8] sm:$0xff]
    %v403 = vld [vmem:[%s2 + $0x200] sm:$0xff]
    %v404 = vld [vmem:[%s2 + $0x208] sm:$0xff]
    %v405 = vld [vmem:[%s2 + $0x210] sm:$0xff]
    %v406 = vld [vmem:[%s2 + $0x218] sm:$0xff]
    %v407 = vld [vmem:[%s2 + $0x220] sm:$0xff]
    %v408 = vld [vmem:[%s2 + $0x228] sm:$0xff]
    %v409 = vld [vmem:[%s2 + $0x230] sm:$0xff]
    %v410 = vld [vmem:[%s2 + $0x238] sm:$0xff]
    %v411 = vld [vmem:[%s2 + $0x240] sm:$0xff]
    %v412 = vld [vmem:[%s2 + $0x248] sm:$0xff]
    %v413 = vld [vmem:[%s2 + $0x250] sm:$0xff]
    %v414 = vld [vmem:[%s2 + $0x258] sm:$0xff]
    %v415 = vld [vmem:[%s2 + $0x260] sm:$0xff]
    %v416 = vld [vmem:[%s2 + $0x268] sm:$0xff]
    %v417 = vld [vmem:[%s2 + $0x270] sm:$0xff]
    %v418 = vld [vmem:[%s2 + $0x278] sm:$0xff]
    %v419 = vld [vmem:[%s2 + $0x280] sm:$0xff]
    %v420 = vld [vmem:[%s2 + $0x288] sm:$0xff]
    %v421 = vld [vmem:[%s2 + $0x290] sm:$0xff]
    %v422 = vld [vmem:[%s2 + $0x298] sm:$0xff]
    %v423 = vld [vmem:[%s2 + $0x2a0] sm:$0xff]
    %v424 = vld [vmem:[%s2 + $0x2a8] sm:$0xff]
    %v425 = vld [vmem:[%s2 + $0x2b0] sm:$0xff]
    %v426 = vld [vmem:[%s2 + $0x2b8] sm:$0xff]
    %v427 = vld [vmem:[%s2 + $0x2c0] sm:$0xff]
    %v428 = vld [vmem:[%s2 + $0x2c8] sm:$0xff]
    %v429 = vld [vmem:[%s2 + $0x2d0] sm:$0xff]
    %v430 = vld [vmem:[%s2 + $0x2d8] sm:$0xff]
    %v431 = vld [vmem:[%s2 + $0x2e0] sm:$0xff]
    %v432 = vld [vmem:[%s2 + $0x2e8] sm:$0xff]
    %v433 = vld [vmem:[%s2 + $0x2f0] sm:$0xff]
    %v434 = vld [vmem:[%s2 + $0x2f8] sm:$0xff]
    %v435 = vld [vmem:[%s2 + $0x300] sm:$0xff]
    %v436 = vld [vmem:[%s2 + $0x308] sm:$0xff]
    %v437 = vld [vmem:[%s2 + $0x310] sm:$0xff]
    %v438 = vld [vmem:[%s2 + $0x318] sm:$0xff]
    %v439 = vld [vmem:[%s2 + $0x320] sm:$0xff]
    %v440 = vld [vmem:[%s2 + $0x328] sm:$0xff]
    %v441 = vld [vmem:[%s2 + $0x330] sm:$0xff]
    %v442 = vld [vmem:[%s2 + $0x338] sm:$0xff]
    %v443 = vld [vmem:[%s2 + $0x340] sm:$0xff]
    %v444 = vld [vmem:[%s2 + $0x348] sm:$0xff]
    %v445 = vld [vmem:[%s2 + $0x350] sm:$0xff]
    %v446 = vld [vmem:[%s2 + $0x358] sm:$0xff]
    %v447 = vld [vmem:[%s2 + $0x360] sm:$0xff]
    %v448 = vld [vmem:[%s2 + $0x368] sm:$0xff]
    %v449 = vld [vmem:[%s2 + $0x370] sm:$0xff]
    %v450 = vld [vmem:[%s2 + $0x378] sm:$0xff]
    %v451 = vld [vmem:[%s2 + $0x380] sm:$0xff]
    %v452 = vld [vmem:[%s2 + $0x388] sm:$0xff]
    %v453 = vld [vmem:[%s2 + $0x390] sm:$0xff]
    %v454 = vld [vmem:[%s2 + $0x398] sm:$0xff]
    %v455 = vld [vmem:[%s2 + $0x3a0] sm:$0xff]
    %v456 = vld [vmem:[%s2 + $0x3a8] sm:$0xff]
    %v457 = vld [vmem:[%s2 + $0x3b0] sm:$0xff]
    %v458 = vld [vmem:[%s2 + $0x3b8] sm:$0xff]
    %v459 = vld [vmem:[%s2 + $0x3c0] sm:$0xff]
    %v460 = vld [vmem:[%s2 + $0x3c8] sm:$0xff]
    %v461 = vld [vmem:[%s2 + $0x3d0] sm:$0xff]
    %v462 = vld [vmem:[%s2 + $0x3d8] sm:$0xff]
    %v463 = vld [vmem:[%s2 + $0x3e0] sm:$0xff]
    %v464 = vld [vmem:[%s2 + $0x3e8] sm:$0xff]
    %v465 = vld [vmem:[%s2 + $0x3f0] sm:$0xff]
    %v466 = vld [vmem:[%s2 + $0x3f8] sm:$0xff]
    %467 = vmatprep.subr.mxu0 %v340
    %468 = vmatpush1.msra.mxu0 %v339
    %469 = vmatprep.subr.mxu0 %v344
    %470 = vmatpush1.msra.mxu0 %v343
    %471 = vmatprep.subr.mxu0 %v348
    %472 = vmatpush1.msra.mxu0 %v347
    %473 = vmatprep.subr.mxu0 %v352
    %474 = vmatpush1.msra.mxu0 %v351
    %475 = vmatprep.subr.mxu0 %v356
    %476 = vmatpush1.msra.mxu0 %v355
    %477 = vmatprep.subr.mxu0 %v360
    %478 = vmatpush1.msra.mxu0 %v359
    %479 = vmatprep.subr.mxu0 %v364
    %480 = vmatpush1.msra.mxu0 %v363
    %481 = vmatprep.subr.mxu0 %v368
    %482 = vmatpush1.msra.mxu0 %v367
    %483 = vmatprep.subr.mxu0 %v372
    %484 = vmatpush1.msra.mxu0 %v371
    %485 = vmatprep.subr.mxu0 %v376
    %486 = vmatpush1.msra.mxu0 %v375
    %487 = vmatprep.subr.mxu0 %v380
    %488 = vmatpush1.msra.mxu0 %v379
    %489 = vmatprep.subr.mxu0 %v384
    %490 = vmatpush1.msra.mxu0 %v383
    %491 = vmatprep.subr.mxu0 %v388
    %492 = vmatpush1.msra.mxu0 %v387
    %493 = vmatprep.subr.mxu0 %v392
    %494 = vmatpush1.msra.mxu0 %v391
    %495 = vmatprep.subr.mxu0 %v396
    %496 = vmatpush1.msra.mxu0 %v395
    %497 = vmatprep.subr.mxu0 %v400
    %498 = vmatpush1.msra.mxu0 %v399
    %499 = vmatprep.subr.mxu0 %v404
    %500 = vmatpush1.msra.mxu0 %v403
    %501 = vmatprep.subr.mxu0 %v408
    %502 = vmatpush1.msra.mxu0 %v407
    %503 = vmatprep.subr.mxu0 %v412
    %504 = vmatpush1.msra.mxu0 %v411
    %505 = vmatprep.subr.mxu0 %v416
    %506 = vmatpush1.msra.mxu0 %v415
    %507 = vmatprep.subr.mxu0 %v420
    %508 = vmatpush1.msra.mxu0 %v419
    %509 = vmatprep.subr.mxu0 %v424
    %510 = vmatpush1.msra.mxu0 %v423
    %511 = vmatprep.subr.mxu0 %v428
    %512 = vmatpush1.msra.mxu0 %v427
    %513 = vmatprep.subr.mxu0 %v432
    %514 = vmatpush1.msra.mxu0 %v431
    %515 = vmatprep.subr.mxu0 %v436
    %516 = vmatpush1.msra.mxu0 %v435
    %517 = vmatprep.subr.mxu0 %v440
    %518 = vmatpush1.msra.mxu0 %v439
    %519 = vmatprep.subr.mxu0 %v444
    %520 = vmatpush1.msra.mxu0 %v443
    %521 = vmatprep.subr.mxu0 %v448
    %522 = vmatpush1.msra.mxu0 %v447
    %523 = vmatprep.subr.mxu0 %v452
    %524 = vmatpush1.msra.mxu0 %v451
    %525 = vmatprep.subr.mxu0 %v456
    %526 = vmatpush1.msra.mxu0 %v455
    %527 = vmatprep.subr.mxu0 %v460
    %528 = vmatpush1.msra.mxu0 %v459
    %529 = vmatprep.subr.mxu0 %v464
    %530 = vmatpush1.msra.mxu0 %v463
    %531 = vmatprep.mubr.f32.mxu0 0.0
    %532 = vmatmul.mubr.f32.gmra.mrb[0].mxu0 %v338
    %v533 = vpop.f32.mrb[0].mxu0
    %v534 = vadd.f32 %v29, %v533
    %v535 = vpop.f32.mrb[0].mxu0
    %v536 = vadd.f32 %v33, %v535
    %537 = vdwg.mxu0
    %538 = vmatprep.subr.mxu0 %v342
    %539 = vmatpush1.msra.mxu0 %v341
    %540 = vmatprep.subr.mxu0 %v346
    %541 = vmatpush1.msra.mxu0 %v345
    %542 = vmatprep.subr.mxu0 %v350
    %543 = vmatpush1.msra.mxu0 %v349
    %544 = vmatprep.subr.mxu0 %v354
    %545 = vmatpush1.msra.mxu0 %v353
    %546 = vmatprep.subr.mxu0 %v358
    %547 = vmatpush1.msra.mxu0 %v357
    %548 = vmatprep.subr.mxu0 %v362
    %549 = vmatpush1.msra.mxu0 %v361
    %550 = vmatprep.subr.mxu0 %v366
    %551 = vmatpush1.msra.mxu0 %v365
    %552 = vmatprep.subr.mxu0 %v370
    %553 = vmatpush1.msra.mxu0 %v369
    %554 = vmatprep.subr.mxu0 %v374
    %555 = vmatpush1.msra.mxu0 %v373
    %556 = vmatprep.subr.mxu0 %v378
    %557 = vmatpush1.msra.mxu0 %v377
    %558 = vmatprep.subr.mxu0 %v382
    %559 = vmatpush1.msra.mxu0 %v381
    %560 = vmatprep.subr.mxu0 %v386
    %561 = vmatpush1.msra.mxu0 %v385
    %562 = vmatprep.subr.mxu0 %v390
    %563 = vmatpush1.msra.mxu0 %v389
    %564 = vmatprep.subr.mxu0 %v394
    %565 = vmatpush1.msra.mxu0 %v393
    %566 = vmatprep.subr.mxu0 %v398
    %567 = vmatpush1.msra.mxu0 %v397
    %568 = vmatprep.subr.mxu0 %v402
    %569 = vmatpush1.msra.mxu0 %v401
    %570 = vmatprep.subr.mxu0 %v406
    %571 = vmatpush1.msra.mxu0 %v405
    %572 = vmatprep.subr.mxu0 %v410
    %573 = vmatpush1.msra.mxu0 %v409
    %574 = vmatprep.subr.mxu0 %v414
    %575 = vmatpush1.msra.mxu0 %v413
    %576 = vmatprep.subr.mxu0 %v418
    %577 = vmatpush1.msra.mxu0 %v417
    %578 = vmatprep.subr.mxu0 %v422
    %579 = vmatpush1.msra.mxu0 %v421
    %580 = vmatprep.subr.mxu0 %v426
    %581 = vmatpush1.msra.mxu0 %v425
    %582 = vmatprep.subr.mxu0 %v430
    %583 = vmatpush1.msra.mxu0 %v429
    %584 = vmatprep.subr.mxu0 %v434
    %585 = vmatpush1.msra.mxu0 %v433
    %586 = vmatprep.subr.mxu0 %v438
    %587 = vmatpush1.msra.mxu0 %v437
    %588 = vmatprep.subr.mxu0 %v442
    %589 = vmatpush1.msra.mxu0 %v441
    %590 = vmatprep.subr.mxu0 %v446
    %591 = vmatpush1.msra.mxu0 %v445
    %592 = vmatprep.subr.mxu0 %v450
    %593 = vmatpush1.msra.mxu0 %v449
    %594 = vmatprep.subr.mxu0 %v454
    %595 = vmatpush1.msra.mxu0 %v453
    %596 = vmatprep.subr.mxu0 %v458
    %597 = vmatpush1.msra.mxu0 %v457
    %598 = vmatprep.subr.mxu0 %v462
    %599 = vmatpush1.msra.mxu0 %v461
    %600 = vmatprep.subr.mxu0 %v466
    %601 = vmatpush1.msra.mxu0 %v465
    %602 = vmatprep.mubr.f32.mxu0 0.0
    %603 = vmatmul.mubr.f32.gmra.mrb[0].mxu0 %v338
    %v604 = vpop.f32.mrb[0].mxu0
    %v605 = vadd.f32 %v37, %v604
    %v606 = vpop.f32.mrb[0].mxu0
    %v607 = vadd.f32 %v41, %v606
    %608 = vdwg.mxu0
    %vm609 = vcmp.gt.f32.partialorder %v607, 0.54930615
    %v610 = vsel %vm609, 1, 0
    %vm611 = vcmp.gt.f32.partialorder %v534, 0.0
    %v612 = vsel %vm611, 1, 0
    %v613 = vmul.u32 %v612, 65536
    %v614 = vadd.s32 %v610, %v613
    %v615 = vsel %vm285, %v614, 0
    %v616 = vand.u32 %v615, 65535
    %v617 = vshrl.u32 %v615, 16
    %v618 = vcvt.s32.f32 %v616
    %v619 = vcvt.s32.f32 %v617
    %620 = vadd.xlane.f32.xlu0 %v618
    %v621 = vpop.xlane.xlu0 %620
    %622 = vadd.xlane.f32.xlu0 %v619
    %v623 = vpop.xlane.xlu0 %622
    %v624 = vcvt.f32.s32 %v621
    %v625 = vcvt.f32.s32 %v623
    %v626 = vshll.u32 %v625, 16
    %v627 = vadd.s32 %v626, %v624
    %v628 = vrot.slane %v627, 4
    %v629 = vadd.s32 %v627, %v628
    %v630 = vrot.slane %v629, 2
    %v631 = vadd.s32 %v629, %v630
    %v632 = vrot.slane %v631, 1
    %v633 = vadd.s32 %v631, %v632
    %s634 = vtos %v633
    %s635 = sand.u32 %s634, 65535
    %s636 = sshra.s32 %s634, 16
    %v637 = vmul.f32 %v534, 0.5
    %v638 = vmul.f32 %v536, 0.5
    %v639 = vmul.f32 %v605, 0.5
    %v640 = vtanh.pop %v637
    %v641 = vtanh.pop %v638
    %v642 = vtanh.pop %v639
    %v643 = vadd.f32 %v640, 1.0
    %v644 = vadd.f32 %v641, 1.0
    %v645 = vadd.f32 %v642, 1.0
    %v646 = vmul.f32 %v643, 0.5
    %v647 = vmul.f32 %v644, 0.5
    %v648 = vmul.f32 %v645, 0.5
    %v649 = vtanh.pop %v607
    %p650 = scmp.lt.s32.totalorder %s635, 20
    %p651 = scmp.gt.s32.totalorder %s636, 20
    %p652 = pnand %p650, %p651
    %p653 = pneg %p652
    %p654 = scmp.gt.s32.totalorder %s635, 20
    %p655 = scmp.lt.s32.totalorder %s636, 20
    %p656 = pnand %p654, %p655
    %p657 = pneg %p656
    %v658 = vmul.f32 %v646, %v649
    %s659 = scalar_select %p657, 1, 0
    %v660 = vstv %s659
    %vm661 = vcmp.eq.s32.totalorder %v660, 1
    %v662 = vsel %vm661, %v649, %v658
    %s663 = scalar_select %p653, 1, 0
    %v664 = vstv %s663
    %vm665 = vcmp.eq.s32.totalorder %v664, 1
    %v666 = vsel %vm665, %v646, %v662
    %v667 = vmul.f32 %v647, 0.0
    %v668 = vadd.f32 %v667, %v666
    %v669 = vtanh.pop %v668
    %v670 = vmul.f32 %v648, %v669
    %s671 = scalar_lea.vmem %s0, 8
    %v672 = vld [vmem:[%s671] sm:$0xff]
    %673 = vmatprep.subr.mxu0 %v48
    %674 = vmatpush1.msra.mxu0 %v47
    %675 = vmatprep.subr.mxu0 %v52
    %676 = vmatpush1.msra.mxu0 %v51
    %677 = vmatprep.subr.mxu0 %v56
    %678 = vmatpush1.msra.mxu0 %v55
    %679 = vmatprep.subr.mxu0 %v60
    %680 = vmatpush1.msra.mxu0 %v59
    %681 = vmatprep.subr.mxu0 %v64
    %682 = vmatpush1.msra.mxu0 %v63
    %683 = vmatprep.subr.mxu0 %v68
    %684 = vmatpush1.msra.mxu0 %v67
    %685 = vmatprep.subr.mxu0 %v72
    %686 = vmatpush1.msra.mxu0 %v71
    %687 = vmatprep.subr.mxu0 %v76
    %688 = vmatpush1.msra.mxu0 %v75
    %689 = vmatprep.subr.mxu0 %v80
    %690 = vmatpush1.msra.mxu0 %v79
    %691 = vmatprep.subr.mxu0 %v84
    %692 = vmatpush1.msra.mxu0 %v83
    %693 = vmatprep.subr.mxu0 %v88
    %694 = vmatpush1.msra.mxu0 %v87
    %695 = vmatprep.subr.mxu0 %v92
    %696 = vmatpush1.msra.mxu0 %v91
    %697 = vmatprep.subr.mxu0 %v96
    %698 = vmatpush1.msra.mxu0 %v95
    %699 = vmatprep.subr.mxu0 %v100
    %700 = vmatpush1.msra.mxu0 %v99
    %701 = vmatprep.subr.mxu0 %v104
    %702 = vmatpush1.msra.mxu0 %v103
    %703 = vmatprep.subr.mxu0 %v108
    %704 = vmatpush1.msra.mxu0 %v107
    %705 = vmatprep.subr.mxu0 0.0
    %706 = vmatpush1.msra.mxu0 0.0
    %707 = vmatprep.subr.mxu0 0.0
    %708 = vmatpush1.msra.mxu0 0.0
    %709 = vmatprep.subr.mxu0 0.0
    %710 = vmatpush1.msra.mxu0 0.0
    %711 = vmatprep.subr.mxu0 0.0
    %712 = vmatpush1.msra.mxu0 0.0
    %713 = vmatprep.subr.mxu0 0.0
    %714 = vmatpush1.msra.mxu0 0.0
    %715 = vmatprep.subr.mxu0 0.0
    %716 = vmatpush1.msra.mxu0 0.0
    %717 = vmatprep.subr.mxu0 0.0
    %718 = vmatpush1.msra.mxu0 0.0
    %719 = vmatprep.subr.mxu0 0.0
    %720 = vmatpush1.msra.mxu0 0.0
    %721 = vmatprep.subr.mxu0 0.0
    %722 = vmatpush1.msra.mxu0 0.0
    %723 = vmatprep.subr.mxu0 0.0
    %724 = vmatpush1.msra.mxu0 0.0
    %725 = vmatprep.subr.mxu0 0.0
    %726 = vmatpush1.msra.mxu0 0.0
    %727 = vmatprep.subr.mxu0 0.0
    %728 = vmatpush1.msra.mxu0 0.0
    %729 = vmatprep.subr.mxu0 0.0
    %730 = vmatpush1.msra.mxu0 0.0
    %731 = vmatprep.subr.mxu0 0.0
    %732 = vmatpush1.msra.mxu0 0.0
    %733 = vmatprep.subr.mxu0 0.0
    %734 = vmatpush1.msra.mxu0 0.0
    %735 = vmatprep.subr.mxu0 0.0
    %736 = vmatpush1.msra.mxu0 0.0
    %737 = vmatprep.mubr.f32.mxu0 0.0
    %738 = vmatmul.mubr.f32.gmra.mrb[0].mxu0 %v338
    %v739 = vpop.f32.mrb[0].mxu0
    %v740 = vadd.f32 0.0, %v739
    %v741 = vpop.f32.mrb[0].mxu0
    %v742 = vadd.f32 0.0, %v741
    %743 = vdwg.mxu0
    %744 = vmatprep.subr.mxu0 %v50
    %745 = vmatpush1.msra.mxu0 %v49
    %746 = vmatprep.subr.mxu0 %v54
    %747 = vmatpush1.msra.mxu0 %v53
    %748 = vmatprep.subr.mxu0 %v58
    %749 = vmatpush1.msra.mxu0 %v57
    %750 = vmatprep.subr.mxu0 %v62
    %751 = vmatpush1.msra.mxu0 %v61
    %752 = vmatprep.subr.mxu0 %v66
    %753 = vmatpush1.msra.mxu0 %v65
    %754 = vmatprep.subr.mxu0 %v70
    %755 = vmatpush1.msra.mxu0 %v69
    %756 = vmatprep.subr.mxu0 %v74
    %757 = vmatpush1.msra.mxu0 %v73
    %758 = vmatprep.subr.mxu0 %v78
    %759 = vmatpush1.msra.mxu0 %v77
    %760 = vmatprep.subr.mxu0 %v82
    %761 = vmatpush1.msra.mxu0 %v81
    %762 = vmatprep.subr.mxu0 %v86
    %763 = vmatpush1.msra.mxu0 %v85
    %764 = vmatprep.subr.mxu0 %v90
    %765 = vmatpush1.msra.mxu0 %v89
    %766 = vmatprep.subr.mxu0 %v94
    %767 = vmatpush1.msra.mxu0 %v93
    %768 = vmatprep.subr.mxu0 %v98
    %769 = vmatpush1.msra.mxu0 %v97
    %770 = vmatprep.subr.mxu0 %v102
    %771 = vmatpush1.msra.mxu0 %v101
    %772 = vmatprep.subr.mxu0 %v106
    %773 = vmatpush1.msra.mxu0 %v105
    %774 = vmatprep.subr.mxu0 %v110
    %775 = vmatpush1.msra.mxu0 %v109
    %776 = vmatprep.subr.mxu0 0.0
    %777 = vmatpush1.msra.mxu0 0.0
    %778 = vmatprep.subr.mxu0 0.0
    %779 = vmatpush1.msra.mxu0 0.0
    %780 = vmatprep.subr.mxu0 0.0
    %781 = vmatpush1.msra.mxu0 0.0
    %782 = vmatprep.subr.mxu0 0.0
    %783 = vmatpush1.msra.mxu0 0.0
    %784 = vmatprep.subr.mxu0 0.0
    %785 = vmatpush1.msra.mxu0 0.0
    %786 = vmatprep.subr.mxu0 0.0
    %787 = vmatpush1.msra.mxu0 0.0
    %788 = vmatprep.subr.mxu0 0.0
    %789 = vmatpush1.msra.mxu0 0.0
    %790 = vmatprep.subr.mxu0 0.0
    %791 = vmatpush1.msra.mxu0 0.0
    %792 = vmatprep.subr.mxu0 0.0
    %793 = vmatpush1.msra.mxu0 0.0
    %794 = vmatprep.subr.mxu0 0.0
    %795 = vmatpush1.msra.mxu0 0.0
    %796 = vmatprep.subr.mxu0 0.0
    %797 = vmatpush1.msra.mxu0 0.0
    %798 = vmatprep.subr.mxu0 0.0
    %799 = vmatpush1.msra.mxu0 0.0
    %800 = vmatprep.subr.mxu0 0.0
    %801 = vmatpush1.msra.mxu0 0.0
    %802 = vmatprep.subr.mxu0 0.0
    %803 = vmatpush1.msra.mxu0 0.0
    %804 = vmatprep.subr.mxu0 0.0
    %805 = vmatpush1.msra.mxu0 0.0
    %806 = vmatprep.subr.mxu0 0.0
    %807 = vmatpush1.msra.mxu0 0.0
    %808 = vmatprep.mubr.f32.mxu0 0.0
    %809 = vmatmul.mubr.f32.gmra.mrb[0].mxu0 %v338
    %v810 = vpop.f32.mrb[0].mxu0
    %v811 = vadd.f32 0.0, %v810
    %v812 = vpop.f32.mrb[0].mxu0
    %v813 = vadd.f32 0.0, %v812
    %814 = vdwg.mxu0
    %v819 = vcombine.low %v740, %v742
    %v820 = vcombine.low %v811, %v813
    %v822 = vunpack.c.l.s4 1983009808
    %v823 = vunpack.c.0.s8 %v822
    %v824 = vlaneseq
    %v825 = vshrl.u32 %v824, 7
    %v826 = vsub.s32 %v823, %v825
    %v827 = vrot.slane %v819, %v826
    %v829 = vunpack.c.l.s4 1983009808
    %v830 = vunpack.c.0.s8 %v829
    %v831 = vlaneseq
    %v832 = vshrl.u32 %v831, 7
    %v833 = vsub.s32 %v830, %v832
    %v834 = vrot.slane %v820, %v833
    %v835 = vcombine.low %v827, %v834
    %v837 = vadd.f32 %v672, %v835
    %v839 = vrot.slane %v837, 6
    %vm841 = vcmp.gt.f32.partialorder %v839, 0.54930615
    %v842 = vsel %vm841, 1, 0
    %vm843 = vcmp.gt.f32.partialorder %v837, 0.0
    %v844 = vsel %vm843, 1, 0
    %v845 = vmul.u32 %v844, 65536
    %v846 = vadd.s32 %v842, %v845
    %v847 = vsel %vm285, %v846, 0
    %v848 = vand.u32 %v847, 65535
    %v849 = vshrl.u32 %v847, 16
    %v850 = vcvt.s32.f32 %v848
    %v851 = vcvt.s32.f32 %v849
    %852 = vadd.xlane.f32.xlu0 %v850
    %v853 = vpop.xlane.xlu0 %852
    %854 = vadd.xlane.f32.xlu0 %v851
    %v855 = vpop.xlane.xlu0 %854
    %v856 = vcvt.f32.s32 %v853
    %v857 = vcvt.f32.s32 %v855
    %v858 = vshll.u32 %v857, 16
    %v859 = vadd.s32 %v858, %v856
    %v860 = vrot.slane %v859, 4
    %v861 = vadd.s32 %v859, %v860
    %v862 = vrot.slane %v861, 2
    %v863 = vadd.s32 %v861, %v862
    %v864 = vrot.slane %v863, 1
    %v865 = vadd.s32 %v863, %v864
    %s866 = vtos %v865
    %s867 = sand.u32 %s866, 65535
    %s868 = sshra.s32 %s866, 16
    %v869 = vmul.f32 %v837, 0.5
    %v870 = vtanh.pop %v869
    %v871 = vadd.f32 %v870, 1.0
    %v872 = vmul.f32 %v871, 0.5
    %v873 = vtanh.pop %v839
    %p874 = scmp.lt.s32.totalorder %s867, 20
    %p875 = scmp.gt.s32.totalorder %s868, 20
    %p876 = pnand %p874, %p875
    %p877 = pneg %p876
    %p878 = scmp.gt.s32.totalorder %s867, 20
    %p879 = scmp.lt.s32.totalorder %s868, 20
    %p880 = pnand %p878, %p879
    %p881 = pneg %p880
    %v882 = vmul.f32 %v872, %v873
    %s883 = scalar_select %p881, 1, 0
    %v884 = vstv %s883
    %vm885 = vcmp.eq.s32.totalorder %v884, 1
    %v886 = vsel %vm885, %v873, %v882
    %s887 = scalar_select %p877, 1, 0
    %v888 = vstv %s887
    %vm889 = vcmp.eq.s32.totalorder %v888, 1
    %v890 = vsel %vm889, %v872, %v886
    %v892 = vrot.slane %v872, 2
    %v894 = vmul.f32 %v892, %v334
    %v895 = vadd.f32 %v894, %v890
    %v896 = vtanh.pop %v895
    %v897 = vrot.slane %v872, 4
    %v899 = vmul.f32 %v897, %v896
    %900 = vmatprep.subr.mxu0 %v340
    %901 = vmatpush1.msra.mxu0 %v339
    %902 = vmatprep.subr.mxu0 %v344
    %903 = vmatpush1.msra.mxu0 %v343
    %904 = vmatprep.subr.mxu0 %v348
    %905 = vmatpush1.msra.mxu0 %v347
    %906 = vmatprep.subr.mxu0 %v352
    %907 = vmatpush1.msra.mxu0 %v351
    %908 = vmatprep.subr.mxu0 %v356
    %909 = vmatpush1.msra.mxu0 %v355
    %910 = vmatprep.subr.mxu0 %v360
    %911 = vmatpush1.msra.mxu0 %v359
    %912 = vmatprep.subr.mxu0 %v364
    %913 = vmatpush1.msra.mxu0 %v363
    %914 = vmatprep.subr.mxu0 %v368
    %915 = vmatpush1.msra.mxu0 %v367
    %916 = vmatprep.subr.mxu0 %v372
    %917 = vmatpush1.msra.mxu0 %v371
    %918 = vmatprep.subr.mxu0 %v376
    %919 = vmatpush1.msra.mxu0 %v375
    %920 = vmatprep.subr.mxu0 %v380
    %921 = vmatpush1.msra.mxu0 %v379
    %922 = vmatprep.subr.mxu0 %v384
    %923 = vmatpush1.msra.mxu0 %v383
    %924 = vmatprep.subr.mxu0 %v388
    %925 = vmatpush1.msra.mxu0 %v387
    %926 = vmatprep.subr.mxu0 %v392
    %927 = vmatpush1.msra.mxu0 %v391
    %928 = vmatprep.subr.mxu0 %v396
    %929 = vmatpush1.msra.mxu0 %v395
    %930 = vmatprep.subr.mxu0 %v400
    %931 = vmatpush1.msra.mxu0 %v399
    %932 = vmatprep.subr.mxu0 %v404
    %933 = vmatpush1.msra.mxu0 %v403
    %934 = vmatprep.subr.mxu0 %v408
    %935 = vmatpush1.msra.mxu0 %v407
    %936 = vmatprep.subr.mxu0 %v412
    %937 = vmatpush1.msra.mxu0 %v411
    %938 = vmatprep.subr.mxu0 %v416
    %939 = vmatpush1.msra.mxu0 %v415
    %940 = vmatprep.subr.mxu0 %v420
    %941 = vmatpush1.msra.mxu0 %v419
    %942 = vmatprep.subr.mxu0 %v424
    %943 = vmatpush1.msra.mxu0 %v423
    %944 = vmatprep.subr.mxu0 %v428
    %945 = vmatpush1.msra.mxu0 %v427
    %946 = vmatprep.subr.mxu0 %v432
    %947 = vmatpush1.msra.mxu0 %v431
    %948 = vmatprep.subr.mxu0 %v436
    %949 = vmatpush1.msra.mxu0 %v435
    %950 = vmatprep.subr.mxu0 %v440
    %951 = vmatpush1.msra.mxu0 %v439
    %952 = vmatprep.subr.mxu0 %v444
    %953 = vmatpush1.msra.mxu0 %v443
    %954 = vmatprep.subr.mxu0 %v448
    %955 = vmatpush1.msra.mxu0 %v447
    %956 = vmatprep.subr.mxu0 %v452
    %957 = vmatpush1.msra.mxu0 %v451
    %958 = vmatprep.subr.mxu0 %v456
    %959 = vmatpush1.msra.mxu0 %v455
    %960 = vmatprep.subr.mxu0 %v460
    %961 = vmatpush1.msra.mxu0 %v459
    %962 = vmatprep.subr.mxu0 %v464
    %963 = vmatpush1.msra.mxu0 %v463
    %964 = vmatprep.mubr.f32.mxu0 %v670
    %965 = vmatmul.mubr.f32.gmra.mrb[0].mxu0 %v899
    %v966 = vpop.f32.mrb[0].mxu0
    %v967 = vadd.f32 %v29, %v966
    %v968 = vpop.f32.mrb[0].mxu0
    %v969 = vadd.f32 %v33, %v968
    %970 = vdwg.mxu0
    %971 = vmatprep.subr.mxu0 %v342
    %972 = vmatpush1.msra.mxu0 %v341
    %973 = vmatprep.subr.mxu0 %v346
    %974 = vmatpush1.msra.mxu0 %v345
    %975 = vmatprep.subr.mxu0 %v350
    %976 = vmatpush1.msra.mxu0 %v349
    %977 = vmatprep.subr.mxu0 %v354
    %978 = vmatpush1.msra.mxu0 %v353
    %979 = vmatprep.subr.mxu0 %v358
    %980 = vmatpush1.msra.mxu0 %v357
    %981 = vmatprep.subr.mxu0 %v362
    %982 = vmatpush1.msra.mxu0 %v361
    %983 = vmatprep.subr.mxu0 %v366
    %984 = vmatpush1.msra.mxu0 %v365
    %985 = vmatprep.subr.mxu0 %v370
    %986 = vmatpush1.msra.mxu0 %v369
    %987 = vmatprep.subr.mxu0 %v374
    %988 = vmatpush1.msra.mxu0 %v373
    %989 = vmatprep.subr.mxu0 %v378
    %990 = vmatpush1.msra.mxu0 %v377
    %991 = vmatprep.subr.mxu0 %v382
    %992 = vmatpush1.msra.mxu0 %v381
    %993 = vmatprep.subr.mxu0 %v386
    %994 = vmatpush1.msra.mxu0 %v385
    %995 = vmatprep.subr.mxu0 %v390
    %996 = vmatpush1.msra.mxu0 %v389
    %997 = vmatprep.subr.mxu0 %v394
    %998 = vmatpush1.msra.mxu0 %v393
    %999 = vmatprep.subr.mxu0 %v398
    %1000 = vmatpush1.msra.mxu0 %v397
    %1001 = vmatprep.subr.mxu0 %v402
    %1002 = vmatpush1.msra.mxu0 %v401
    %1003 = vmatprep.subr.mxu0 %v406
    %1004 = vmatpush1.msra.mxu0 %v405
    %1005 = vmatprep.subr.mxu0 %v410
    %1006 = vmatpush1.msra.mxu0 %v409
    %1007 = vmatprep.subr.mxu0 %v414
    %1008 = vmatpush1.msra.mxu0 %v413
    %1009 = vmatprep.subr.mxu0 %v418
    %1010 = vmatpush1.msra.mxu0 %v417
    %1011 = vmatprep.subr.mxu0 %v422
    %1012 = vmatpush1.msra.mxu0 %v421
    %1013 = vmatprep.subr.mxu0 %v426
    %1014 = vmatpush1.msra.mxu0 %v425
    %1015 = vmatprep.subr.mxu0 %v430
    %1016 = vmatpush1.msra.mxu0 %v429
    %1017 = vmatprep.subr.mxu0 %v434
    %1018 = vmatpush1.msra.mxu0 %v433
    %1019 = vmatprep.subr.mxu0 %v438
    %1020 = vmatpush1.msra.mxu0 %v437
    %1021 = vmatprep.subr.mxu0 %v442
    %1022 = vmatpush1.msra.mxu0 %v441
    %1023 = vmatprep.subr.mxu0 %v446
    %1024 = vmatpush1.msra.mxu0 %v445
    %1025 = vmatprep.subr.mxu0 %v450
    %1026 = vmatpush1.msra.mxu0 %v449
    %1027 = vmatprep.subr.mxu0 %v454
    %1028 = vmatpush1.msra.mxu0 %v453
    %1029 = vmatprep.subr.mxu0 %v458
    %1030 = vmatpush1.msra.mxu0 %v457
    %1031 = vmatprep.subr.mxu0 %v462
    %1032 = vmatpush1.msra.mxu0 %v461
    %1033 = vmatprep.subr.mxu0 %v466
    %1034 = vmatpush1.msra.mxu0 %v465
    %1035 = vmatprep.mubr.f32.mxu0 %v670
    %1036 = vmatmul.mubr.f32.gmra.mrb[0].mxu0 %v899
    %v1037 = vpop.f32.mrb[0].mxu0
    %v1038 = vadd.f32 %v37, %v1037
    %v1039 = vpop.f32.mrb[0].mxu0
    %v1040 = vadd.f32 %v41, %v1039
    %1041 = vdwg.mxu0
    %vm1042 = vcmp.gt.f32.partialorder %v1040, 0.54930615
    %v1043 = vsel %vm1042, 1, 0
    %vm1044 = vcmp.gt.f32.partialorder %v967, 0.0
    %v1045 = vsel %vm1044, 1, 0
    %v1046 = vmul.u32 %v1045, 65536
    %v1047 = vadd.s32 %v1043, %v1046
    %v1048 = vsel %vm285, %v1047, 0
    %v1049 = vand.u32 %v1048, 65535
    %v1050 = vshrl.u32 %v1048, 16
    %v1051 = vcvt.s32.f32 %v1049
    %v1052 = vcvt.s32.f32 %v1050
    %1053 = vadd.xlane.f32.xlu0 %v1051
    %v1054 = vpop.xlane.xlu0 %1053
    %1055 = vadd.xlane.f32.xlu0 %v1052
    %v1056 = vpop.xlane.xlu0 %1055
    %v1057 = vcvt.f32.s32 %v1054
    %v1058 = vcvt.f32.s32 %v1056
    %v1059 = vshll.u32 %v1058, 16
    %v1060 = vadd.s32 %v1059, %v1057
    %v1061 = vrot.slane %v1060, 4
    %v1062 = vadd.s32 %v1060, %v1061
    %v1063 = vrot.slane %v1062, 2
    %v1064 = vadd.s32 %v1062, %v1063
    %v1065 = vrot.slane %v1064, 1
    %v1066 = vadd.s32 %v1064, %v1065
    %s1067 = vtos %v1066
    %s1068 = sand.u32 %s1067, 65535
    %s1069 = sshra.s32 %s1067, 16
    %v1070 = vmul.f32 %v967, 0.5
    %v1071 = vmul.f32 %v969, 0.5
    %v1072 = vmul.f32 %v1038, 0.5
    %v1073 = vtanh.pop %v1070
    %v1074 = vtanh.pop %v1071
    %v1075 = vtanh.pop %v1072
    %v1076 = vadd.f32 %v1073, 1.0
    %v1077 = vadd.f32 %v1074, 1.0
    %v1078 = vadd.f32 %v1075, 1.0
    %v1079 = vmul.f32 %v1076, 0.5
    %v1080 = vmul.f32 %v1077, 0.5
    %v1081 = vmul.f32 %v1078, 0.5
    %v1082 = vtanh.pop %v1040
    %p1083 = scmp.lt.s32.totalorder %s1068, 20
    %p1084 = scmp.gt.s32.totalorder %s1069, 20
    %p1085 = pnand %p1083, %p1084
    %p1086 = pneg %p1085
    %p1087 = scmp.gt.s32.totalorder %s1068, 20
    %p1088 = scmp.lt.s32.totalorder %s1069, 20
    %p1089 = pnand %p1087, %p1088
    %p1090 = pneg %p1089
    %v1091 = vmul.f32 %v1079, %v1082
    %s1092 = scalar_select %p1090, 1, 0
    %v1093 = vstv %s1092
    %vm1094 = vcmp.eq.s32.totalorder %v1093, 1
    %v1095 = vsel %vm1094, %v1082, %v1091
    %s1096 = scalar_select %p1086, 1, 0
    %v1097 = vstv %s1096
    %vm1098 = vcmp.eq.s32.totalorder %v1097, 1
    %v1099 = vsel %vm1098, %v1079, %v1095
    %v1100 = vmul.f32 %v1080, %v668
    %v1101 = vadd.f32 %v1100, %v1099
    %v1102 = vtanh.pop %v1101
    %v1103 = vmul.f32 %v1081, %v1102
    %s1104 = scalar_lea.vmem %s0, 16
    %v1105 = vld [vmem:[%s1104] sm:$0xff]
    %1106 = vmatprep.subr.mxu0 %v48
    %1107 = vmatpush1.msra.mxu0 %v47
    %1108 = vmatprep.subr.mxu0 %v52
    %1109 = vmatpush1.msra.mxu0 %v51
    %1110 = vmatprep.subr.mxu0 %v56
    %1111 = vmatpush1.msra.mxu0 %v55
    %1112 = vmatprep.subr.mxu0 %v60
    %1113 = vmatpush1.msra.mxu0 %v59
    %1114 = vmatprep.subr.mxu0 %v64
    %1115 = vmatpush1.msra.mxu0 %v63
    %1116 = vmatprep.subr.mxu0 %v68
    %1117 = vmatpush1.msra.mxu0 %v67
    %1118 = vmatprep.subr.mxu0 %v72
    %1119 = vmatpush1.msra.mxu0 %v71
    %1120 = vmatprep.subr.mxu0 %v76
    %1121 = vmatpush1.msra.mxu0 %v75
    %1122 = vmatprep.subr.mxu0 %v80
    %1123 = vmatpush1.msra.mxu0 %v79
    %1124 = vmatprep.subr.mxu0 %v84
    %1125 = vmatpush1.msra.mxu0 %v83
    %1126 = vmatprep.subr.mxu0 %v88
    %1127 = vmatpush1.msra.mxu0 %v87
    %1128 = vmatprep.subr.mxu0 %v92
    %1129 = vmatpush1.msra.mxu0 %v91
    %1130 = vmatprep.subr.mxu0 %v96
    %1131 = vmatpush1.msra.mxu0 %v95
    %1132 = vmatprep.subr.mxu0 %v100
    %1133 = vmatpush1.msra.mxu0 %v99
    %1134 = vmatprep.subr.mxu0 %v104
    %1135 = vmatpush1.msra.mxu0 %v103
    %1136 = vmatprep.subr.mxu0 %v108
    %1137 = vmatpush1.msra.mxu0 %v107
    %1138 = vmatprep.subr.mxu0 0.0
    %1139 = vmatpush1.msra.mxu0 0.0
    %1140 = vmatprep.subr.mxu0 0.0
    %1141 = vmatpush1.msra.mxu0 0.0
    %1142 = vmatprep.subr.mxu0 0.0
    %1143 = vmatpush1.msra.mxu0 0.0
    %1144 = vmatprep.subr.mxu0 0.0
    %1145 = vmatpush1.msra.mxu0 0.0
    %1146 = vmatprep.subr.mxu0 0.0
    %1147 = vmatpush1.msra.mxu0 0.0
    %1148 = vmatprep.subr.mxu0 0.0
    %1149 = vmatpush1.msra.mxu0 0.0
    %1150 = vmatprep.subr.mxu0 0.0
    %1151 = vmatpush1.msra.mxu0 0.0
    %1152 = vmatprep.subr.mxu0 0.0
    %1153 = vmatpush1.msra.mxu0 0.0
    %1154 = vmatprep.subr.mxu0 0.0
    %1155 = vmatpush1.msra.mxu0 0.0
    %1156 = vmatprep.subr.mxu0 0.0
    %1157 = vmatpush1.msra.mxu0 0.0
    %1158 = vmatprep.subr.mxu0 0.0
    %1159 = vmatpush1.msra.mxu0 0.0
    %1160 = vmatprep.subr.mxu0 0.0
    %1161 = vmatpush1.msra.mxu0 0.0
    %1162 = vmatprep.subr.mxu0 0.0
    %1163 = vmatpush1.msra.mxu0 0.0
    %1164 = vmatprep.subr.mxu0 0.0
    %1165 = vmatpush1.msra.mxu0 0.0
    %1166 = vmatprep.subr.mxu0 0.0
    %1167 = vmatpush1.msra.mxu0 0.0
    %1168 = vmatprep.subr.mxu0 0.0
    %1169 = vmatpush1.msra.mxu0 0.0
    %1170 = vmatprep.mubr.f32.mxu0 0.0
    %1171 = vmatmul.mubr.f32.gmra.mrb[0].mxu0 %v899
    %v1172 = vpop.f32.mrb[0].mxu0
    %v1173 = vadd.f32 0.0, %v1172
    %v1174 = vpop.f32.mrb[0].mxu0
    %v1175 = vadd.f32 0.0, %v1174
    %1176 = vdwg.mxu0
    %1177 = vmatprep.subr.mxu0 %v50
    %1178 = vmatpush1.msra.mxu0 %v49
    %1179 = vmatprep.subr.mxu0 %v54
    %1180 = vmatpush1.msra.mxu0 %v53
    %1181 = vmatprep.subr.mxu0 %v58
    %1182 = vmatpush1.msra.mxu0 %v57
    %1183 = vmatprep.subr.mxu0 %v62
    %1184 = vmatpush1.msra.mxu0 %v61
    %1185 = vmatprep.subr.mxu0 %v66
    %1186 = vmatpush1.msra.mxu0 %v65
    %1187 = vmatprep.subr.mxu0 %v70
    %1188 = vmatpush1.msra.mxu0 %v69
    %1189 = vmatprep.subr.mxu0 %v74
    %1190 = vmatpush1.msra.mxu0 %v73
    %1191 = vmatprep.subr.mxu0 %v78
    %1192 = vmatpush1.msra.mxu0 %v77
    %1193 = vmatprep.subr.mxu0 %v82
    %1194 = vmatpush1.msra.mxu0 %v81
    %1195 = vmatprep.subr.mxu0 %v86
    %1196 = vmatpush1.msra.mxu0 %v85
    %1197 = vmatprep.subr.mxu0 %v90
    %1198 = vmatpush1.msra.mxu0 %v89
    %1199 = vmatprep.subr.mxu0 %v94
    %1200 = vmatpush1.msra.mxu0 %v93
    %1201 = vmatprep.subr.mxu0 %v98
    %1202 = vmatpush1.msra.mxu0 %v97
    %1203 = vmatprep.subr.mxu0 %v102
    %1204 = vmatpush1.msra.mxu0 %v101
    %1205 = vmatprep.subr.mxu0 %v106
    %1206 = vmatpush1.msra.mxu0 %v105
    %1207 = vmatprep.subr.mxu0 %v110
    %1208 = vmatpush1.msra.mxu0 %v109
    %1209 = vmatprep.subr.mxu0 0.0
    %1210 = vmatpush1.msra.mxu0 0.0
    %1211 = vmatprep.subr.mxu0 0.0
    %1212 = vmatpush1.msra.mxu0 0.0
    %1213 = vmatprep.subr.mxu0 0.0
    %1214 = vmatpush1.msra.mxu0 0.0
    %1215 = vmatprep.subr.mxu0 0.0
    %1216 = vmatpush1.msra.mxu0 0.0
    %1217 = vmatprep.subr.mxu0 0.0
    %1218 = vmatpush1.msra.mxu0 0.0
    %1219 = vmatprep.subr.mxu0 0.0
    %1220 = vmatpush1.msra.mxu0 0.0
    %1221 = vmatprep.subr.mxu0 0.0
    %1222 = vmatpush1.msra.mxu0 0.0
    %1223 = vmatprep.subr.mxu0 0.0
    %1224 = vmatpush1.msra.mxu0 0.0
    %1225 = vmatprep.subr.mxu0 0.0
    %1226 = vmatpush1.msra.mxu0 0.0
    %1227 = vmatprep.subr.mxu0 0.0
    %1228 = vmatpush1.msra.mxu0 0.0
    %1229 = vmatprep.subr.mxu0 0.0
    %1230 = vmatpush1.msra.mxu0 0.0
    %1231 = vmatprep.subr.mxu0 0.0
    %1232 = vmatpush1.msra.mxu0 0.0
    %1233 = vmatprep.subr.mxu0 0.0
    %1234 = vmatpush1.msra.mxu0 0.0
    %1235 = vmatprep.subr.mxu0 0.0
    %1236 = vmatpush1.msra.mxu0 0.0
    %1237 = vmatprep.subr.mxu0 0.0
    %1238 = vmatpush1.msra.mxu0 0.0
    %1239 = vmatprep.subr.mxu0 0.0
    %1240 = vmatpush1.msra.mxu0 0.0
    %1241 = vmatprep.mubr.f32.mxu0 0.0
    %1242 = vmatmul.mubr.f32.gmra.mrb[0].mxu0 %v899
    %v1243 = vpop.f32.mrb[0].mxu0
    %v1244 = vadd.f32 0.0, %v1243
    %v1245 = vpop.f32.mrb[0].mxu0
    %v1246 = vadd.f32 0.0, %v1245
    %1247 = vdwg.mxu0
    %v1252 = vcombine.low %v1173, %v1175
    %v1253 = vcombine.low %v1244, %v1246
    %v1255 = vunpack.c.l.s4 1983009808
    %v1256 = vunpack.c.0.s8 %v1255
    %v1257 = vlaneseq
    %v1258 = vshrl.u32 %v1257, 7
    %v1259 = vsub.s32 %v1256, %v1258
    %v1260 = vrot.slane %v1252, %v1259
    %v1262 = vunpack.c.l.s4 1983009808
    %v1263 = vunpack.c.0.s8 %v1262
    %v1264 = vlaneseq
    %v1265 = vshrl.u32 %v1264, 7
    %v1266 = vsub.s32 %v1263, %v1265
    %v1267 = vrot.slane %v1253, %v1266
    %v1268 = vcombine.low %v1260, %v1267
    %v1270 = vadd.f32 %v1105, %v1268
    %v1272 = vrot.slane %v1270, 6
    %vm1274 = vcmp.gt.f32.partialorder %v1272, 0.54930615
    %v1275 = vsel %vm1274, 1, 0
    %vm1276 = vcmp.gt.f32.partialorder %v1270, 0.0
    %v1277 = vsel %vm1276, 1, 0
    %v1278 = vmul.u32 %v1277, 65536
    %v1279 = vadd.s32 %v1275, %v1278
    %v1280 = vsel %vm285, %v1279, 0
    %v1281 = vand.u32 %v1280, 65535
    %v1282 = vshrl.u32 %v1280, 16
    %v1283 = vcvt.s32.f32 %v1281
    %v1284 = vcvt.s32.f32 %v1282
    %1285 = vadd.xlane.f32.xlu0 %v1283
    %v1286 = vpop.xlane.xlu0 %1285
    %1287 = vadd.xlane.f32.xlu0 %v1284
    %v1288 = vpop.xlane.xlu0 %1287
    %v1289 = vcvt.f32.s32 %v1286
    %v1290 = vcvt.f32.s32 %v1288
    %v1291 = vshll.u32 %v1290, 16
    %v1292 = vadd.s32 %v1291, %v1289
    %v1293 = vrot.slane %v1292, 4
    %v1294 = vadd.s32 %v1292, %v1293
    %v1295 = vrot.slane %v1294, 2
    %v1296 = vadd.s32 %v1294, %v1295
    %v1297 = vrot.slane %v1296, 1
    %v1298 = vadd.s32 %v1296, %v1297
    %s1299 = vtos %v1298
    %s1300 = sand.u32 %s1299, 65535
    %s1301 = sshra.s32 %s1299, 16
    %v1302 = vmul.f32 %v1270, 0.5
    %v1303 = vtanh.pop %v1302
    %v1304 = vadd.f32 %v1303, 1.0
    %v1305 = vmul.f32 %v1304, 0.5
    %v1306 = vtanh.pop %v1272
    %p1307 = scmp.lt.s32.totalorder %s1300, 20
    %p1308 = scmp.gt.s32.totalorder %s1301, 20
    %p1309 = pnand %p1307, %p1308
    %p1310 = pneg %p1309
    %p1311 = scmp.gt.s32.totalorder %s1300, 20
    %p1312 = scmp.lt.s32.totalorder %s1301, 20
    %p1313 = pnand %p1311, %p1312
    %p1314 = pneg %p1313
    %v1315 = vmul.f32 %v1305, %v1306
    %s1316 = scalar_select %p1314, 1, 0
    %v1317 = vstv %s1316
    %vm1318 = vcmp.eq.s32.totalorder %v1317, 1
    %v1319 = vsel %vm1318, %v1306, %v1315
    %s1320 = scalar_select %p1310, 1, 0
    %v1321 = vstv %s1320
    %vm1322 = vcmp.eq.s32.totalorder %v1321, 1
    %v1323 = vsel %vm1322, %v1305, %v1319
    %v1325 = vrot.slane %v1305, 2
    %v1327 = vmul.f32 %v1325, %v895
    %v1328 = vadd.f32 %v1327, %v1323
    %v1329 = vtanh.pop %v1328
    %v1330 = vrot.slane %v1305, 4
    %v1332 = vmul.f32 %v1330, %v1329
    %1333 = vmatprep.subr.mxu0 %v340
    %1334 = vmatpush1.msra.mxu0 %v339
    %1335 = vmatprep.subr.mxu0 %v344
    %1336 = vmatpush1.msra.mxu0 %v343
    %1337 = vmatprep.subr.mxu0 %v348
    %1338 = vmatpush1.msra.mxu0 %v347
    %1339 = vmatprep.subr.mxu0 %v352
    %1340 = vmatpush1.msra.mxu0 %v351
    %1341 = vmatprep.subr.mxu0 %v356
    %1342 = vmatpush1.msra.mxu0 %v355
    %1343 = vmatprep.subr.mxu0 %v360
    %1344 = vmatpush1.msra.mxu0 %v359
    %1345 = vmatprep.subr.mxu0 %v364
    %1346 = vmatpush1.msra.mxu0 %v363
    %1347 = vmatprep.subr.mxu0 %v368
    %1348 = vmatpush1.msra.mxu0 %v367
    %1349 = vmatprep.subr.mxu0 %v372
    %1350 = vmatpush1.msra.mxu0 %v371
    %1351 = vmatprep.subr.mxu0 %v376
    %1352 = vmatpush1.msra.mxu0 %v375
    %1353 = vmatprep.subr.mxu0 %v380
    %1354 = vmatpush1.msra.mxu0 %v379
    %1355 = vmatprep.subr.mxu0 %v384
    %1356 = vmatpush1.msra.mxu0 %v383
    %1357 = vmatprep.subr.mxu0 %v388
    %1358 = vmatpush1.msra.mxu0 %v387
    %1359 = vmatprep.subr.mxu0 %v392
    %1360 = vmatpush1.msra.mxu0 %v391
    %1361 = vmatprep.subr.mxu0 %v396
    %1362 = vmatpush1.msra.mxu0 %v395
    %1363 = vmatprep.subr.mxu0 %v400
    %1364 = vmatpush1.msra.mxu0 %v399
    %1365 = vmatprep.subr.mxu0 %v404
    %1366 = vmatpush1.msra.mxu0 %v403
    %1367 = vmatprep.subr.mxu0 %v408
    %1368 = vmatpush1.msra.mxu0 %v407
    %1369 = vmatprep.subr.mxu0 %v412
    %1370 = vmatpush1.msra.mxu0 %v411
    %1371 = vmatprep.subr.mxu0 %v416
    %1372 = vmatpush1.msra.mxu0 %v415
    %1373 = vmatprep.subr.mxu0 %v420
    %1374 = vmatpush1.msra.mxu0 %v419
    %1375 = vmatprep.subr.mxu0 %v424
    %1376 = vmatpush1.msra.mxu0 %v423
    %1377 = vmatprep.subr.mxu0 %v428
    %1378 = vmatpush1.msra.mxu0 %v427
    %1379 = vmatprep.subr.mxu0 %v432
    %1380 = vmatpush1.msra.mxu0 %v431
    %1381 = vmatprep.subr.mxu0 %v436
    %1382 = vmatpush1.msra.mxu0 %v435
    %1383 = vmatprep.subr.mxu0 %v440
    %1384 = vmatpush1.msra.mxu0 %v439
    %1385 = vmatprep.subr.mxu0 %v444
    %1386 = vmatpush1.msra.mxu0 %v443
    %1387 = vmatprep.subr.mxu0 %v448
    %1388 = vmatpush1.msra.mxu0 %v447
    %1389 = vmatprep.subr.mxu0 %v452
    %1390 = vmatpush1.msra.mxu0 %v451
    %1391 = vmatprep.subr.mxu0 %v456
    %1392 = vmatpush1.msra.mxu0 %v455
    %1393 = vmatprep.subr.mxu0 %v460
    %1394 = vmatpush1.msra.mxu0 %v459
    %1395 = vmatprep.subr.mxu0 %v464
    %1396 = vmatpush1.msra.mxu0 %v463
    %1397 = vmatprep.mubr.f32.mxu0 %v1103
    %1398 = vmatmul.mubr.f32.gmra.mrb[0].mxu0 %v1332
    %v1399 = vpop.f32.mrb[0].mxu0
    %v1400 = vadd.f32 %v29, %v1399
    %v1401 = vpop.f32.mrb[0].mxu0
    %v1402 = vadd.f32 %v33, %v1401
    %1403 = vdwg.mxu0
    %1404 = vmatprep.subr.mxu0 %v342
    %1405 = vmatpush1.msra.mxu0 %v341
    %1406 = vmatprep.subr.mxu0 %v346
    %1407 = vmatpush1.msra.mxu0 %v345
    %1408 = vmatprep.subr.mxu0 %v350
    %1409 = vmatpush1.msra.mxu0 %v349
    %1410 = vmatprep.subr.mxu0 %v354
    %1411 = vmatpush1.msra.mxu0 %v353
    %1412 = vmatprep.subr.mxu0 %v358
    %1413 = vmatpush1.msra.mxu0 %v357
    %1414 = vmatprep.subr.mxu0 %v362
    %1415 = vmatpush1.msra.mxu0 %v361
    %1416 = vmatprep.subr.mxu0 %v366
    %1417 = vmatpush1.msra.mxu0 %v365
    %1418 = vmatprep.subr.mxu0 %v370
    %1419 = vmatpush1.msra.mxu0 %v369
    %1420 = vmatprep.subr.mxu0 %v374
    %1421 = vmatpush1.msra.mxu0 %v373
    %1422 = vmatprep.subr.mxu0 %v378
    %1423 = vmatpush1.msra.mxu0 %v377
    %1424 = vmatprep.subr.mxu0 %v382
    %1425 = vmatpush1.msra.mxu0 %v381
    %1426 = vmatprep.subr.mxu0 %v386
    %1427 = vmatpush1.msra.mxu0 %v385
    %1428 = vmatprep.subr.mxu0 %v390
    %1429 = vmatpush1.msra.mxu0 %v389
    %1430 = vmatprep.subr.mxu0 %v394
    %1431 = vmatpush1.msra.mxu0 %v393
    %1432 = vmatprep.subr.mxu0 %v398
    %1433 = vmatpush1.msra.mxu0 %v397
    %1434 = vmatprep.subr.mxu0 %v402
    %1435 = vmatpush1.msra.mxu0 %v401
    %1436 = vmatprep.subr.mxu0 %v406
    %1437 = vmatpush1.msra.mxu0 %v405
    %1438 = vmatprep.subr.mxu0 %v410
    %1439 = vmatpush1.msra.mxu0 %v409
    %1440 = vmatprep.subr.mxu0 %v414
    %1441 = vmatpush1.msra.mxu0 %v413
    %1442 = vmatprep.subr.mxu0 %v418
    %1443 = vmatpush1.msra.mxu0 %v417
    %1444 = vmatprep.subr.mxu0 %v422
    %1445 = vmatpush1.msra.mxu0 %v421
    %1446 = vmatprep.subr.mxu0 %v426
    %1447 = vmatpush1.msra.mxu0 %v425
    %1448 = vmatprep.subr.mxu0 %v430
    %1449 = vmatpush1.msra.mxu0 %v429
    %1450 = vmatprep.subr.mxu0 %v434
    %1451 = vmatpush1.msra.mxu0 %v433
    %1452 = vmatprep.subr.mxu0 %v438
    %1453 = vmatpush1.msra.mxu0 %v437
    %1454 = vmatprep.subr.mxu0 %v442
    %1455 = vmatpush1.msra.mxu0 %v441
    %1456 = vmatprep.subr.mxu0 %v446
    %1457 = vmatpush1.msra.mxu0 %v445
    %1458 = vmatprep.subr.mxu0 %v450
    %1459 = vmatpush1.msra.mxu0 %v449
    %1460 = vmatprep.subr.mxu0 %v454
    %1461 = vmatpush1.msra.mxu0 %v453
    %1462 = vmatprep.subr.mxu0 %v458
    %1463 = vmatpush1.msra.mxu0 %v457
    %1464 = vmatprep.subr.mxu0 %v462
    %1465 = vmatpush1.msra.mxu0 %v461
    %1466 = vmatprep.subr.mxu0 %v466
    %1467 = vmatpush1.msra.mxu0 %v465
    %1468 = vmatprep.mubr.f32.mxu0 %v1103
    %1469 = vmatmul.mubr.f32.gmra.mrb[0].mxu0 %v1332
    %v1470 = vpop.f32.mrb[0].mxu0
    %v1471 = vadd.f32 %v37, %v1470
    %v1472 = vpop.f32.mrb[0].mxu0
    %v1473 = vadd.f32 %v41, %v1472
    %1474 = vdwg.mxu0
    %vm1475 = vcmp.gt.f32.partialorder %v1473, 0.54930615
    %v1476 = vsel %vm1475, 1, 0
    %vm1477 = vcmp.gt.f32.partialorder %v1400, 0.0
    %v1478 = vsel %vm1477, 1, 0
    %v1479 = vmul.u32 %v1478, 65536
    %v1480 = vadd.s32 %v1476, %v1479
    %v1481 = vsel %vm285, %v1480, 0
    %v1482 = vand.u32 %v1481, 65535
    %v1483 = vshrl.u32 %v1481, 16
    %v1484 = vcvt.s32.f32 %v1482
    %v1485 = vcvt.s32.f32 %v1483
    %1486 = vadd.xlane.f32.xlu0 %v1484
    %v1487 = vpop.xlane.xlu0 %1486
    %1488 = vadd.xlane.f32.xlu0 %v1485
    %v1489 = vpop.xlane.xlu0 %1488
    %v1490 = vcvt.f32.s32 %v1487
    %v1491 = vcvt.f32.s32 %v1489
    %v1492 = vshll.u32 %v1491, 16
    %v1493 = vadd.s32 %v1492, %v1490
    %v1494 = vrot.slane %v1493, 4
    %v1495 = vadd.s32 %v1493, %v1494
    %v1496 = vrot.slane %v1495, 2
    %v1497 = vadd.s32 %v1495, %v1496
    %v1498 = vrot.slane %v1497, 1
    %v1499 = vadd.s32 %v1497, %v1498
    %s1500 = vtos %v1499
    %s1501 = sand.u32 %s1500, 65535
    %s1502 = sshra.s32 %s1500, 16
    %v1503 = vmul.f32 %v1400, 0.5
    %v1504 = vmul.f32 %v1402, 0.5
    %v1505 = vmul.f32 %v1471, 0.5
    %v1506 = vtanh.pop %v1503
    %v1507 = vtanh.pop %v1504
    %v1508 = vtanh.pop %v1505
    %v1509 = vadd.f32 %v1506, 1.0
    %v1510 = vadd.f32 %v1507, 1.0
    %v1511 = vadd.f32 %v1508, 1.0
    %v1512 = vmul.f32 %v1509, 0.5
    %v1513 = vmul.f32 %v1510, 0.5
    %v1514 = vmul.f32 %v1511, 0.5
    %v1515 = vtanh.pop %v1473
    %p1516 = scmp.lt.s32.totalorder %s1501, 20
    %p1517 = scmp.gt.s32.totalorder %s1502, 20
    %p1518 = pnand %p1516, %p1517
    %p1519 = pneg %p1518
    %p1520 = scmp.gt.s32.totalorder %s1501, 20
    %p1521 = scmp.lt.s32.totalorder %s1502, 20
    %p1522 = pnand %p1520, %p1521
    %p1523 = pneg %p1522
    %v1524 = vmul.f32 %v1512, %v1515
    %s1525 = scalar_select %p1523, 1, 0
    %v1526 = vstv %s1525
    %vm1527 = vcmp.eq.s32.totalorder %v1526, 1
    %v1528 = vsel %vm1527, %v1515, %v1524
    %s1529 = scalar_select %p1519, 1, 0
    %v1530 = vstv %s1529
    %vm1531 = vcmp.eq.s32.totalorder %v1530, 1
    %v1532 = vsel %vm1531, %v1512, %v1528
    %v1533 = vmul.f32 %v1513, %v1101
    %v1534 = vadd.f32 %v1533, %v1532
    %v1535 = vtanh.pop %v1534
    %v1536 = vmul.f32 %v1514, %v1535
    %s1537 = scalar_lea.vmem %s0, 24
    %v1538 = vld [vmem:[%s1537] sm:$0xff]
    %1539 = vmatprep.subr.mxu0 %v48
    %1540 = vmatpush1.msra.mxu0 %v47
    %1541 = vmatprep.subr.mxu0 %v52
    %1542 = vmatpush1.msra.mxu0 %v51
    %1543 = vmatprep.subr.mxu0 %v56
    %1544 = vmatpush1.msra.mxu0 %v55
    %1545 = vmatprep.subr.mxu0 %v60
    %1546 = vmatpush1.msra.mxu0 %v59
    %1547 = vmatprep.subr.mxu0 %v64
    %1548 = vmatpush1.msra.mxu0 %v63
    %1549 = vmatprep.subr.mxu0 %v68
    %1550 = vmatpush1.msra.mxu0 %v67
    %1551 = vmatprep.subr.mxu0 %v72
    %1552 = vmatpush1.msra.mxu0 %v71
    %1553 = vmatprep.subr.mxu0 %v76
    %1554 = vmatpush1.msra.mxu0 %v75
    %1555 = vmatprep.subr.mxu0 %v80
    %1556 = vmatpush1.msra.mxu0 %v79
    %1557 = vmatprep.subr.mxu0 %v84
    %1558 = vmatpush1.msra.mxu0 %v83
    %1559 = vmatprep.subr.mxu0 %v88
    %1560 = vmatpush1.msra.mxu0 %v87
    %1561 = vmatprep.subr.mxu0 %v92
    %1562 = vmatpush1.msra.mxu0 %v91
    %1563 = vmatprep.subr.mxu0 %v96
    %1564 = vmatpush1.msra.mxu0 %v95
    %1565 = vmatprep.subr.mxu0 %v100
    %1566 = vmatpush1.msra.mxu0 %v99
    %1567 = vmatprep.subr.mxu0 %v104
    %1568 = vmatpush1.msra.mxu0 %v103
    %1569 = vmatprep.subr.mxu0 %v108
    %1570 = vmatpush1.msra.mxu0 %v107
    %1571 = vmatprep.subr.mxu0 0.0
    %1572 = vmatpush1.msra.mxu0 0.0
    %1573 = vmatprep.subr.mxu0 0.0
    %1574 = vmatpush1.msra.mxu0 0.0
    %1575 = vmatprep.subr.mxu0 0.0
    %1576 = vmatpush1.msra.mxu0 0.0
    %1577 = vmatprep.subr.mxu0 0.0
    %1578 = vmatpush1.msra.mxu0 0.0
    %1579 = vmatprep.subr.mxu0 0.0
    %1580 = vmatpush1.msra.mxu0 0.0
    %1581 = vmatprep.subr.mxu0 0.0
    %1582 = vmatpush1.msra.mxu0 0.0
    %1583 = vmatprep.subr.mxu0 0.0
    %1584 = vmatpush1.msra.mxu0 0.0
    %1585 = vmatprep.subr.mxu0 0.0
    %1586 = vmatpush1.msra.mxu0 0.0
    %1587 = vmatprep.subr.mxu0 0.0
    %1588 = vmatpush1.msra.mxu0 0.0
    %1589 = vmatprep.subr.mxu0 0.0
    %1590 = vmatpush1.msra.mxu0 0.0
    %1591 = vmatprep.subr.mxu0 0.0
    %1592 = vmatpush1.msra.mxu0 0.0
    %1593 = vmatprep.subr.mxu0 0.0
    %1594 = vmatpush1.msra.mxu0 0.0
    %1595 = vmatprep.subr.mxu0 0.0
    %1596 = vmatpush1.msra.mxu0 0.0
    %1597 = vmatprep.subr.mxu0 0.0
    %1598 = vmatpush1.msra.mxu0 0.0
    %1599 = vmatprep.subr.mxu0 0.0
    %1600 = vmatpush1.msra.mxu0 0.0
    %1601 = vmatprep.subr.mxu0 0.0
    %1602 = vmatpush1.msra.mxu0 0.0
    %1603 = vmatprep.mubr.f32.mxu0 0.0
    %1604 = vmatmul.mubr.f32.gmra.mrb[0].mxu0 %v1332
    %v1605 = vpop.f32.mrb[0].mxu0
    %v1606 = vadd.f32 0.0, %v1605
    %v1607 = vpop.f32.mrb[0].mxu0
    %v1608 = vadd.f32 0.0, %v1607
    %1609 = vdwg.mxu0
    %1610 = vmatprep.subr.mxu0 %v50
    %1611 = vmatpush1.msra.mxu0 %v49
    %1612 = vmatprep.subr.mxu0 %v54
    %1613 = vmatpush1.msra.mxu0 %v53
    %1614 = vmatprep.subr.mxu0 %v58
    %1615 = vmatpush1.msra.mxu0 %v57
    %1616 = vmatprep.subr.mxu0 %v62
    %1617 = vmatpush1.msra.mxu0 %v61
    %1618 = vmatprep.subr.mxu0 %v66
    %1619 = vmatpush1.msra.mxu0 %v65
    %1620 = vmatprep.subr.mxu0 %v70
    %1621 = vmatpush1.msra.mxu0 %v69
    %1622 = vmatprep.subr.mxu0 %v74
    %1623 = vmatpush1.msra.mxu0 %v73
    %1624 = vmatprep.subr.mxu0 %v78
    %1625 = vmatpush1.msra.mxu0 %v77
    %1626 = vmatprep.subr.mxu0 %v82
    %1627 = vmatpush1.msra.mxu0 %v81
    %1628 = vmatprep.subr.mxu0 %v86
    %1629 = vmatpush1.msra.mxu0 %v85
    %1630 = vmatprep.subr.mxu0 %v90
    %1631 = vmatpush1.msra.mxu0 %v89
    %1632 = vmatprep.subr.mxu0 %v94
    %1633 = vmatpush1.msra.mxu0 %v93
    %1634 = vmatprep.subr.mxu0 %v98
    %1635 = vmatpush1.msra.mxu0 %v97
    %1636 = vmatprep.subr.mxu0 %v102
    %1637 = vmatpush1.msra.mxu0 %v101
    %1638 = vmatprep.subr.mxu0 %v106
    %1639 = vmatpush1.msra.mxu0 %v105
    %1640 = vmatprep.subr.mxu0 %v110
    %1641 = vmatpush1.msra.mxu0 %v109
    %1642 = vmatprep.subr.mxu0 0.0
    %1643 = vmatpush1.msra.mxu0 0.0
    %1644 = vmatprep.subr.mxu0 0.0
    %1645 = vmatpush1.msra.mxu0 0.0
    %1646 = vmatprep.subr.mxu0 0.0
    %1647 = vmatpush1.msra.mxu0 0.0
    %1648 = vmatprep.subr.mxu0 0.0
    %1649 = vmatpush1.msra.mxu0 0.0
    %1650 = vmatprep.subr.mxu0 0.0
    %1651 = vmatpush1.msra.mxu0 0.0
    %1652 = vmatprep.subr.mxu0 0.0
    %1653 = vmatpush1.msra.mxu0 0.0
    %1654 = vmatprep.subr.mxu0 0.0
    %1655 = vmatpush1.msra.mxu0 0.0
    %1656 = vmatprep.subr.mxu0 0.0
    %1657 = vmatpush1.msra.mxu0 0.0
    %1658 = vmatprep.subr.mxu0 0.0
    %1659 = vmatpush1.msra.mxu0 0.0
    %1660 = vmatprep.subr.mxu0 0.0
    %1661 = vmatpush1.msra.mxu0 0.0
    %1662 = vmatprep.subr.mxu0 0.0
    %1663 = vmatpush1.msra.mxu0 0.0
    %1664 = vmatprep.subr.mxu0 0.0
    %1665 = vmatpush1.msra.mxu0 0.0
    %1666 = vmatprep.subr.mxu0 0.0
    %1667 = vmatpush1.msra.mxu0 0.0
    %1668 = vmatprep.subr.mxu0 0.0
    %1669 = vmatpush1.msra.mxu0 0.0
    %1670 = vmatprep.subr.mxu0 0.0
    %1671 = vmatpush1.msra.mxu0 0.0
    %1672 = vmatprep.subr.mxu0 0.0
    %1673 = vmatpush1.msra.mxu0 0.0
    %1674 = vmatprep.mubr.f32.mxu0 0.0
    %1675 = vmatmul.mubr.f32.gmra.mrb[0].mxu0 %v1332
    %v1676 = vpop.f32.mrb[0].mxu0
    %v1677 = vadd.f32 0.0, %v1676
    %v1678 = vpop.f32.mrb[0].mxu0
    %v1679 = vadd.f32 0.0, %v1678
    %1680 = vdwg.mxu0
    %v1685 = vcombine.low %v1606, %v1608
    %v1686 = vcombine.low %v1677, %v1679
    %v1688 = vunpack.c.l.s4 1983009808
    %v1689 = vunpack.c.0.s8 %v1688
    %v1690 = vlaneseq
    %v1691 = vshrl.u32 %v1690, 7
    %v1692 = vsub.s32 %v1689, %v1691
    %v1693 = vrot.slane %v1685, %v1692
    %v1695 = vunpack.c.l.s4 1983009808
    %v1696 = vunpack.c.0.s8 %v1695
    %v1697 = vlaneseq
    %v1698 = vshrl.u32 %v1697, 7
    %v1699 = vsub.s32 %v1696, %v1698
    %v1700 = vrot.slane %v1686, %v1699
    %v1701 = vcombine.low %v1693, %v1700
    %v1703 = vadd.f32 %v1538, %v1701
    %v1705 = vrot.slane %v1703, 6
    %vm1707 = vcmp.gt.f32.partialorder %v1705, 0.54930615
    %v1708 = vsel %vm1707, 1, 0
    %vm1709 = vcmp.gt.f32.partialorder %v1703, 0.0
    %v1710 = vsel %vm1709, 1, 0
    %v1711 = vmul.u32 %v1710, 65536
    %v1712 = vadd.s32 %v1708, %v1711
    %v1713 = vsel %vm285, %v1712, 0
    %v1714 = vand.u32 %v1713, 65535
    %v1715 = vshrl.u32 %v1713, 16
    %v1716 = vcvt.s32.f32 %v1714
    %v1717 = vcvt.s32.f32 %v1715
    %1718 = vadd.xlane.f32.xlu0 %v1716
    %v1719 = vpop.xlane.xlu0 %1718
    %1720 = vadd.xlane.f32.xlu0 %v1717
    %v1721 = vpop.xlane.xlu0 %1720
    %v1722 = vcvt.f32.s32 %v1719
    %v1723 = vcvt.f32.s32 %v1721
    %v1724 = vshll.u32 %v1723, 16
    %v1725 = vadd.s32 %v1724, %v1722
    %v1726 = vrot.slane %v1725, 4
    %v1727 = vadd.s32 %v1725, %v1726
    %v1728 = vrot.slane %v1727, 2
    %v1729 = vadd.s32 %v1727, %v1728
    %v1730 = vrot.slane %v1729, 1
    %v1731 = vadd.s32 %v1729, %v1730
    %s1732 = vtos %v1731
    %s1733 = sand.u32 %s1732, 65535
    %s1734 = sshra.s32 %s1732, 16
    %v1735 = vmul.f32 %v1703, 0.5
    %v1736 = vtanh.pop %v1735
    %v1737 = vadd.f32 %v1736, 1.0
    %v1738 = vmul.f32 %v1737, 0.5
    %v1739 = vtanh.pop %v1705
    %p1740 = scmp.lt.s32.totalorder %s1733, 20
    %p1741 = scmp.gt.s32.totalorder %s1734, 20
    %p1742 = pnand %p1740, %p1741
    %p1743 = pneg %p1742
    %p1744 = scmp.gt.s32.totalorder %s1733, 20
    %p1745 = scmp.lt.s32.totalorder %s1734, 20
    %p1746 = pnand %p1744, %p1745
    %p1747 = pneg %p1746
    %v1748 = vmul.f32 %v1738, %v1739
    %s1749 = scalar_select %p1747, 1, 0
    %v1750 = vstv %s1749
    %vm1751 = vcmp.eq.s32.totalorder %v1750, 1
    %v1752 = vsel %vm1751, %v1739, %v1748
    %s1753 = scalar_select %p1743, 1, 0
    %v1754 = vstv %s1753
    %vm1755 = vcmp.eq.s32.totalorder %v1754, 1
    %v1756 = vsel %vm1755, %v1738, %v1752
    %v1758 = vrot.slane %v1738, 2
    %v1760 = vmul.f32 %v1758, %v1328
    %v1761 = vadd.f32 %v1760, %v1756
    %v1762 = vtanh.pop %v1761
    %v1763 = vrot.slane %v1738, 4
    %v1765 = vmul.f32 %v1763, %v1762
    %1766 = vmatprep.subr.mxu0 %v340
    %1767 = vmatpush1.msra.mxu0 %v339
    %1768 = vmatprep.subr.mxu0 %v344
    %1769 = vmatpush1.msra.mxu0 %v343
    %1770 = vmatprep.subr.mxu0 %v348
    %1771 = vmatpush1.msra.mxu0 %v347
    %1772 = vmatprep.subr.mxu0 %v352
    %1773 = vmatpush1.msra.mxu0 %v351
    %1774 = vmatprep.subr.mxu0 %v356
    %1775 = vmatpush1.msra.mxu0 %v355
    %1776 = vmatprep.subr.mxu0 %v360
    %1777 = vmatpush1.msra.mxu0 %v359
    %1778 = vmatprep.subr.mxu0 %v364
    %1779 = vmatpush1.msra.mxu0 %v363
    %1780 = vmatprep.subr.mxu0 %v368
    %1781 = vmatpush1.msra.mxu0 %v367
    %1782 = vmatprep.subr.mxu0 %v372
    %1783 = vmatpush1.msra.mxu0 %v371
    %1784 = vmatprep.subr.mxu0 %v376
    %1785 = vmatpush1.msra.mxu0 %v375
    %1786 = vmatprep.subr.mxu0 %v380
    %1787 = vmatpush1.msra.mxu0 %v379
    %1788 = vmatprep.subr.mxu0 %v384
    %1789 = vmatpush1.msra.mxu0 %v383
    %1790 = vmatprep.subr.mxu0 %v388
    %1791 = vmatpush1.msra.mxu0 %v387
    %1792 = vmatprep.subr.mxu0 %v392
    %1793 = vmatpush1.msra.mxu0 %v391
    %1794 = vmatprep.subr.mxu0 %v396
    %1795 = vmatpush1.msra.mxu0 %v395
    %1796 = vmatprep.subr.mxu0 %v400
    %1797 = vmatpush1.msra.mxu0 %v399
    %1798 = vmatprep.subr.mxu0 %v404
    %1799 = vmatpush1.msra.mxu0 %v403
    %1800 = vmatprep.subr.mxu0 %v408
    %1801 = vmatpush1.msra.mxu0 %v407
    %1802 = vmatprep.subr.mxu0 %v412
    %1803 = vmatpush1.msra.mxu0 %v411
    %1804 = vmatprep.subr.mxu0 %v416
    %1805 = vmatpush1.msra.mxu0 %v415
    %1806 = vmatprep.subr.mxu0 %v420
    %1807 = vmatpush1.msra.mxu0 %v419
    %1808 = vmatprep.subr.mxu0 %v424
    %1809 = vmatpush1.msra.mxu0 %v423
    %1810 = vmatprep.subr.mxu0 %v428
    %1811 = vmatpush1.msra.mxu0 %v427
    %1812 = vmatprep.subr.mxu0 %v432
    %1813 = vmatpush1.msra.mxu0 %v431
    %1814 = vmatprep.subr.mxu0 %v436
    %1815 = vmatpush1.msra.mxu0 %v435
    %1816 = vmatprep.subr.mxu0 %v440
    %1817 = vmatpush1.msra.mxu0 %v439
    %1818 = vmatprep.subr.mxu0 %v444
    %1819 = vmatpush1.msra.mxu0 %v443
    %1820 = vmatprep.subr.mxu0 %v448
    %1821 = vmatpush1.msra.mxu0 %v447
    %1822 = vmatprep.subr.mxu0 %v452
    %1823 = vmatpush1.msra.mxu0 %v451
    %1824 = vmatprep.subr.mxu0 %v456
    %1825 = vmatpush1.msra.mxu0 %v455
    %1826 = vmatprep.subr.mxu0 %v460
    %1827 = vmatpush1.msra.mxu0 %v459
    %1828 = vmatprep.subr.mxu0 %v464
    %1829 = vmatpush1.msra.mxu0 %v463
    %1830 = vmatprep.mubr.f32.mxu0 %v1536
    %1831 = vmatmul.mubr.f32.gmra.mrb[0].mxu0 %v1765
    %v1832 = vpop.f32.mrb[0].mxu0
    %v1833 = vadd.f32 %v29, %v1832
    %v1834 = vpop.f32.mrb[0].mxu0
    %v1835 = vadd.f32 %v33, %v1834
    %1836 = vdwg.mxu0
    %1837 = vmatprep.subr.mxu0 %v342
    %1838 = vmatpush1.msra.mxu0 %v341
    %1839 = vmatprep.subr.mxu0 %v346
    %1840 = vmatpush1.msra.mxu0 %v345
    %1841 = vmatprep.subr.mxu0 %v350
    %1842 = vmatpush1.msra.mxu0 %v349
    %1843 = vmatprep.subr.mxu0 %v354
    %1844 = vmatpush1.msra.mxu0 %v353
    %1845 = vmatprep.subr.mxu0 %v358
    %1846 = vmatpush1.msra.mxu0 %v357
    %1847 = vmatprep.subr.mxu0 %v362
    %1848 = vmatpush1.msra.mxu0 %v361
    %1849 = vmatprep.subr.mxu0 %v366
    %1850 = vmatpush1.msra.mxu0 %v365
    %1851 = vmatprep.subr.mxu0 %v370
    %1852 = vmatpush1.msra.mxu0 %v369
    %1853 = vmatprep.subr.mxu0 %v374
    %1854 = vmatpush1.msra.mxu0 %v373
    %1855 = vmatprep.subr.mxu0 %v378
    %1856 = vmatpush1.msra.mxu0 %v377
    %1857 = vmatprep.subr.mxu0 %v382
    %1858 = vmatpush1.msra.mxu0 %v381
    %1859 = vmatprep.subr.mxu0 %v386
    %1860 = vmatpush1.msra.mxu0 %v385
    %1861 = vmatprep.subr.mxu0 %v390
    %1862 = vmatpush1.msra.mxu0 %v389
    %1863 = vmatprep.subr.mxu0 %v394
    %1864 = vmatpush1.msra.mxu0 %v393
    %1865 = vmatprep.subr.mxu0 %v398
    %1866 = vmatpush1.msra.mxu0 %v397
    %1867 = vmatprep.subr.mxu0 %v402
    %1868 = vmatpush1.msra.mxu0 %v401
    %1869 = vmatprep.subr.mxu0 %v406
    %1870 = vmatpush1.msra.mxu0 %v405
    %1871 = vmatprep.subr.mxu0 %v410
    %1872 = vmatpush1.msra.mxu0 %v409
    %1873 = vmatprep.subr.mxu0 %v414
    %1874 = vmatpush1.msra.mxu0 %v413
    %1875 = vmatprep.subr.mxu0 %v418
    %1876 = vmatpush1.msra.mxu0 %v417
    %1877 = vmatprep.subr.mxu0 %v422
    %1878 = vmatpush1.msra.mxu0 %v421
    %1879 = vmatprep.subr.mxu0 %v426
    %1880 = vmatpush1.msra.mxu0 %v425
    %1881 = vmatprep.subr.mxu0 %v430
    %1882 = vmatpush1.msra.mxu0 %v429
    %1883 = vmatprep.subr.mxu0 %v434
    %1884 = vmatpush1.msra.mxu0 %v433
    %1885 = vmatprep.subr.mxu0 %v438
    %1886 = vmatpush1.msra.mxu0 %v437
    %1887 = vmatprep.subr.mxu0 %v442
    %1888 = vmatpush1.msra.mxu0 %v441
    %1889 = vmatprep.subr.mxu0 %v446
    %1890 = vmatpush1.msra.mxu0 %v445
    %1891 = vmatprep.subr.mxu0 %v450
    %1892 = vmatpush1.msra.mxu0 %v449
    %1893 = vmatprep.subr.mxu0 %v454
    %1894 = vmatpush1.msra.mxu0 %v453
    %1895 = vmatprep.subr.mxu0 %v458
    %1896 = vmatpush1.msra.mxu0 %v457
    %1897 = vmatprep.subr.mxu0 %v462
    %1898 = vmatpush1.msra.mxu0 %v461
    %1899 = vmatprep.subr.mxu0 %v466
    %1900 = vmatpush1.msra.mxu0 %v465
    %1901 = vmatprep.mubr.f32.mxu0 %v1536
    %1902 = vmatmul.mubr.f32.gmra.mrb[0].mxu0 %v1765
    %v1903 = vpop.f32.mrb[0].mxu0
    %v1904 = vadd.f32 %v37, %v1903
    %v1905 = vpop.f32.mrb[0].mxu0
    %v1906 = vadd.f32 %v41, %v1905
    %1907 = vdwg.mxu0
    %vm1908 = vcmp.gt.f32.partialorder %v1906, 0.54930615
    %v1909 = vsel %vm1908, 1, 0
    %vm1910 = vcmp.gt.f32.partialorder %v1833, 0.0
    %v1911 = vsel %vm1910, 1, 0
    %v1912 = vmul.u32 %v1911, 65536
    %v1913 = vadd.s32 %v1909, %v1912
    %v1914 = vsel %vm285, %v1913, 0
    %v1915 = vand.u32 %v1914, 65535
    %v1916 = vshrl.u32 %v1914, 16
    %v1917 = vcvt.s32.f32 %v1915
    %v1918 = vcvt.s32.f32 %v1916
    %1919 = vadd.xlane.f32.xlu0 %v1917
    %v1920 = vpop.xlane.xlu0 %1919
    %1921 = vadd.xlane.f32.xlu0 %v1918
    %v1922 = vpop.xlane.xlu0 %1921
    %v1923 = vcvt.f32.s32 %v1920
    %v1924 = vcvt.f32.s32 %v1922
    %v1925 = vshll.u32 %v1924, 16
    %v1926 = vadd.s32 %v1925, %v1923
    %v1927 = vrot.slane %v1926, 4
    %v1928 = vadd.s32 %v1926, %v1927
    %v1929 = vrot.slane %v1928, 2
    %v1930 = vadd.s32 %v1928, %v1929
    %v1931 = vrot.slane %v1930, 1
    %v1932 = vadd.s32 %v1930, %v1931
    %s1933 = vtos %v1932
    %s1934 = sand.u32 %s1933, 65535
    %s1935 = sshra.s32 %s1933, 16
    %v1936 = vmul.f32 %v1833, 0.5
    %v1937 = vmul.f32 %v1835, 0.5
    %v1938 = vmul.f32 %v1904, 0.5
    %v1939 = vtanh.pop %v1936
    %v1940 = vtanh.pop %v1937
    %v1941 = vtanh.pop %v1938
    %v1942 = vadd.f32 %v1939, 1.0
    %v1943 = vadd.f32 %v1940, 1.0
    %v1944 = vadd.f32 %v1941, 1.0
    %v1945 = vmul.f32 %v1942, 0.5
    %v1946 = vmul.f32 %v1943, 0.5
    %v1947 = vmul.f32 %v1944, 0.5
    %v1948 = vtanh.pop %v1906
    %p1949 = scmp.lt.s32.totalorder %s1934, 20
    %p1950 = scmp.gt.s32.totalorder %s1935, 20
    %p1951 = pnand %p1949, %p1950
    %p1952 = pneg %p1951
    %p1953 = scmp.gt.s32.totalorder %s1934, 20
    %p1954 = scmp.lt.s32.totalorder %s1935, 20
    %p1955 = pnand %p1953, %p1954
    %p1956 = pneg %p1955
    %v1957 = vmul.f32 %v1945, %v1948
    %s1958 = scalar_select %p1956, 1, 0
    %v1959 = vstv %s1958
    %vm1960 = vcmp.eq.s32.totalorder %v1959, 1
    %v1961 = vsel %vm1960, %v1948, %v1957
    %s1962 = scalar_select %p1952, 1, 0
    %v1963 = vstv %s1962
    %vm1964 = vcmp.eq.s32.totalorder %v1963, 1
    %v1965 = vsel %vm1964, %v1945, %v1961
    %v1966 = vmul.f32 %v1946, %v1534
    %v1967 = vadd.f32 %v1966, %v1965
    %v1968 = vtanh.pop %v1967
    %v1969 = vmul.f32 %v1947, %v1968
    %s1970 = scalar_lea.vmem %s0, 32
    %v1971 = vld [vmem:[%s1970] sm:$0xff]
    %1972 = vmatprep.subr.mxu0 %v48
    %1973 = vmatpush1.msra.mxu0 %v47
    %1974 = vmatprep.subr.mxu0 %v52
    %1975 = vmatpush1.msra.mxu0 %v51
    %1976 = vmatprep.subr.mxu0 %v56
    %1977 = vmatpush1.msra.mxu0 %v55
    %1978 = vmatprep.subr.mxu0 %v60
    %1979 = vmatpush1.msra.mxu0 %v59
    %1980 = vmatprep.subr.mxu0 %v64
    %1981 = vmatpush1.msra.mxu0 %v63
    %1982 = vmatprep.subr.mxu0 %v68
    %1983 = vmatpush1.msra.mxu0 %v67
    %1984 = vmatprep.subr.mxu0 %v72
    %1985 = vmatpush1.msra.mxu0 %v71
    %1986 = vmatprep.subr.mxu0 %v76
    %1987 = vmatpush1.msra.mxu0 %v75
    %1988 = vmatprep.subr.mxu0 %v80
    %1989 = vmatpush1.msra.mxu0 %v79
    %1990 = vmatprep.subr.mxu0 %v84
    %1991 = vmatpush1.msra.mxu0 %v83
    %1992 = vmatprep.subr.mxu0 %v88
    %1993 = vmatpush1.msra.mxu0 %v87
    %1994 = vmatprep.subr.mxu0 %v92
    %1995 = vmatpush1.msra.mxu0 %v91
    %1996 = vmatprep.subr.mxu0 %v96
    %1997 = vmatpush1.msra.mxu0 %v95
    %1998 = vmatprep.subr.mxu0 %v100
    %1999 = vmatpush1.msra.mxu0 %v99
    %2000 = vmatprep.subr.mxu0 %v104
    %2001 = vmatpush1.msra.mxu0 %v103
    %2002 = vmatprep.subr.mxu0 %v108
    %2003 = vmatpush1.msra.mxu0 %v107
    %2004 = vmatprep.subr.mxu0 0.0
    %2005 = vmatpush1.msra.mxu0 0.0
    %2006 = vmatprep.subr.mxu0 0.0
    %2007 = vmatpush1.msra.mxu0 0.0
    %2008 = vmatprep.subr.mxu0 0.0
    %2009 = vmatpush1.msra.mxu0 0.0
    %2010 = vmatprep.subr.mxu0 0.0
    %2011 = vmatpush1.msra.mxu0 0.0
    %2012 = vmatprep.subr.mxu0 0.0
    %2013 = vmatpush1.msra.mxu0 0.0
    %2014 = vmatprep.subr.mxu0 0.0
    %2015 = vmatpush1.msra.mxu0 0.0
    %2016 = vmatprep.subr.mxu0 0.0
    %2017 = vmatpush1.msra.mxu0 0.0
    %2018 = vmatprep.subr.mxu0 0.0
    %2019 = vmatpush1.msra.mxu0 0.0
    %2020 = vmatprep.subr.mxu0 0.0
    %2021 = vmatpush1.msra.mxu0 0.0
    %2022 = vmatprep.subr.mxu0 0.0
    %2023 = vmatpush1.msra.mxu0 0.0
    %2024 = vmatprep.subr.mxu0 0.0
    %2025 = vmatpush1.msra.mxu0 0.0
    %2026 = vmatprep.subr.mxu0 0.0
    %2027 = vmatpush1.msra.mxu0 0.0
    %2028 = vmatprep.subr.mxu0 0.0
    %2029 = vmatpush1.msra.mxu0 0.0
    %2030 = vmatprep.subr.mxu0 0.0
    %2031 = vmatpush1.msra.mxu0 0.0
    %2032 = vmatprep.subr.mxu0 0.0
    %2033 = vmatpush1.msra.mxu0 0.0
    %2034 = vmatprep.subr.mxu0 0.0
    %2035 = vmatpush1.msra.mxu0 0.0
    %2036 = vmatprep.mubr.f32.mxu0 0.0
    %2037 = vmatmul.mubr.f32.gmra.mrb[0].mxu0 %v1765
    %v2038 = vpop.f32.mrb[0].mxu0
    %v2039 = vadd.f32 0.0, %v2038
    %v2040 = vpop.f32.mrb[0].mxu0
    %v2041 = vadd.f32 0.0, %v2040
    %2042 = vdwg.mxu0
    %2043 = vmatprep.subr.mxu0 %v50
    %2044 = vmatpush1.msra.mxu0 %v49
    %2045 = vmatprep.subr.mxu0 %v54
    %2046 = vmatpush1.msra.mxu0 %v53
    %2047 = vmatprep.subr.mxu0 %v58
    %2048 = vmatpush1.msra.mxu0 %v57
    %2049 = vmatprep.subr.mxu0 %v62
    %2050 = vmatpush1.msra.mxu0 %v61
    %2051 = vmatprep.subr.mxu0 %v66
    %2052 = vmatpush1.msra.mxu0 %v65
    %2053 = vmatprep.subr.mxu0 %v70
    %2054 = vmatpush1.msra.mxu0 %v69
    %2055 = vmatprep.subr.mxu0 %v74
    %2056 = vmatpush1.msra.mxu0 %v73
    %2057 = vmatprep.subr.mxu0 %v78
    %2058 = vmatpush1.msra.mxu0 %v77
    %2059 = vmatprep.subr.mxu0 %v82
    %2060 = vmatpush1.msra.mxu0 %v81
    %2061 = vmatprep.subr.mxu0 %v86
    %2062 = vmatpush1.msra.mxu0 %v85
    %2063 = vmatprep.subr.mxu0 %v90
    %2064 = vmatpush1.msra.mxu0 %v89
    %2065 = vmatprep.subr.mxu0 %v94
    %2066 = vmatpush1.msra.mxu0 %v93
    %2067 = vmatprep.subr.mxu0 %v98
    %2068 = vmatpush1.msra.mxu0 %v97
    %2069 = vmatprep.subr.mxu0 %v102
    %2070 = vmatpush1.msra.mxu0 %v101
    %2071 = vmatprep.subr.mxu0 %v106
    %2072 = vmatpush1.msra.mxu0 %v105
    %2073 = vmatprep.subr.mxu0 %v110
    %2074 = vmatpush1.msra.mxu0 %v109
    %2075 = vmatprep.subr.mxu0 0.0
    %2076 = vmatpush1.msra.mxu0 0.0
    %2077 = vmatprep.subr.mxu0 0.0
    %2078 = vmatpush1.msra.mxu0 0.0
    %2079 = vmatprep.subr.mxu0 0.0
    %2080 = vmatpush1.msra.mxu0 0.0
    %2081 = vmatprep.subr.mxu0 0.0
    %2082 = vmatpush1.msra.mxu0 0.0
    %2083 = vmatprep.subr.mxu0 0.0
    %2084 = vmatpush1.msra.mxu0 0.0
    %2085 = vmatprep.subr.mxu0 0.0
    %2086 = vmatpush1.msra.mxu0 0.0
    %2087 = vmatprep.subr.mxu0 0.0
    %2088 = vmatpush1.msra.mxu0 0.0
    %2089 = vmatprep.subr.mxu0 0.0
    %2090 = vmatpush1.msra.mxu0 0.0
    %2091 = vmatprep.subr.mxu0 0.0
    %2092 = vmatpush1.msra.mxu0 0.0
    %2093 = vmatprep.subr.mxu0 0.0
    %2094 = vmatpush1.msra.mxu0 0.0
    %2095 = vmatprep.subr.mxu0 0.0
    %2096 = vmatpush1.msra.mxu0 0.0
    %2097 = vmatprep.subr.mxu0 0.0
    %2098 = vmatpush1.msra.mxu0 0.0
    %2099 = vmatprep.subr.mxu0 0.0
    %2100 = vmatpush1.msra.mxu0 0.0
    %2101 = vmatprep.subr.mxu0 0.0
    %2102 = vmatpush1.msra.mxu0 0.0
    %2103 = vmatprep.subr.mxu0 0.0
    %2104 = vmatpush1.msra.mxu0 0.0
    %2105 = vmatprep.subr.mxu0 0.0
    %2106 = vmatpush1.msra.mxu0 0.0
    %2107 = vmatprep.mubr.f32.mxu0 0.0
    %2108 = vmatmul.mubr.f32.gmra.mrb[0].mxu0 %v1765
    %v2109 = vpop.f32.mrb[0].mxu0
    %v2110 = vadd.f32 0.0, %v2109
    %v2111 = vpop.f32.mrb[0].mxu0
    %v2112 = vadd.f32 0.0, %v2111
    %2113 = vdwg.mxu0
    %v2118 = vcombine.low %v2039, %v2041
    %v2119 = vcombine.low %v2110, %v2112
    %v2121 = vunpack.c.l.s4 1983009808
    %v2122 = vunpack.c.0.s8 %v2121
    %v2123 = vlaneseq
    %v2124 = vshrl.u32 %v2123, 7
    %v2125 = vsub.s32 %v2122, %v2124
    %v2126 = vrot.slane %v2118, %v2125
    %v2128 = vunpack.c.l.s4 1983009808
    %v2129 = vunpack.c.0.s8 %v2128
    %v2130 = vlaneseq
    %v2131 = vshrl.u32 %v2130, 7
    %v2132 = vsub.s32 %v2129, %v2131
    %v2133 = vrot.slane %v2119, %v2132
    %v2134 = vcombine.low %v2126, %v2133
    %v2136 = vadd.f32 %v1971, %v2134
    %v2138 = vrot.slane %v2136, 6
    %vm2140 = vcmp.gt.f32.partialorder %v2138, 0.54930615
    %v2141 = vsel %vm2140, 1, 0
    %vm2142 = vcmp.gt.f32.partialorder %v2136, 0.0
    %v2143 = vsel %vm2142, 1, 0
    %v2144 = vmul.u32 %v2143, 65536
    %v2145 = vadd.s32 %v2141, %v2144
    %v2146 = vsel %vm285, %v2145, 0
    %v2147 = vand.u32 %v2146, 65535
    %v2148 = vshrl.u32 %v2146, 16
    %v2149 = vcvt.s32.f32 %v2147
    %v2150 = vcvt.s32.f32 %v2148
    %2151 = vadd.xlane.f32.xlu0 %v2149
    %v2152 = vpop.xlane.xlu0 %2151
    %2153 = vadd.xlane.f32.xlu0 %v2150
    %v2154 = vpop.xlane.xlu0 %2153
    %v2155 = vcvt.f32.s32 %v2152
    %v2156 = vcvt.f32.s32 %v2154
    %v2157 = vshll.u32 %v2156, 16
    %v2158 = vadd.s32 %v2157, %v2155
    %v2159 = vrot.slane %v2158, 4
    %v2160 = vadd.s32 %v2158, %v2159
    %v2161 = vrot.slane %v2160, 2
    %v2162 = vadd.s32 %v2160, %v2161
    %v2163 = vrot.slane %v2162, 1
    %v2164 = vadd.s32 %v2162, %v2163
    %s2165 = vtos %v2164
    %s2166 = sand.u32 %s2165, 65535
    %s2167 = sshra.s32 %s2165, 16
    %v2168 = vmul.f32 %v2136, 0.5
    %v2169 = vtanh.pop %v2168
    %v2170 = vadd.f32 %v2169, 1.0
    %v2171 = vmul.f32 %v2170, 0.5
    %v2172 = vtanh.pop %v2138
    %p2173 = scmp.lt.s32.totalorder %s2166, 20
    %p2174 = scmp.gt.s32.totalorder %s2167, 20
    %p2175 = pnand %p2173, %p2174
    %p2176 = pneg %p2175
    %p2177 = scmp.gt.s32.totalorder %s2166, 20
    %p2178 = scmp.lt.s32.totalorder %s2167, 20
    %p2179 = pnand %p2177, %p2178
    %p2180 = pneg %p2179
    %v2181 = vmul.f32 %v2171, %v2172
    %s2182 = scalar_select %p2180, 1, 0
    %v2183 = vstv %s2182
    %vm2184 = vcmp.eq.s32.totalorder %v2183, 1
    %v2185 = vsel %vm2184, %v2172, %v2181
    %s2186 = scalar_select %p2176, 1, 0
    %v2187 = vstv %s2186
    %vm2188 = vcmp.eq.s32.totalorder %v2187, 1
    %v2189 = vsel %vm2188, %v2171, %v2185
    %v2191 = vrot.slane %v2171, 2
    %v2193 = vmul.f32 %v2191, %v1761
    %v2194 = vadd.f32 %v2193, %v2189
    %v2195 = vtanh.pop %v2194
    %v2196 = vrot.slane %v2171, 4
    %v2198 = vmul.f32 %v2196, %v2195
    %2199 = vmatprep.subr.mxu0 %v340
    %2200 = vmatpush1.msra.mxu0 %v339
    %2201 = vmatprep.subr.mxu0 %v344
    %2202 = vmatpush1.msra.mxu0 %v343
    %2203 = vmatprep.subr.mxu0 %v348
    %2204 = vmatpush1.msra.mxu0 %v347
    %2205 = vmatprep.subr.mxu0 %v352
    %2206 = vmatpush1.msra.mxu0 %v351
    %2207 = vmatprep.subr.mxu0 %v356
    %2208 = vmatpush1.msra.mxu0 %v355
    %2209 = vmatprep.subr.mxu0 %v360
    %2210 = vmatpush1.msra.mxu0 %v359
    %2211 = vmatprep.subr.mxu0 %v364
    %2212 = vmatpush1.msra.mxu0 %v363
    %2213 = vmatprep.subr.mxu0 %v368
    %2214 = vmatpush1.msra.mxu0 %v367
    %2215 = vmatprep.subr.mxu0 %v372
    %2216 = vmatpush1.msra.mxu0 %v371
    %2217 = vmatprep.subr.mxu0 %v376
    %2218 = vmatpush1.msra.mxu0 %v375
    %2219 = vmatprep.subr.mxu0 %v380
    %2220 = vmatpush1.msra.mxu0 %v379
    %2221 = vmatprep.subr.mxu0 %v384
    %2222 = vmatpush1.msra.mxu0 %v383
    %2223 = vmatprep.subr.mxu0 %v388
    %2224 = vmatpush1.msra.mxu0 %v387
    %2225 = vmatprep.subr.mxu0 %v392
    %2226 = vmatpush1.msra.mxu0 %v391
    %2227 = vmatprep.subr.mxu0 %v396
    %2228 = vmatpush1.msra.mxu0 %v395
    %2229 = vmatprep.subr.mxu0 %v400
    %2230 = vmatpush1.msra.mxu0 %v399
    %2231 = vmatprep.subr.mxu0 %v404
    %2232 = vmatpush1.msra.mxu0 %v403
    %2233 = vmatprep.subr.mxu0 %v408
    %2234 = vmatpush1.msra.mxu0 %v407
    %2235 = vmatprep.subr.mxu0 %v412
    %2236 = vmatpush1.msra.mxu0 %v411
    %2237 = vmatprep.subr.mxu0 %v416
    %2238 = vmatpush1.msra.mxu0 %v415
    %2239 = vmatprep.subr.mxu0 %v420
    %2240 = vmatpush1.msra.mxu0 %v419
    %2241 = vmatprep.subr.mxu0 %v424
    %2242 = vmatpush1.msra.mxu0 %v423
    %2243 = vmatprep.subr.mxu0 %v428
    %2244 = vmatpush1.msra.mxu0 %v427
    %2245 = vmatprep.subr.mxu0 %v432
    %2246 = vmatpush1.msra.mxu0 %v431
    %2247 = vmatprep.subr.mxu0 %v436
    %2248 = vmatpush1.msra.mxu0 %v435
    %2249 = vmatprep.subr.mxu0 %v440
    %2250 = vmatpush1.msra.mxu0 %v439
    %2251 = vmatprep.subr.mxu0 %v444
    %2252 = vmatpush1.msra.mxu0 %v443
    %2253 = vmatprep.subr.mxu0 %v448
    %2254 = vmatpush1.msra.mxu0 %v447
    %2255 = vmatprep.subr.mxu0 %v452
    %2256 = vmatpush1.msra.mxu0 %v451
    %2257 = vmatprep.subr.mxu0 %v456
    %2258 = vmatpush1.msra.mxu0 %v455
    %2259 = vmatprep.subr.mxu0 %v460
    %2260 = vmatpush1.msra.mxu0 %v459
    %2261 = vmatprep.subr.mxu0 %v464
    %2262 = vmatpush1.msra.mxu0 %v463
    %2263 = vmatprep.mubr.f32.mxu0 %v1969
    %2264 = vmatmul.mubr.f32.gmra.mrb[0].mxu0 %v2198
    %v2265 = vpop.f32.mrb[0].mxu0
    %v2266 = vadd.f32 %v29, %v2265
    %v2267 = vpop.f32.mrb[0].mxu0
    %v2268 = vadd.f32 %v33, %v2267
    %2269 = vdwg.mxu0
    %2270 = vmatprep.subr.mxu0 %v342
    %2271 = vmatpush1.msra.mxu0 %v341
    %2272 = vmatprep.subr.mxu0 %v346
    %2273 = vmatpush1.msra.mxu0 %v345
    %2274 = vmatprep.subr.mxu0 %v350
    %2275 = vmatpush1.msra.mxu0 %v349
    %2276 = vmatprep.subr.mxu0 %v354
    %2277 = vmatpush1.msra.mxu0 %v353
    %2278 = vmatprep.subr.mxu0 %v358
    %2279 = vmatpush1.msra.mxu0 %v357
    %2280 = vmatprep.subr.mxu0 %v362
    %2281 = vmatpush1.msra.mxu0 %v361
    %2282 = vmatprep.subr.mxu0 %v366
    %2283 = vmatpush1.msra.mxu0 %v365
    %2284 = vmatprep.subr.mxu0 %v370
    %2285 = vmatpush1.msra.mxu0 %v369
    %2286 = vmatprep.subr.mxu0 %v374
    %2287 = vmatpush1.msra.mxu0 %v373
    %2288 = vmatprep.subr.mxu0 %v378
    %2289 = vmatpush1.msra.mxu0 %v377
    %2290 = vmatprep.subr.mxu0 %v382
    %2291 = vmatpush1.msra.mxu0 %v381
    %2292 = vmatprep.subr.mxu0 %v386
    %2293 = vmatpush1.msra.mxu0 %v385
    %2294 = vmatprep.subr.mxu0 %v390
    %2295 = vmatpush1.msra.mxu0 %v389
    %2296 = vmatprep.subr.mxu0 %v394
    %2297 = vmatpush1.msra.mxu0 %v393
    %2298 = vmatprep.subr.mxu0 %v398
    %2299 = vmatpush1.msra.mxu0 %v397
    %2300 = vmatprep.subr.mxu0 %v402
    %2301 = vmatpush1.msra.mxu0 %v401
    %2302 = vmatprep.subr.mxu0 %v406
    %2303 = vmatpush1.msra.mxu0 %v405
    %2304 = vmatprep.subr.mxu0 %v410
    %2305 = vmatpush1.msra.mxu0 %v409
    %2306 = vmatprep.subr.mxu0 %v414
    %2307 = vmatpush1.msra.mxu0 %v413
    %2308 = vmatprep.subr.mxu0 %v418
    %2309 = vmatpush1.msra.mxu0 %v417
    %2310 = vmatprep.subr.mxu0 %v422
    %2311 = vmatpush1.msra.mxu0 %v421
    %2312 = vmatprep.subr.mxu0 %v426
    %2313 = vmatpush1.msra.mxu0 %v425
    %2314 = vmatprep.subr.mxu0 %v430
    %2315 = vmatpush1.msra.mxu0 %v429
    %2316 = vmatprep.subr.mxu0 %v434
    %2317 = vmatpush1.msra.mxu0 %v433
    %2318 = vmatprep.subr.mxu0 %v438
    %2319 = vmatpush1.msra.mxu0 %v437
    %2320 = vmatprep.subr.mxu0 %v442
    %2321 = vmatpush1.msra.mxu0 %v441
    %2322 = vmatprep.subr.mxu0 %v446
    %2323 = vmatpush1.msra.mxu0 %v445
    %2324 = vmatprep.subr.mxu0 %v450
    %2325 = vmatpush1.msra.mxu0 %v449
    %2326 = vmatprep.subr.mxu0 %v454
    %2327 = vmatpush1.msra.mxu0 %v453
    %2328 = vmatprep.subr.mxu0 %v458
    %2329 = vmatpush1.msra.mxu0 %v457
    %2330 = vmatprep.subr.mxu0 %v462
    %2331 = vmatpush1.msra.mxu0 %v461
    %2332 = vmatprep.subr.mxu0 %v466
    %2333 = vmatpush1.msra.mxu0 %v465
    %2334 = vmatprep.mubr.f32.mxu0 %v1969
    %2335 = vmatmul.mubr.f32.gmra.mrb[0].mxu0 %v2198
    %v2336 = vpop.f32.mrb[0].mxu0
    %v2337 = vadd.f32 %v37, %v2336
    %v2338 = vpop.f32.mrb[0].mxu0
    %v2339 = vadd.f32 %v41, %v2338
    %2340 = vdwg.mxu0
    %vm2341 = vcmp.gt.f32.partialorder %v2339, 0.54930615
    %v2342 = vsel %vm2341, 1, 0
    %vm2343 = vcmp.gt.f32.partialorder %v2266, 0.0
    %v2344 = vsel %vm2343, 1, 0
    %v2345 = vmul.u32 %v2344, 65536
    %v2346 = vadd.s32 %v2342, %v2345
    %v2347 = vsel %vm285, %v2346, 0
    %v2348 = vand.u32 %v2347, 65535
    %v2349 = vshrl.u32 %v2347, 16
    %v2350 = vcvt.s32.f32 %v2348
    %v2351 = vcvt.s32.f32 %v2349
    %2352 = vadd.xlane.f32.xlu0 %v2350
    %v2353 = vpop.xlane.xlu0 %2352
    %2354 = vadd.xlane.f32.xlu0 %v2351
    %v2355 = vpop.xlane.xlu0 %2354
    %v2356 = vcvt.f32.s32 %v2353
    %v2357 = vcvt.f32.s32 %v2355
    %v2358 = vshll.u32 %v2357, 16
    %v2359 = vadd.s32 %v2358, %v2356
    %v2360 = vrot.slane %v2359, 4
    %v2361 = vadd.s32 %v2359, %v2360
    %v2362 = vrot.slane %v2361, 2
    %v2363 = vadd.s32 %v2361, %v2362
    %v2364 = vrot.slane %v2363, 1
    %v2365 = vadd.s32 %v2363, %v2364
    %s2366 = vtos %v2365
    %s2367 = sand.u32 %s2366, 65535
    %s2368 = sshra.s32 %s2366, 16
    %v2369 = vmul.f32 %v2266, 0.5
    %v2370 = vmul.f32 %v2268, 0.5
    %v2371 = vmul.f32 %v2337, 0.5
    %v2372 = vtanh.pop %v2369
    %v2373 = vtanh.pop %v2370
    %v2374 = vtanh.pop %v2371
    %v2375 = vadd.f32 %v2372, 1.0
    %v2376 = vadd.f32 %v2373, 1.0
    %v2377 = vadd.f32 %v2374, 1.0
    %v2378 = vmul.f32 %v2375, 0.5
    %v2379 = vmul.f32 %v2376, 0.5
    %v2380 = vmul.f32 %v2377, 0.5
    %v2381 = vtanh.pop %v2339
    %p2382 = scmp.lt.s32.totalorder %s2367, 20
    %p2383 = scmp.gt.s32.totalorder %s2368, 20
    %p2384 = pnand %p2382, %p2383
    %p2385 = pneg %p2384
    %p2386 = scmp.gt.s32.totalorder %s2367, 20
    %p2387 = scmp.lt.s32.totalorder %s2368, 20
    %p2388 = pnand %p2386, %p2387
    %p2389 = pneg %p2388
    %v2390 = vmul.f32 %v2378, %v2381
    %s2391 = scalar_select %p2389, 1, 0
    %v2392 = vstv %s2391
    %vm2393 = vcmp.eq.s32.totalorder %v2392, 1
    %v2394 = vsel %vm2393, %v2381, %v2390
    %s2395 = scalar_select %p2385, 1, 0
    %v2396 = vstv %s2395
    %vm2397 = vcmp.eq.s32.totalorder %v2396, 1
    %v2398 = vsel %vm2397, %v2378, %v2394
    %v2399 = vmul.f32 %v2379, %v1967
    %v2400 = vadd.f32 %v2399, %v2398
    %v2401 = vtanh.pop %v2400
    %v2402 = vmul.f32 %v2380, %v2401
    %s2403 = scalar_lea.vmem %s0, 40
    %v2404 = vld [vmem:[%s2403] sm:$0xff]
    %2405 = vmatprep.subr.mxu0 %v48
    %2406 = vmatpush1.msra.mxu0 %v47
    %2407 = vmatprep.subr.mxu0 %v52
    %2408 = vmatpush1.msra.mxu0 %v51
    %2409 = vmatprep.subr.mxu0 %v56
    %2410 = vmatpush1.msra.mxu0 %v55
    %2411 = vmatprep.subr.mxu0 %v60
    %2412 = vmatpush1.msra.mxu0 %v59
    %2413 = vmatprep.subr.mxu0 %v64
    %2414 = vmatpush1.msra.mxu0 %v63
    %2415 = vmatprep.subr.mxu0 %v68
    %2416 = vmatpush1.msra.mxu0 %v67
    %2417 = vmatprep.subr.mxu0 %v72
    %2418 = vmatpush1.msra.mxu0 %v71
    %2419 = vmatprep.subr.mxu0 %v76
    %2420 = vmatpush1.msra.mxu0 %v75
    %2421 = vmatprep.subr.mxu0 %v80
    %2422 = vmatpush1.msra.mxu0 %v79
    %2423 = vmatprep.subr.mxu0 %v84
    %2424 = vmatpush1.msra.mxu0 %v83
    %2425 = vmatprep.subr.mxu0 %v88
    %2426 = vmatpush1.msra.mxu0 %v87
    %2427 = vmatprep.subr.mxu0 %v92
    %2428 = vmatpush1.msra.mxu0 %v91
    %2429 = vmatprep.subr.mxu0 %v96
    %2430 = vmatpush1.msra.mxu0 %v95
    %2431 = vmatprep.subr.mxu0 %v100
    %2432 = vmatpush1.msra.mxu0 %v99
    %2433 = vmatprep.subr.mxu0 %v104
    %2434 = vmatpush1.msra.mxu0 %v103
    %2435 = vmatprep.subr.mxu0 %v108
    %2436 = vmatpush1.msra.mxu0 %v107
    %2437 = vmatprep.subr.mxu0 0.0
    %2438 = vmatpush1.msra.mxu0 0.0
    %2439 = vmatprep.subr.mxu0 0.0
    %2440 = vmatpush1.msra.mxu0 0.0
    %2441 = vmatprep.subr.mxu0 0.0
    %2442 = vmatpush1.msra.mxu0 0.0
    %2443 = vmatprep.subr.mxu0 0.0
    %2444 = vmatpush1.msra.mxu0 0.0
    %2445 = vmatprep.subr.mxu0 0.0
    %2446 = vmatpush1.msra.mxu0 0.0
    %2447 = vmatprep.subr.mxu0 0.0
    %2448 = vmatpush1.msra.mxu0 0.0
    %2449 = vmatprep.subr.mxu0 0.0
    %2450 = vmatpush1.msra.mxu0 0.0
    %2451 = vmatprep.subr.mxu0 0.0
    %2452 = vmatpush1.msra.mxu0 0.0
    %2453 = vmatprep.subr.mxu0 0.0
    %2454 = vmatpush1.msra.mxu0 0.0
    %2455 = vmatprep.subr.mxu0 0.0
    %2456 = vmatpush1.msra.mxu0 0.0
    %2457 = vmatprep.subr.mxu0 0.0
    %2458 = vmatpush1.msra.mxu0 0.0
    %2459 = vmatprep.subr.mxu0 0.0
    %2460 = vmatpush1.msra.mxu0 0.0
    %2461 = vmatprep.subr.mxu0 0.0
    %2462 = vmatpush1.msra.mxu0 0.0
    %2463 = vmatprep.subr.mxu0 0.0
    %2464 = vmatpush1.msra.mxu0 0.0
    %2465 = vmatprep.subr.mxu0 0.0
    %2466 = vmatpush1.msra.mxu0 0.0
    %2467 = vmatprep.subr.mxu0 0.0
    %2468 = vmatpush1.msra.mxu0 0.0
    %2469 = vmatprep.mubr.f32.mxu0 0.0
    %2470 = vmatmul.mubr.f32.gmra.mrb[0].mxu0 %v2198
    %v2471 = vpop.f32.mrb[0].mxu0
    %v2472 = vadd.f32 0.0, %v2471
    %v2473 = vpop.f32.mrb[0].mxu0
    %v2474 = vadd.f32 0.0, %v2473
    %2475 = vdwg.mxu0
    %2476 = vmatprep.subr.mxu0 %v50
    %2477 = vmatpush1.msra.mxu0 %v49
    %2478 = vmatprep.subr.mxu0 %v54
    %2479 = vmatpush1.msra.mxu0 %v53
    %2480 = vmatprep.subr.mxu0 %v58
    %2481 = vmatpush1.msra.mxu0 %v57
    %2482 = vmatprep.subr.mxu0 %v62
    %2483 = vmatpush1.msra.mxu0 %v61
    %2484 = vmatprep.subr.mxu0 %v66
    %2485 = vmatpush1.msra.mxu0 %v65
    %2486 = vmatprep.subr.mxu0 %v70
    %2487 = vmatpush1.msra.mxu0 %v69
    %2488 = vmatprep.subr.mxu0 %v74
    %2489 = vmatpush1.msra.mxu0 %v73
    %2490 = vmatprep.subr.mxu0 %v78
    %2491 = vmatpush1.msra.mxu0 %v77
    %2492 = vmatprep.subr.mxu0 %v82
    %2493 = vmatpush1.msra.mxu0 %v81
    %2494 = vmatprep.subr.mxu0 %v86
    %2495 = vmatpush1.msra.mxu0 %v85
    %2496 = vmatprep.subr.mxu0 %v90
    %2497 = vmatpush1.msra.mxu0 %v89
    %2498 = vmatprep.subr.mxu0 %v94
    %2499 = vmatpush1.msra.mxu0 %v93
    %2500 = vmatprep.subr.mxu0 %v98
    %2501 = vmatpush1.msra.mxu0 %v97
    %2502 = vmatprep.subr.mxu0 %v102
    %2503 = vmatpush1.msra.mxu0 %v101
    %2504 = vmatprep.subr.mxu0 %v106
    %2505 = vmatpush1.msra.mxu0 %v105
    %2506 = vmatprep.subr.mxu0 %v110
    %2507 = vmatpush1.msra.mxu0 %v109
    %2508 = vmatprep.subr.mxu0 0.0
    %2509 = vmatpush1.msra.mxu0 0.0
    %2510 = vmatprep.subr.mxu0 0.0
    %2511 = vmatpush1.msra.mxu0 0.0
    %2512 = vmatprep.subr.mxu0 0.0
    %2513 = vmatpush1.msra.mxu0 0.0
    %2514 = vmatprep.subr.mxu0 0.0
    %2515 = vmatpush1.msra.mxu0 0.0
    %2516 = vmatprep.subr.mxu0 0.0
    %2517 = vmatpush1.msra.mxu0 0.0
    %2518 = vmatprep.subr.mxu0 0.0
    %2519 = vmatpush1.msra.mxu0 0.0
    %2520 = vmatprep.subr.mxu0 0.0
    %2521 = vmatpush1.msra.mxu0 0.0
    %2522 = vmatprep.subr.mxu0 0.0
    %2523 = vmatpush1.msra.mxu0 0.0
    %2524 = vmatprep.subr.mxu0 0.0
    %2525 = vmatpush1.msra.mxu0 0.0
    %2526 = vmatprep.subr.mxu0 0.0
    %2527 = vmatpush1.msra.mxu0 0.0
    %2528 = vmatprep.subr.mxu0 0.0
    %2529 = vmatpush1.msra.mxu0 0.0
    %2530 = vmatprep.subr.mxu0 0.0
    %2531 = vmatpush1.msra.mxu0 0.0
    %2532 = vmatprep.subr.mxu0 0.0
    %2533 = vmatpush1.msra.mxu0 0.0
    %2534 = vmatprep.subr.mxu0 0.0
    %2535 = vmatpush1.msra.mxu0 0.0
    %2536 = vmatprep.subr.mxu0 0.0
    %2537 = vmatpush1.msra.mxu0 0.0
    %2538 = vmatprep.subr.mxu0 0.0
    %2539 = vmatpush1.msra.mxu0 0.0
    %2540 = vmatprep.mubr.f32.mxu0 0.0
    %2541 = vmatmul.mubr.f32.gmra.mrb[0].mxu0 %v2198
    %v2542 = vpop.f32.mrb[0].mxu0
    %v2543 = vadd.f32 0.0, %v2542
    %v2544 = vpop.f32.mrb[0].mxu0
    %v2545 = vadd.f32 0.0, %v2544
    %2546 = vdwg.mxu0
    %v2551 = vcombine.low %v2472, %v2474
    %v2552 = vcombine.low %v2543, %v2545
    %v2554 = vunpack.c.l.s4 1983009808
    %v2555 = vunpack.c.0.s8 %v2554
    %v2556 = vlaneseq
    %v2557 = vshrl.u32 %v2556, 7
    %v2558 = vsub.s32 %v2555, %v2557
    %v2559 = vrot.slane %v2551, %v2558
    %v2561 = vunpack.c.l.s4 1983009808
    %v2562 = vunpack.c.0.s8 %v2561
    %v2563 = vlaneseq
    %v2564 = vshrl.u32 %v2563, 7
    %v2565 = vsub.s32 %v2562, %v2564
    %v2566 = vrot.slane %v2552, %v2565
    %v2567 = vcombine.low %v2559, %v2566
    %v2569 = vadd.f32 %v2404, %v2567
    %v2571 = vrot.slane %v2569, 6
    %vm2573 = vcmp.gt.f32.partialorder %v2571, 0.54930615
    %v2574 = vsel %vm2573, 1, 0
    %vm2575 = vcmp.gt.f32.partialorder %v2569, 0.0
    %v2576 = vsel %vm2575, 1, 0
    %v2577 = vmul.u32 %v2576, 65536
    %v2578 = vadd.s32 %v2574, %v2577
    %v2579 = vsel %vm285, %v2578, 0
    %v2580 = vand.u32 %v2579, 65535
    %v2581 = vshrl.u32 %v2579, 16
    %v2582 = vcvt.s32.f32 %v2580
    %v2583 = vcvt.s32.f32 %v2581
    %2584 = vadd.xlane.f32.xlu0 %v2582
    %v2585 = vpop.xlane.xlu0 %2584
    %2586 = vadd.xlane.f32.xlu0 %v2583
    %v2587 = vpop.xlane.xlu0 %2586
    %v2588 = vcvt.f32.s32 %v2585
    %v2589 = vcvt.f32.s32 %v2587
    %v2590 = vshll.u32 %v2589, 16
    %v2591 = vadd.s32 %v2590, %v2588
    %v2592 = vrot.slane %v2591, 4
    %v2593 = vadd.s32 %v2591, %v2592
    %v2594 = vrot.slane %v2593, 2
    %v2595 = vadd.s32 %v2593, %v2594
    %v2596 = vrot.slane %v2595, 1
    %v2597 = vadd.s32 %v2595, %v2596
    %s2598 = vtos %v2597
    %s2599 = sand.u32 %s2598, 65535
    %s2600 = sshra.s32 %s2598, 16
    %v2601 = vmul.f32 %v2569, 0.5
    %v2602 = vtanh.pop %v2601
    %v2603 = vadd.f32 %v2602, 1.0
    %v2604 = vmul.f32 %v2603, 0.5
    %v2605 = vtanh.pop %v2571
    %p2606 = scmp.lt.s32.totalorder %s2599, 20
    %p2607 = scmp.gt.s32.totalorder %s2600, 20
    %p2608 = pnand %p2606, %p2607
    %p2609 = pneg %p2608
    %p2610 = scmp.gt.s32.totalorder %s2599, 20
    %p2611 = scmp.lt.s32.totalorder %s2600, 20
    %p2612 = pnand %p2610, %p2611
    %p2613 = pneg %p2612
    %v2614 = vmul.f32 %v2604, %v2605
    %s2615 = scalar_select %p2613, 1, 0
    %v2616 = vstv %s2615
    %vm2617 = vcmp.eq.s32.totalorder %v2616, 1
    %v2618 = vsel %vm2617, %v2605, %v2614
    %s2619 = scalar_select %p2609, 1, 0
    %v2620 = vstv %s2619
    %vm2621 = vcmp.eq.s32.totalorder %v2620, 1
    %v2622 = vsel %vm2621, %v2604, %v2618
    %v2624 = vrot.slane %v2604, 2
    %v2626 = vmul.f32 %v2624, %v2194
    %v2627 = vadd.f32 %v2626, %v2622
    %v2628 = vtanh.pop %v2627
    %v2629 = vrot.slane %v2604, 4
    %v2631 = vmul.f32 %v2629, %v2628
    %2632 = vmatprep.subr.mxu0 %v340
    %2633 = vmatpush1.msra.mxu0 %v339
    %2634 = vmatprep.subr.mxu0 %v344
    %2635 = vmatpush1.msra.mxu0 %v343
    %2636 = vmatprep.subr.mxu0 %v348
    %2637 = vmatpush1.msra.mxu0 %v347
    %2638 = vmatprep.subr.mxu0 %v352
    %2639 = vmatpush1.msra.mxu0 %v351
    %2640 = vmatprep.subr.mxu0 %v356
    %2641 = vmatpush1.msra.mxu0 %v355
    %2642 = vmatprep.subr.mxu0 %v360
    %2643 = vmatpush1.msra.mxu0 %v359
    %2644 = vmatprep.subr.mxu0 %v364
    %2645 = vmatpush1.msra.mxu0 %v363
    %2646 = vmatprep.subr.mxu0 %v368
    %2647 = vmatpush1.msra.mxu0 %v367
    %2648 = vmatprep.subr.mxu0 %v372
    %2649 = vmatpush1.msra.mxu0 %v371
    %2650 = vmatprep.subr.mxu0 %v376
    %2651 = vmatpush1.msra.mxu0 %v375
    %2652 = vmatprep.subr.mxu0 %v380
    %2653 = vmatpush1.msra.mxu0 %v379
    %2654 = vmatprep.subr.mxu0 %v384
    %2655 = vmatpush1.msra.mxu0 %v383
    %2656 = vmatprep.subr.mxu0 %v388
    %2657 = vmatpush1.msra.mxu0 %v387
    %2658 = vmatprep.subr.mxu0 %v392
    %2659 = vmatpush1.msra.mxu0 %v391
    %2660 = vmatprep.subr.mxu0 %v396
    %2661 = vmatpush1.msra.mxu0 %v395
    %2662 = vmatprep.subr.mxu0 %v400
    %2663 = vmatpush1.msra.mxu0 %v399
    %2664 = vmatprep.subr.mxu0 %v404
    %2665 = vmatpush1.msra.mxu0 %v403
    %2666 = vmatprep.subr.mxu0 %v408
    %2667 = vmatpush1.msra.mxu0 %v407
    %2668 = vmatprep.subr.mxu0 %v412
    %2669 = vmatpush1.msra.mxu0 %v411
    %2670 = vmatprep.subr.mxu0 %v416
    %2671 = vmatpush1.msra.mxu0 %v415
    %2672 = vmatprep.subr.mxu0 %v420
    %2673 = vmatpush1.msra.mxu0 %v419
    %2674 = vmatprep.subr.mxu0 %v424
    %2675 = vmatpush1.msra.mxu0 %v423
    %2676 = vmatprep.subr.mxu0 %v428
    %2677 = vmatpush1.msra.mxu0 %v427
    %2678 = vmatprep.subr.mxu0 %v432
    %2679 = vmatpush1.msra.mxu0 %v431
    %2680 = vmatprep.subr.mxu0 %v436
    %2681 = vmatpush1.msra.mxu0 %v435
    %2682 = vmatprep.subr.mxu0 %v440
    %2683 = vmatpush1.msra.mxu0 %v439
    %2684 = vmatprep.subr.mxu0 %v444
    %2685 = vmatpush1.msra.mxu0 %v443
    %2686 = vmatprep.subr.mxu0 %v448
    %2687 = vmatpush1.msra.mxu0 %v447
    %2688 = vmatprep.subr.mxu0 %v452
    %2689 = vmatpush1.msra.mxu0 %v451
    %2690 = vmatprep.subr.mxu0 %v456
    %2691 = vmatpush1.msra.mxu0 %v455
    %2692 = vmatprep.subr.mxu0 %v460
    %2693 = vmatpush1.msra.mxu0 %v459
    %2694 = vmatprep.subr.mxu0 %v464
    %2695 = vmatpush1.msra.mxu0 %v463
    %2696 = vmatprep.mubr.f32.mxu0 %v2402
    %2697 = vmatmul.mubr.f32.gmra.mrb[0].mxu0 %v2631
    %v2698 = vpop.f32.mrb[0].mxu0
    %v2699 = vadd.f32 %v29, %v2698
    %v2700 = vpop.f32.mrb[0].mxu0
    %v2701 = vadd.f32 %v33, %v2700
    %2702 = vdwg.mxu0
    %2703 = vmatprep.subr.mxu0 %v342
    %2704 = vmatpush1.msra.mxu0 %v341
    %2705 = vmatprep.subr.mxu0 %v346
    %2706 = vmatpush1.msra.mxu0 %v345
    %2707 = vmatprep.subr.mxu0 %v350
    %2708 = vmatpush1.msra.mxu0 %v349
    %2709 = vmatprep.subr.mxu0 %v354
    %2710 = vmatpush1.msra.mxu0 %v353
    %2711 = vmatprep.subr.mxu0 %v358
    %2712 = vmatpush1.msra.mxu0 %v357
    %2713 = vmatprep.subr.mxu0 %v362
    %2714 = vmatpush1.msra.mxu0 %v361
    %2715 = vmatprep.subr.mxu0 %v366
    %2716 = vmatpush1.msra.mxu0 %v365
    %2717 = vmatprep.subr.mxu0 %v370
    %2718 = vmatpush1.msra.mxu0 %v369
    %2719 = vmatprep.subr.mxu0 %v374
    %2720 = vmatpush1.msra.mxu0 %v373
    %2721 = vmatprep.subr.mxu0 %v378
    %2722 = vmatpush1.msra.mxu0 %v377
    %2723 = vmatprep.subr.mxu0 %v382
    %2724 = vmatpush1.msra.mxu0 %v381
    %2725 = vmatprep.subr.mxu0 %v386
    %2726 = vmatpush1.msra.mxu0 %v385
    %2727 = vmatprep.subr.mxu0 %v390
    %2728 = vmatpush1.msra.mxu0 %v389
    %2729 = vmatprep.subr.mxu0 %v394
    %2730 = vmatpush1.msra.mxu0 %v393
    %2731 = vmatprep.subr.mxu0 %v398
    %2732 = vmatpush1.msra.mxu0 %v397
    %2733 = vmatprep.subr.mxu0 %v402
    %2734 = vmatpush1.msra.mxu0 %v401
    %2735 = vmatprep.subr.mxu0 %v406
    %2736 = vmatpush1.msra.mxu0 %v405
    %2737 = vmatprep.subr.mxu0 %v410
    %2738 = vmatpush1.msra.mxu0 %v409
    %2739 = vmatprep.subr.mxu0 %v414
    %2740 = vmatpush1.msra.mxu0 %v413
    %2741 = vmatprep.subr.mxu0 %v418
    %2742 = vmatpush1.msra.mxu0 %v417
    %2743 = vmatprep.subr.mxu0 %v422
    %2744 = vmatpush1.msra.mxu0 %v421
    %2745 = vmatprep.subr.mxu0 %v426
    %2746 = vmatpush1.msra.mxu0 %v425
    %2747 = vmatprep.subr.mxu0 %v430
    %2748 = vmatpush1.msra.mxu0 %v429
    %2749 = vmatprep.subr.mxu0 %v434
    %2750 = vmatpush1.msra.mxu0 %v433
    %2751 = vmatprep.subr.mxu0 %v438
    %2752 = vmatpush1.msra.mxu0 %v437
    %2753 = vmatprep.subr.mxu0 %v442
    %2754 = vmatpush1.msra.mxu0 %v441
    %2755 = vmatprep.subr.mxu0 %v446
    %2756 = vmatpush1.msra.mxu0 %v445
    %2757 = vmatprep.subr.mxu0 %v450
    %2758 = vmatpush1.msra.mxu0 %v449
    %2759 = vmatprep.subr.mxu0 %v454
    %2760 = vmatpush1.msra.mxu0 %v453
    %2761 = vmatprep.subr.mxu0 %v458
    %2762 = vmatpush1.msra.mxu0 %v457
    %2763 = vmatprep.subr.mxu0 %v462
    %2764 = vmatpush1.msra.mxu0 %v461
    %2765 = vmatprep.subr.mxu0 %v466
    %2766 = vmatpush1.msra.mxu0 %v465
    %2767 = vmatprep.mubr.f32.mxu0 %v2402
    %2768 = vmatmul.mubr.f32.gmra.mrb[0].mxu0 %v2631
    %v2769 = vpop.f32.mrb[0].mxu0
    %v2770 = vadd.f32 %v37, %v2769
    %v2771 = vpop.f32.mrb[0].mxu0
    %v2772 = vadd.f32 %v41, %v2771
    %2773 = vdwg.mxu0
    %vm2774 = vcmp.gt.f32.partialorder %v2772, 0.54930615
    %v2775 = vsel %vm2774, 1, 0
    %vm2776 = vcmp.gt.f32.partialorder %v2699, 0.0
    %v2777 = vsel %vm2776, 1, 0
    %v2778 = vmul.u32 %v2777, 65536
    %v2779 = vadd.s32 %v2775, %v2778
    %v2780 = vsel %vm285, %v2779, 0
    %v2781 = vand.u32 %v2780, 65535
    %v2782 = vshrl.u32 %v2780, 16
    %v2783 = vcvt.s32.f32 %v2781
    %v2784 = vcvt.s32.f32 %v2782
    %2785 = vadd.xlane.f32.xlu0 %v2783
    %v2786 = vpop.xlane.xlu0 %2785
    %2787 = vadd.xlane.f32.xlu0 %v2784
    %v2788 = vpop.xlane.xlu0 %2787
    %v2789 = vcvt.f32.s32 %v2786
    %v2790 = vcvt.f32.s32 %v2788
    %v2791 = vshll.u32 %v2790, 16
    %v2792 = vadd.s32 %v2791, %v2789
    %v2793 = vrot.slane %v2792, 4
    %v2794 = vadd.s32 %v2792, %v2793
    %v2795 = vrot.slane %v2794, 2
    %v2796 = vadd.s32 %v2794, %v2795
    %v2797 = vrot.slane %v2796, 1
    %v2798 = vadd.s32 %v2796, %v2797
    %s2799 = vtos %v2798
    %s2800 = sand.u32 %s2799, 65535
    %s2801 = sshra.s32 %s2799, 16
    %v2802 = vmul.f32 %v2699, 0.5
    %v2803 = vmul.f32 %v2701, 0.5
    %v2804 = vmul.f32 %v2770, 0.5
    %v2805 = vtanh.pop %v2802
    %v2806 = vtanh.pop %v2803
    %v2807 = vtanh.pop %v2804
    %v2808 = vadd.f32 %v2805, 1.0
    %v2809 = vadd.f32 %v2806, 1.0
    %v2810 = vadd.f32 %v2807, 1.0
    %v2811 = vmul.f32 %v2808, 0.5
    %v2812 = vmul.f32 %v2809, 0.5
    %v2813 = vmul.f32 %v2810, 0.5
    %v2814 = vtanh.pop %v2772
    %p2815 = scmp.lt.s32.totalorder %s2800, 20
    %p2816 = scmp.gt.s32.totalorder %s2801, 20
    %p2817 = pnand %p2815, %p2816
    %p2818 = pneg %p2817
    %p2819 = scmp.gt.s32.totalorder %s2800, 20
    %p2820 = scmp.lt.s32.totalorder %s2801, 20
    %p2821 = pnand %p2819, %p2820
    %p2822 = pneg %p2821
    %v2823 = vmul.f32 %v2811, %v2814
    %s2824 = scalar_select %p2822, 1, 0
    %v2825 = vstv %s2824
    %vm2826 = vcmp.eq.s32.totalorder %v2825, 1
    %v2827 = vsel %vm2826, %v2814, %v2823
    %s2828 = scalar_select %p2818, 1, 0
    %v2829 = vstv %s2828
    %vm2830 = vcmp.eq.s32.totalorder %v2829, 1
    %v2831 = vsel %vm2830, %v2811, %v2827
    %v2832 = vmul.f32 %v2812, %v2400
    %v2833 = vadd.f32 %v2832, %v2831
    %v2834 = vtanh.pop %v2833
    %v2835 = vmul.f32 %v2813, %v2834
    %s2836 = scalar_lea.vmem %s0, 48
    %v2837 = vld [vmem:[%s2836] sm:$0xff]
    %2838 = vmatprep.subr.mxu0 %v48
    %2839 = vmatpush1.msra.mxu0 %v47
    %2840 = vmatprep.subr.mxu0 %v52
    %2841 = vmatpush1.msra.mxu0 %v51
    %2842 = vmatprep.subr.mxu0 %v56
    %2843 = vmatpush1.msra.mxu0 %v55
    %2844 = vmatprep.subr.mxu0 %v60
    %2845 = vmatpush1.msra.mxu0 %v59
    %2846 = vmatprep.subr.mxu0 %v64
    %2847 = vmatpush1.msra.mxu0 %v63
    %2848 = vmatprep.subr.mxu0 %v68
    %2849 = vmatpush1.msra.mxu0 %v67
    %2850 = vmatprep.subr.mxu0 %v72
    %2851 = vmatpush1.msra.mxu0 %v71
    %2852 = vmatprep.subr.mxu0 %v76
    %2853 = vmatpush1.msra.mxu0 %v75
    %2854 = vmatprep.subr.mxu0 %v80
    %2855 = vmatpush1.msra.mxu0 %v79
    %2856 = vmatprep.subr.mxu0 %v84
    %2857 = vmatpush1.msra.mxu0 %v83
    %2858 = vmatprep.subr.mxu0 %v88
    %2859 = vmatpush1.msra.mxu0 %v87
    %2860 = vmatprep.subr.mxu0 %v92
    %2861 = vmatpush1.msra.mxu0 %v91
    %2862 = vmatprep.subr.mxu0 %v96
    %2863 = vmatpush1.msra.mxu0 %v95
    %2864 = vmatprep.subr.mxu0 %v100
    %2865 = vmatpush1.msra.mxu0 %v99
    %2866 = vmatprep.subr.mxu0 %v104
    %2867 = vmatpush1.msra.mxu0 %v103
    %2868 = vmatprep.subr.mxu0 %v108
    %2869 = vmatpush1.msra.mxu0 %v107
    %2870 = vmatprep.subr.mxu0 0.0
    %2871 = vmatpush1.msra.mxu0 0.0
    %2872 = vmatprep.subr.mxu0 0.0
    %2873 = vmatpush1.msra.mxu0 0.0
    %2874 = vmatprep.subr.mxu0 0.0
    %2875 = vmatpush1.msra.mxu0 0.0
    %2876 = vmatprep.subr.mxu0 0.0
    %2877 = vmatpush1.msra.mxu0 0.0
    %2878 = vmatprep.subr.mxu0 0.0
    %2879 = vmatpush1.msra.mxu0 0.0
    %2880 = vmatprep.subr.mxu0 0.0
    %2881 = vmatpush1.msra.mxu0 0.0
    %2882 = vmatprep.subr.mxu0 0.0
    %2883 = vmatpush1.msra.mxu0 0.0
    %2884 = vmatprep.subr.mxu0 0.0
    %2885 = vmatpush1.msra.mxu0 0.0
    %2886 = vmatprep.subr.mxu0 0.0
    %2887 = vmatpush1.msra.mxu0 0.0
    %2888 = vmatprep.subr.mxu0 0.0
    %2889 = vmatpush1.msra.mxu0 0.0
    %2890 = vmatprep.subr.mxu0 0.0
    %2891 = vmatpush1.msra.mxu0 0.0
    %2892 = vmatprep.subr.mxu0 0.0
    %2893 = vmatpush1.msra.mxu0 0.0
    %2894 = vmatprep.subr.mxu0 0.0
    %2895 = vmatpush1.msra.mxu0 0.0
    %2896 = vmatprep.subr.mxu0 0.0
    %2897 = vmatpush1.msra.mxu0 0.0
    %2898 = vmatprep.subr.mxu0 0.0
    %2899 = vmatpush1.msra.mxu0 0.0
    %2900 = vmatprep.subr.mxu0 0.0
    %2901 = vmatpush1.msra.mxu0 0.0
    %2902 = vmatprep.mubr.f32.mxu0 0.0
    %2903 = vmatmul.mubr.f32.gmra.mrb[0].mxu0 %v2631
    %v2904 = vpop.f32.mrb[0].mxu0
    %v2905 = vadd.f32 0.0, %v2904
    %v2906 = vpop.f32.mrb[0].mxu0
    %v2907 = vadd.f32 0.0, %v2906
    %2908 = vdwg.mxu0
    %2909 = vmatprep.subr.mxu0 %v50
    %2910 = vmatpush1.msra.mxu0 %v49
    %2911 = vmatprep.subr.mxu0 %v54
    %2912 = vmatpush1.msra.mxu0 %v53
    %2913 = vmatprep.subr.mxu0 %v58
    %2914 = vmatpush1.msra.mxu0 %v57
    %2915 = vmatprep.subr.mxu0 %v62
    %2916 = vmatpush1.msra.mxu0 %v61
    %2917 = vmatprep.subr.mxu0 %v66
    %2918 = vmatpush1.msra.mxu0 %v65
    %2919 = vmatprep.subr.mxu0 %v70
    %2920 = vmatpush1.msra.mxu0 %v69
    %2921 = vmatprep.subr.mxu0 %v74
    %2922 = vmatpush1.msra.mxu0 %v73
    %2923 = vmatprep.subr.mxu0 %v78
    %2924 = vmatpush1.msra.mxu0 %v77
    %2925 = vmatprep.subr.mxu0 %v82
    %2926 = vmatpush1.msra.mxu0 %v81
    %2927 = vmatprep.subr.mxu0 %v86
    %2928 = vmatpush1.msra.mxu0 %v85
    %2929 = vmatprep.subr.mxu0 %v90
    %2930 = vmatpush1.msra.mxu0 %v89
    %2931 = vmatprep.subr.mxu0 %v94
    %2932 = vmatpush1.msra.mxu0 %v93
    %2933 = vmatprep.subr.mxu0 %v98
    %2934 = vmatpush1.msra.mxu0 %v97
    %2935 = vmatprep.subr.mxu0 %v102
    %2936 = vmatpush1.msra.mxu0 %v101
    %2937 = vmatprep.subr.mxu0 %v106
    %2938 = vmatpush1.msra.mxu0 %v105
    %2939 = vmatprep.subr.mxu0 %v110
    %2940 = vmatpush1.msra.mxu0 %v109
    %2941 = vmatprep.subr.mxu0 0.0
    %2942 = vmatpush1.msra.mxu0 0.0
    %2943 = vmatprep.subr.mxu0 0.0
    %2944 = vmatpush1.msra.mxu0 0.0
    %2945 = vmatprep.subr.mxu0 0.0
    %2946 = vmatpush1.msra.mxu0 0.0
    %2947 = vmatprep.subr.mxu0 0.0
    %2948 = vmatpush1.msra.mxu0 0.0
    %2949 = vmatprep.subr.mxu0 0.0
    %2950 = vmatpush1.msra.mxu0 0.0
    %2951 = vmatprep.subr.mxu0 0.0
    %2952 = vmatpush1.msra.mxu0 0.0
    %2953 = vmatprep.subr.mxu0 0.0
    %2954 = vmatpush1.msra.mxu0 0.0
    %2955 = vmatprep.subr.mxu0 0.0
    %2956 = vmatpush1.msra.mxu0 0.0
    %2957 = vmatprep.subr.mxu0 0.0
    %2958 = vmatpush1.msra.mxu0 0.0
    %2959 = vmatprep.subr.mxu0 0.0
    %2960 = vmatpush1.msra.mxu0 0.0
    %2961 = vmatprep.subr.mxu0 0.0
    %2962 = vmatpush1.msra.mxu0 0.0
    %2963 = vmatprep.subr.mxu0 0.0
    %2964 = vmatpush1.msra.mxu0 0.0
    %2965 = vmatprep.subr.mxu0 0.0
    %2966 = vmatpush1.msra.mxu0 0.0
    %2967 = vmatprep.subr.mxu0 0.0
    %2968 = vmatpush1.msra.mxu0 0.0
    %2969 = vmatprep.subr.mxu0 0.0
    %2970 = vmatpush1.msra.mxu0 0.0
    %2971 = vmatprep.subr.mxu0 0.0
    %2972 = vmatpush1.msra.mxu0 0.0
    %2973 = vmatprep.mubr.f32.mxu0 0.0
    %2974 = vmatmul.mubr.f32.gmra.mrb[0].mxu0 %v2631
    %v2975 = vpop.f32.mrb[0].mxu0
    %v2976 = vadd.f32 0.0, %v2975
    %v2977 = vpop.f32.mrb[0].mxu0
    %v2978 = vadd.f32 0.0, %v2977
    %2979 = vdwg.mxu0
    %v2984 = vcombine.low %v2905, %v2907
    %v2985 = vcombine.low %v2976, %v2978
    %v2987 = vunpack.c.l.s4 1983009808
    %v2988 = vunpack.c.0.s8 %v2987
    %v2989 = vlaneseq
    %v2990 = vshrl.u32 %v2989, 7
    %v2991 = vsub.s32 %v2988, %v2990
    %v2992 = vrot.slane %v2984, %v2991
    %v2994 = vunpack.c.l.s4 1983009808
    %v2995 = vunpack.c.0.s8 %v2994
    %v2996 = vlaneseq
    %v2997 = vshrl.u32 %v2996, 7
    %v2998 = vsub.s32 %v2995, %v2997
    %v2999 = vrot.slane %v2985, %v2998
    %v3000 = vcombine.low %v2992, %v2999
    %v3002 = vadd.f32 %v2837, %v3000
    %v3004 = vrot.slane %v3002, 6
    %vm3006 = vcmp.gt.f32.partialorder %v3004, 0.54930615
    %v3007 = vsel %vm3006, 1, 0
    %vm3008 = vcmp.gt.f32.partialorder %v3002, 0.0
    %v3009 = vsel %vm3008, 1, 0
    %v3010 = vmul.u32 %v3009, 65536
    %v3011 = vadd.s32 %v3007, %v3010
    %v3012 = vsel %vm285, %v3011, 0
    %v3013 = vand.u32 %v3012, 65535
    %v3014 = vshrl.u32 %v3012, 16
    %v3015 = vcvt.s32.f32 %v3013
    %v3016 = vcvt.s32.f32 %v3014
    %3017 = vadd.xlane.f32.xlu0 %v3015
    %v3018 = vpop.xlane.xlu0 %3017
    %3019 = vadd.xlane.f32.xlu0 %v3016
    %v3020 = vpop.xlane.xlu0 %3019
    %v3021 = vcvt.f32.s32 %v3018
    %v3022 = vcvt.f32.s32 %v3020
    %v3023 = vshll.u32 %v3022, 16
    %v3024 = vadd.s32 %v3023, %v3021
    %v3025 = vrot.slane %v3024, 4
    %v3026 = vadd.s32 %v3024, %v3025
    %v3027 = vrot.slane %v3026, 2
    %v3028 = vadd.s32 %v3026, %v3027
    %v3029 = vrot.slane %v3028, 1
    %v3030 = vadd.s32 %v3028, %v3029
    %s3031 = vtos %v3030
    %s3032 = sand.u32 %s3031, 65535
    %s3033 = sshra.s32 %s3031, 16
    %v3034 = vmul.f32 %v3002, 0.5
    %v3035 = vtanh.pop %v3034
    %v3036 = vadd.f32 %v3035, 1.0
    %v3037 = vmul.f32 %v3036, 0.5
    %v3038 = vtanh.pop %v3004
    %p3039 = scmp.lt.s32.totalorder %s3032, 20
    %p3040 = scmp.gt.s32.totalorder %s3033, 20
    %p3041 = pnand %p3039, %p3040
    %p3042 = pneg %p3041
    %p3043 = scmp.gt.s32.totalorder %s3032, 20
    %p3044 = scmp.lt.s32.totalorder %s3033, 20
    %p3045 = pnand %p3043, %p3044
    %p3046 = pneg %p3045
    %v3047 = vmul.f32 %v3037, %v3038
    %s3048 = scalar_select %p3046, 1, 0
    %v3049 = vstv %s3048
    %vm3050 = vcmp.eq.s32.totalorder %v3049, 1
    %v3051 = vsel %vm3050, %v3038, %v3047
    %s3052 = scalar_select %p3042, 1, 0
    %v3053 = vstv %s3052
    %vm3054 = vcmp.eq.s32.totalorder %v3053, 1
    %v3055 = vsel %vm3054, %v3037, %v3051
    %v3057 = vrot.slane %v3037, 2
    %v3059 = vmul.f32 %v3057, %v2627
    %v3060 = vadd.f32 %v3059, %v3055
    %v3061 = vtanh.pop %v3060
    %v3062 = vrot.slane %v3037, 4
    %v3064 = vmul.f32 %v3062, %v3061
    %3065 = vmatprep.subr.mxu0 %v340
    %3066 = vmatpush1.msra.mxu0 %v339
    %3067 = vmatprep.subr.mxu0 %v344
    %3068 = vmatpush1.msra.mxu0 %v343
    %3069 = vmatprep.subr.mxu0 %v348
    %3070 = vmatpush1.msra.mxu0 %v347
    %3071 = vmatprep.subr.mxu0 %v352
    %3072 = vmatpush1.msra.mxu0 %v351
    %3073 = vmatprep.subr.mxu0 %v356
    %3074 = vmatpush1.msra.mxu0 %v355
    %3075 = vmatprep.subr.mxu0 %v360
    %3076 = vmatpush1.msra.mxu0 %v359
    %3077 = vmatprep.subr.mxu0 %v364
    %3078 = vmatpush1.msra.mxu0 %v363
    %3079 = vmatprep.subr.mxu0 %v368
    %3080 = vmatpush1.msra.mxu0 %v367
    %3081 = vmatprep.subr.mxu0 %v372
    %3082 = vmatpush1.msra.mxu0 %v371
    %3083 = vmatprep.subr.mxu0 %v376
    %3084 = vmatpush1.msra.mxu0 %v375
    %3085 = vmatprep.subr.mxu0 %v380
    %3086 = vmatpush1.msra.mxu0 %v379
    %3087 = vmatprep.subr.mxu0 %v384
    %3088 = vmatpush1.msra.mxu0 %v383
    %3089 = vmatprep.subr.mxu0 %v388
    %3090 = vmatpush1.msra.mxu0 %v387
    %3091 = vmatprep.subr.mxu0 %v392
    %3092 = vmatpush1.msra.mxu0 %v391
    %3093 = vmatprep.subr.mxu0 %v396
    %3094 = vmatpush1.msra.mxu0 %v395
    %3095 = vmatprep.subr.mxu0 %v400
    %3096 = vmatpush1.msra.mxu0 %v399
    %3097 = vmatprep.subr.mxu0 %v404
    %3098 = vmatpush1.msra.mxu0 %v403
    %3099 = vmatprep.subr.mxu0 %v408
    %3100 = vmatpush1.msra.mxu0 %v407
    %3101 = vmatprep.subr.mxu0 %v412
    %3102 = vmatpush1.msra.mxu0 %v411
    %3103 = vmatprep.subr.mxu0 %v416
    %3104 = vmatpush1.msra.mxu0 %v415
    %3105 = vmatprep.subr.mxu0 %v420
    %3106 = vmatpush1.msra.mxu0 %v419
    %3107 = vmatprep.subr.mxu0 %v424
    %3108 = vmatpush1.msra.mxu0 %v423
    %3109 = vmatprep.subr.mxu0 %v428
    %3110 = vmatpush1.msra.mxu0 %v427
    %3111 = vmatprep.subr.mxu0 %v432
    %3112 = vmatpush1.msra.mxu0 %v431
    %3113 = vmatprep.subr.mxu0 %v436
    %3114 = vmatpush1.msra.mxu0 %v435
    %3115 = vmatprep.subr.mxu0 %v440
    %3116 = vmatpush1.msra.mxu0 %v439
    %3117 = vmatprep.subr.mxu0 %v444
    %3118 = vmatpush1.msra.mxu0 %v443
    %3119 = vmatprep.subr.mxu0 %v448
    %3120 = vmatpush1.msra.mxu0 %v447
    %3121 = vmatprep.subr.mxu0 %v452
    %3122 = vmatpush1.msra.mxu0 %v451
    %3123 = vmatprep.subr.mxu0 %v456
    %3124 = vmatpush1.msra.mxu0 %v455
    %3125 = vmatprep.subr.mxu0 %v460
    %3126 = vmatpush1.msra.mxu0 %v459
    %3127 = vmatprep.subr.mxu0 %v464
    %3128 = vmatpush1.msra.mxu0 %v463
    %3129 = vmatprep.mubr.f32.mxu0 %v2835
    %3130 = vmatmul.mubr.f32.gmra.mrb[0].mxu0 %v3064
    %v3131 = vpop.f32.mrb[0].mxu0
    %v3132 = vadd.f32 %v29, %v3131
    %v3133 = vpop.f32.mrb[0].mxu0
    %v3134 = vadd.f32 %v33, %v3133
    %3135 = vdwg.mxu0
    %3136 = vmatprep.subr.mxu0 %v342
    %3137 = vmatpush1.msra.mxu0 %v341
    %3138 = vmatprep.subr.mxu0 %v346
    %3139 = vmatpush1.msra.mxu0 %v345
    %3140 = vmatprep.subr.mxu0 %v350
    %3141 = vmatpush1.msra.mxu0 %v349
    %3142 = vmatprep.subr.mxu0 %v354
    %3143 = vmatpush1.msra.mxu0 %v353
    %3144 = vmatprep.subr.mxu0 %v358
    %3145 = vmatpush1.msra.mxu0 %v357
    %3146 = vmatprep.subr.mxu0 %v362
    %3147 = vmatpush1.msra.mxu0 %v361
    %3148 = vmatprep.subr.mxu0 %v366
    %3149 = vmatpush1.msra.mxu0 %v365
    %3150 = vmatprep.subr.mxu0 %v370
    %3151 = vmatpush1.msra.mxu0 %v369
    %3152 = vmatprep.subr.mxu0 %v374
    %3153 = vmatpush1.msra.mxu0 %v373
    %3154 = vmatprep.subr.mxu0 %v378
    %3155 = vmatpush1.msra.mxu0 %v377
    %3156 = vmatprep.subr.mxu0 %v382
    %3157 = vmatpush1.msra.mxu0 %v381
    %3158 = vmatprep.subr.mxu0 %v386
    %3159 = vmatpush1.msra.mxu0 %v385
    %3160 = vmatprep.subr.mxu0 %v390
    %3161 = vmatpush1.msra.mxu0 %v389
    %3162 = vmatprep.subr.mxu0 %v394
    %3163 = vmatpush1.msra.mxu0 %v393
    %3164 = vmatprep.subr.mxu0 %v398
    %3165 = vmatpush1.msra.mxu0 %v397
    %3166 = vmatprep.subr.mxu0 %v402
    %3167 = vmatpush1.msra.mxu0 %v401
    %3168 = vmatprep.subr.mxu0 %v406
    %3169 = vmatpush1.msra.mxu0 %v405
    %3170 = vmatprep.subr.mxu0 %v410
    %3171 = vmatpush1.msra.mxu0 %v409
    %3172 = vmatprep.subr.mxu0 %v414
    %3173 = vmatpush1.msra.mxu0 %v413
    %3174 = vmatprep.subr.mxu0 %v418
    %3175 = vmatpush1.msra.mxu0 %v417
    %3176 = vmatprep.subr.mxu0 %v422
    %3177 = vmatpush1.msra.mxu0 %v421
    %3178 = vmatprep.subr.mxu0 %v426
    %3179 = vmatpush1.msra.mxu0 %v425
    %3180 = vmatprep.subr.mxu0 %v430
    %3181 = vmatpush1.msra.mxu0 %v429
    %3182 = vmatprep.subr.mxu0 %v434
    %3183 = vmatpush1.msra.mxu0 %v433
    %3184 = vmatprep.subr.mxu0 %v438
    %3185 = vmatpush1.msra.mxu0 %v437
    %3186 = vmatprep.subr.mxu0 %v442
    %3187 = vmatpush1.msra.mxu0 %v441
    %3188 = vmatprep.subr.mxu0 %v446
    %3189 = vmatpush1.msra.mxu0 %v445
    %3190 = vmatprep.subr.mxu0 %v450
    %3191 = vmatpush1.msra.mxu0 %v449
    %3192 = vmatprep.subr.mxu0 %v454
    %3193 = vmatpush1.msra.mxu0 %v453
    %3194 = vmatprep.subr.mxu0 %v458
    %3195 = vmatpush1.msra.mxu0 %v457
    %3196 = vmatprep.subr.mxu0 %v462
    %3197 = vmatpush1.msra.mxu0 %v461
    %3198 = vmatprep.subr.mxu0 %v466
    %3199 = vmatpush1.msra.mxu0 %v465
    %3200 = vmatprep.mubr.f32.mxu0 %v2835
    %3201 = vmatmul.mubr.f32.gmra.mrb[0].mxu0 %v3064
    %v3202 = vpop.f32.mrb[0].mxu0
    %v3203 = vadd.f32 %v37, %v3202
    %v3204 = vpop.f32.mrb[0].mxu0
    %v3205 = vadd.f32 %v41, %v3204
    %3206 = vdwg.mxu0
    %vm3207 = vcmp.gt.f32.partialorder %v3205, 0.54930615
    %v3208 = vsel %vm3207, 1, 0
    %vm3209 = vcmp.gt.f32.partialorder %v3132, 0.0
    %v3210 = vsel %vm3209, 1, 0
    %v3211 = vmul.u32 %v3210, 65536
    %v3212 = vadd.s32 %v3208, %v3211
    %v3213 = vsel %vm285, %v3212, 0
    %v3214 = vand.u32 %v3213, 65535
    %v3215 = vshrl.u32 %v3213, 16
    %v3216 = vcvt.s32.f32 %v3214
    %v3217 = vcvt.s32.f32 %v3215
    %3218 = vadd.xlane.f32.xlu0 %v3216
    %v3219 = vpop.xlane.xlu0 %3218
    %3220 = vadd.xlane.f32.xlu0 %v3217
    %v3221 = vpop.xlane.xlu0 %3220
    %v3222 = vcvt.f32.s32 %v3219
    %v3223 = vcvt.f32.s32 %v3221
    %v3224 = vshll.u32 %v3223, 16
    %v3225 = vadd.s32 %v3224, %v3222
    %v3226 = vrot.slane %v3225, 4
    %v3227 = vadd.s32 %v3225, %v3226
    %v3228 = vrot.slane %v3227, 2
    %v3229 = vadd.s32 %v3227, %v3228
    %v3230 = vrot.slane %v3229, 1
    %v3231 = vadd.s32 %v3229, %v3230
    %s3232 = vtos %v3231
    %s3233 = sand.u32 %s3232, 65535
    %s3234 = sshra.s32 %s3232, 16
    %v3235 = vmul.f32 %v3132, 0.5
    %v3236 = vmul.f32 %v3134, 0.5
    %v3237 = vmul.f32 %v3203, 0.5
    %v3238 = vtanh.pop %v3235
    %v3239 = vtanh.pop %v3236
    %v3240 = vtanh.pop %v3237
    %v3241 = vadd.f32 %v3238, 1.0
    %v3242 = vadd.f32 %v3239, 1.0
    %v3243 = vadd.f32 %v3240, 1.0
    %v3244 = vmul.f32 %v3241, 0.5
    %v3245 = vmul.f32 %v3242, 0.5
    %v3246 = vmul.f32 %v3243, 0.5
    %v3247 = vtanh.pop %v3205
    %p3248 = scmp.lt.s32.totalorder %s3233, 20
    %p3249 = scmp.gt.s32.totalorder %s3234, 20
    %p3250 = pnand %p3248, %p3249
    %p3251 = pneg %p3250
    %p3252 = scmp.gt.s32.totalorder %s3233, 20
    %p3253 = scmp.lt.s32.totalorder %s3234, 20
    %p3254 = pnand %p3252, %p3253
    %p3255 = pneg %p3254
    %v3256 = vmul.f32 %v3244, %v3247
    %s3257 = scalar_select %p3255, 1, 0
    %v3258 = vstv %s3257
    %vm3259 = vcmp.eq.s32.totalorder %v3258, 1
    %v3260 = vsel %vm3259, %v3247, %v3256
    %s3261 = scalar_select %p3251, 1, 0
    %v3262 = vstv %s3261
    %vm3263 = vcmp.eq.s32.totalorder %v3262, 1
    %v3264 = vsel %vm3263, %v3244, %v3260
    %v3265 = vmul.f32 %v3245, %v2833
    %v3266 = vadd.f32 %v3265, %v3264
    %v3267 = vtanh.pop %v3266
    %v3268 = vmul.f32 %v3246, %v3267
    %s3269 = scalar_lea.vmem %s0, 56
    %v3270 = vld [vmem:[%s3269] sm:$0xff]
    %3271 = vmatprep.subr.mxu0 %v48
    %3272 = vmatpush1.msra.mxu0 %v47
    %3273 = vmatprep.subr.mxu0 %v52
    %3274 = vmatpush1.msra.mxu0 %v51
    %3275 = vmatprep.subr.mxu0 %v56
    %3276 = vmatpush1.msra.mxu0 %v55
    %3277 = vmatprep.subr.mxu0 %v60
    %3278 = vmatpush1.msra.mxu0 %v59
    %3279 = vmatprep.subr.mxu0 %v64
    %3280 = vmatpush1.msra.mxu0 %v63
    %3281 = vmatprep.subr.mxu0 %v68
    %3282 = vmatpush1.msra.mxu0 %v67
    %3283 = vmatprep.subr.mxu0 %v72
    %3284 = vmatpush1.msra.mxu0 %v71
    %3285 = vmatprep.subr.mxu0 %v76
    %3286 = vmatpush1.msra.mxu0 %v75
    %3287 = vmatprep.subr.mxu0 %v80
    %3288 = vmatpush1.msra.mxu0 %v79
    %3289 = vmatprep.subr.mxu0 %v84
    %3290 = vmatpush1.msra.mxu0 %v83
    %3291 = vmatprep.subr.mxu0 %v88
    %3292 = vmatpush1.msra.mxu0 %v87
    %3293 = vmatprep.subr.mxu0 %v92
    %3294 = vmatpush1.msra.mxu0 %v91
    %3295 = vmatprep.subr.mxu0 %v96
    %3296 = vmatpush1.msra.mxu0 %v95
    %3297 = vmatprep.subr.mxu0 %v100
    %3298 = vmatpush1.msra.mxu0 %v99
    %3299 = vmatprep.subr.mxu0 %v104
    %3300 = vmatpush1.msra.mxu0 %v103
    %3301 = vmatprep.subr.mxu0 %v108
    %3302 = vmatpush1.msra.mxu0 %v107
    %3303 = vmatprep.subr.mxu0 0.0
    %3304 = vmatpush1.msra.mxu0 0.0
    %3305 = vmatprep.subr.mxu0 0.0
    %3306 = vmatpush1.msra.mxu0 0.0
    %3307 = vmatprep.subr.mxu0 0.0
    %3308 = vmatpush1.msra.mxu0 0.0
    %3309 = vmatprep.subr.mxu0 0.0
    %3310 = vmatpush1.msra.mxu0 0.0
    %3311 = vmatprep.subr.mxu0 0.0
    %3312 = vmatpush1.msra.mxu0 0.0
    %3313 = vmatprep.subr.mxu0 0.0
    %3314 = vmatpush1.msra.mxu0 0.0
    %3315 = vmatprep.subr.mxu0 0.0
    %3316 = vmatpush1.msra.mxu0 0.0
    %3317 = vmatprep.subr.mxu0 0.0
    %3318 = vmatpush1.msra.mxu0 0.0
    %3319 = vmatprep.subr.mxu0 0.0
    %3320 = vmatpush1.msra.mxu0 0.0
    %3321 = vmatprep.subr.mxu0 0.0
    %3322 = vmatpush1.msra.mxu0 0.0
    %3323 = vmatprep.subr.mxu0 0.0
    %3324 = vmatpush1.msra.mxu0 0.0
    %3325 = vmatprep.subr.mxu0 0.0
    %3326 = vmatpush1.msra.mxu0 0.0
    %3327 = vmatprep.subr.mxu0 0.0
    %3328 = vmatpush1.msra.mxu0 0.0
    %3329 = vmatprep.subr.mxu0 0.0
    %3330 = vmatpush1.msra.mxu0 0.0
    %3331 = vmatprep.subr.mxu0 0.0
    %3332 = vmatpush1.msra.mxu0 0.0
    %3333 = vmatprep.subr.mxu0 0.0
    %3334 = vmatpush1.msra.mxu0 0.0
    %3335 = vmatprep.mubr.f32.mxu0 0.0
    %3336 = vmatmul.mubr.f32.gmra.mrb[0].mxu0 %v3064
    %v3337 = vpop.f32.mrb[0].mxu0
    %v3338 = vadd.f32 0.0, %v3337
    %v3339 = vpop.f32.mrb[0].mxu0
    %v3340 = vadd.f32 0.0, %v3339
    %3341 = vdwg.mxu0
    %3342 = vmatprep.subr.mxu0 %v50
    %3343 = vmatpush1.msra.mxu0 %v49
    %3344 = vmatprep.subr.mxu0 %v54
    %3345 = vmatpush1.msra.mxu0 %v53
    %3346 = vmatprep.subr.mxu0 %v58
    %3347 = vmatpush1.msra.mxu0 %v57
    %3348 = vmatprep.subr.mxu0 %v62
    %3349 = vmatpush1.msra.mxu0 %v61
    %3350 = vmatprep.subr.mxu0 %v66
    %3351 = vmatpush1.msra.mxu0 %v65
    %3352 = vmatprep.subr.mxu0 %v70
    %3353 = vmatpush1.msra.mxu0 %v69
    %3354 = vmatprep.subr.mxu0 %v74
    %3355 = vmatpush1.msra.mxu0 %v73
    %3356 = vmatprep.subr.mxu0 %v78
    %3357 = vmatpush1.msra.mxu0 %v77
    %3358 = vmatprep.subr.mxu0 %v82
    %3359 = vmatpush1.msra.mxu0 %v81
    %3360 = vmatprep.subr.mxu0 %v86
    %3361 = vmatpush1.msra.mxu0 %v85
    %3362 = vmatprep.subr.mxu0 %v90
    %3363 = vmatpush1.msra.mxu0 %v89
    %3364 = vmatprep.subr.mxu0 %v94
    %3365 = vmatpush1.msra.mxu0 %v93
    %3366 = vmatprep.subr.mxu0 %v98
    %3367 = vmatpush1.msra.mxu0 %v97
    %3368 = vmatprep.subr.mxu0 %v102
    %3369 = vmatpush1.msra.mxu0 %v101
    %3370 = vmatprep.subr.mxu0 %v106
    %3371 = vmatpush1.msra.mxu0 %v105
    %3372 = vmatprep.subr.mxu0 %v110
    %3373 = vmatpush1.msra.mxu0 %v109
    %3374 = vmatprep.subr.mxu0 0.0
    %3375 = vmatpush1.msra.mxu0 0.0
    %3376 = vmatprep.subr.mxu0 0.0
    %3377 = vmatpush1.msra.mxu0 0.0
    %3378 = vmatprep.subr.mxu0 0.0
    %3379 = vmatpush1.msra.mxu0 0.0
    %3380 = vmatprep.subr.mxu0 0.0
    %3381 = vmatpush1.msra.mxu0 0.0
    %3382 = vmatprep.subr.mxu0 0.0
    %3383 = vmatpush1.msra.mxu0 0.0
    %3384 = vmatprep.subr.mxu0 0.0
    %3385 = vmatpush1.msra.mxu0 0.0
    %3386 = vmatprep.subr.mxu0 0.0
    %3387 = vmatpush1.msra.mxu0 0.0
    %3388 = vmatprep.subr.mxu0 0.0
    %3389 = vmatpush1.msra.mxu0 0.0
    %3390 = vmatprep.subr.mxu0 0.0
    %3391 = vmatpush1.msra.mxu0 0.0
    %3392 = vmatprep.subr.mxu0 0.0
    %3393 = vmatpush1.msra.mxu0 0.0
    %3394 = vmatprep.subr.mxu0 0.0
    %3395 = vmatpush1.msra.mxu0 0.0
    %3396 = vmatprep.subr.mxu0 0.0
    %3397 = vmatpush1.msra.mxu0 0.0
    %3398 = vmatprep.subr.mxu0 0.0
    %3399 = vmatpush1.msra.mxu0 0.0
    %3400 = vmatprep.subr.mxu0 0.0
    %3401 = vmatpush1.msra.mxu0 0.0
    %3402 = vmatprep.subr.mxu0 0.0
    %3403 = vmatpush1.msra.mxu0 0.0
    %3404 = vmatprep.subr.mxu0 0.0
    %3405 = vmatpush1.msra.mxu0 0.0
    %3406 = vmatprep.mubr.f32.mxu0 0.0
    %3407 = vmatmul.mubr.f32.gmra.mrb[0].mxu0 %v3064
    %v3408 = vpop.f32.mrb[0].mxu0
    %v3409 = vadd.f32 0.0, %v3408
    %v3410 = vpop.f32.mrb[0].mxu0
    %v3411 = vadd.f32 0.0, %v3410
    %3412 = vdwg.mxu0
    %v3417 = vcombine.low %v3338, %v3340
    %v3418 = vcombine.low %v3409, %v3411
    %v3420 = vunpack.c.l.s4 1983009808
    %v3421 = vunpack.c.0.s8 %v3420
    %v3422 = vlaneseq
    %v3423 = vshrl.u32 %v3422, 7
    %v3424 = vsub.s32 %v3421, %v3423
    %v3425 = vrot.slane %v3417, %v3424
    %v3427 = vunpack.c.l.s4 1983009808
    %v3428 = vunpack.c.0.s8 %v3427
    %v3429 = vlaneseq
    %v3430 = vshrl.u32 %v3429, 7
    %v3431 = vsub.s32 %v3428, %v3430
    %v3432 = vrot.slane %v3418, %v3431
    %v3433 = vcombine.low %v3425, %v3432
    %v3435 = vadd.f32 %v3270, %v3433
    %v3437 = vrot.slane %v3435, 6
    %vm3439 = vcmp.gt.f32.partialorder %v3437, 0.54930615
    %v3440 = vsel %vm3439, 1, 0
    %vm3441 = vcmp.gt.f32.partialorder %v3435, 0.0
    %v3442 = vsel %vm3441, 1, 0
    %v3443 = vmul.u32 %v3442, 65536
    %v3444 = vadd.s32 %v3440, %v3443
    %v3445 = vsel %vm285, %v3444, 0
    %v3446 = vand.u32 %v3445, 65535
    %v3447 = vshrl.u32 %v3445, 16
    %v3448 = vcvt.s32.f32 %v3446
    %v3449 = vcvt.s32.f32 %v3447
    %3450 = vadd.xlane.f32.xlu0 %v3448
    %v3451 = vpop.xlane.xlu0 %3450
    %3452 = vadd.xlane.f32.xlu0 %v3449
    %v3453 = vpop.xlane.xlu0 %3452
    %v3454 = vcvt.f32.s32 %v3451
    %v3455 = vcvt.f32.s32 %v3453
    %v3456 = vshll.u32 %v3455, 16
    %v3457 = vadd.s32 %v3456, %v3454
    %v3458 = vrot.slane %v3457, 4
    %v3459 = vadd.s32 %v3457, %v3458
    %v3460 = vrot.slane %v3459, 2
    %v3461 = vadd.s32 %v3459, %v3460
    %v3462 = vrot.slane %v3461, 1
    %v3463 = vadd.s32 %v3461, %v3462
    %s3464 = vtos %v3463
    %s3465 = sand.u32 %s3464, 65535
    %s3466 = sshra.s32 %s3464, 16
    %v3467 = vmul.f32 %v3435, 0.5
    %v3468 = vtanh.pop %v3467
    %v3469 = vadd.f32 %v3468, 1.0
    %v3470 = vmul.f32 %v3469, 0.5
    %v3471 = vtanh.pop %v3437
    %p3472 = scmp.lt.s32.totalorder %s3465, 20
    %p3473 = scmp.gt.s32.totalorder %s3466, 20
    %p3474 = pnand %p3472, %p3473
    %p3475 = pneg %p3474
    %p3476 = scmp.gt.s32.totalorder %s3465, 20
    %p3477 = scmp.lt.s32.totalorder %s3466, 20
    %p3478 = pnand %p3476, %p3477
    %p3479 = pneg %p3478
    %v3480 = vmul.f32 %v3470, %v3471
    %s3481 = scalar_select %p3479, 1, 0
    %v3482 = vstv %s3481
    %vm3483 = vcmp.eq.s32.totalorder %v3482, 1
    %v3484 = vsel %vm3483, %v3471, %v3480
    %s3485 = scalar_select %p3475, 1, 0
    %v3486 = vstv %s3485
    %vm3487 = vcmp.eq.s32.totalorder %v3486, 1
    %v3488 = vsel %vm3487, %v3470, %v3484
    %v3490 = vrot.slane %v3470, 2
    %v3492 = vmul.f32 %v3490, %v3060
    %v3493 = vadd.f32 %v3492, %v3488
    %v3494 = vtanh.pop %v3493
    %v3495 = vrot.slane %v3470, 4
    %v3497 = vmul.f32 %v3495, %v3494
    %3498 = vmatprep.subr.mxu0 %v340
    %3499 = vmatpush1.msra.mxu0 %v339
    %3500 = vmatprep.subr.mxu0 %v344
    %3501 = vmatpush1.msra.mxu0 %v343
    %3502 = vmatprep.subr.mxu0 %v348
    %3503 = vmatpush1.msra.mxu0 %v347
    %3504 = vmatprep.subr.mxu0 %v352
    %3505 = vmatpush1.msra.mxu0 %v351
    %3506 = vmatprep.subr.mxu0 %v356
    %3507 = vmatpush1.msra.mxu0 %v355
    %3508 = vmatprep.subr.mxu0 %v360
    %3509 = vmatpush1.msra.mxu0 %v359
    %3510 = vmatprep.subr.mxu0 %v364
    %3511 = vmatpush1.msra.mxu0 %v363
    %3512 = vmatprep.subr.mxu0 %v368
    %3513 = vmatpush1.msra.mxu0 %v367
    %3514 = vmatprep.subr.mxu0 %v372
    %3515 = vmatpush1.msra.mxu0 %v371
    %3516 = vmatprep.subr.mxu0 %v376
    %3517 = vmatpush1.msra.mxu0 %v375
    %3518 = vmatprep.subr.mxu0 %v380
    %3519 = vmatpush1.msra.mxu0 %v379
    %3520 = vmatprep.subr.mxu0 %v384
    %3521 = vmatpush1.msra.mxu0 %v383
    %3522 = vmatprep.subr.mxu0 %v388
    %3523 = vmatpush1.msra.mxu0 %v387
    %3524 = vmatprep.subr.mxu0 %v392
    %3525 = vmatpush1.msra.mxu0 %v391
    %3526 = vmatprep.subr.mxu0 %v396
    %3527 = vmatpush1.msra.mxu0 %v395
    %3528 = vmatprep.subr.mxu0 %v400
    %3529 = vmatpush1.msra.mxu0 %v399
    %3530 = vmatprep.subr.mxu0 %v404
    %3531 = vmatpush1.msra.mxu0 %v403
    %3532 = vmatprep.subr.mxu0 %v408
    %3533 = vmatpush1.msra.mxu0 %v407
    %3534 = vmatprep.subr.mxu0 %v412
    %3535 = vmatpush1.msra.mxu0 %v411
    %3536 = vmatprep.subr.mxu0 %v416
    %3537 = vmatpush1.msra.mxu0 %v415
    %3538 = vmatprep.subr.mxu0 %v420
    %3539 = vmatpush1.msra.mxu0 %v419
    %3540 = vmatprep.subr.mxu0 %v424
    %3541 = vmatpush1.msra.mxu0 %v423
    %3542 = vmatprep.subr.mxu0 %v428
    %3543 = vmatpush1.msra.mxu0 %v427
    %3544 = vmatprep.subr.mxu0 %v432
    %3545 = vmatpush1.msra.mxu0 %v431
    %3546 = vmatprep.subr.mxu0 %v436
    %3547 = vmatpush1.msra.mxu0 %v435
    %3548 = vmatprep.subr.mxu0 %v440
    %3549 = vmatpush1.msra.mxu0 %v439
    %3550 = vmatprep.subr.mxu0 %v444
    %3551 = vmatpush1.msra.mxu0 %v443
    %3552 = vmatprep.subr.mxu0 %v448
    %3553 = vmatpush1.msra.mxu0 %v447
    %3554 = vmatprep.subr.mxu0 %v452
    %3555 = vmatpush1.msra.mxu0 %v451
    %3556 = vmatprep.subr.mxu0 %v456
    %3557 = vmatpush1.msra.mxu0 %v455
    %3558 = vmatprep.subr.mxu0 %v460
    %3559 = vmatpush1.msra.mxu0 %v459
    %3560 = vmatprep.subr.mxu0 %v464
    %3561 = vmatpush1.msra.mxu0 %v463
    %3562 = vmatprep.mubr.f32.mxu0 %v3268
    %3563 = vmatmul.mubr.f32.gmra.mrb[0].mxu0 %v3497
    %v3564 = vpop.f32.mrb[0].mxu0
    %v3565 = vadd.f32 %v29, %v3564
    %v3566 = vpop.f32.mrb[0].mxu0
    %v3567 = vadd.f32 %v33, %v3566
    %3568 = vdwg.mxu0
    %3569 = vmatprep.subr.mxu0 %v342
    %3570 = vmatpush1.msra.mxu0 %v341
    %3571 = vmatprep.subr.mxu0 %v346
    %3572 = vmatpush1.msra.mxu0 %v345
    %3573 = vmatprep.subr.mxu0 %v350
    %3574 = vmatpush1.msra.mxu0 %v349
    %3575 = vmatprep.subr.mxu0 %v354
    %3576 = vmatpush1.msra.mxu0 %v353
    %3577 = vmatprep.subr.mxu0 %v358
    %3578 = vmatpush1.msra.mxu0 %v357
    %3579 = vmatprep.subr.mxu0 %v362
    %3580 = vmatpush1.msra.mxu0 %v361
    %3581 = vmatprep.subr.mxu0 %v366
    %3582 = vmatpush1.msra.mxu0 %v365
    %3583 = vmatprep.subr.mxu0 %v370
    %3584 = vmatpush1.msra.mxu0 %v369
    %3585 = vmatprep.subr.mxu0 %v374
    %3586 = vmatpush1.msra.mxu0 %v373
    %3587 = vmatprep.subr.mxu0 %v378
    %3588 = vmatpush1.msra.mxu0 %v377
    %3589 = vmatprep.subr.mxu0 %v382
    %3590 = vmatpush1.msra.mxu0 %v381
    %3591 = vmatprep.subr.mxu0 %v386
    %3592 = vmatpush1.msra.mxu0 %v385
    %3593 = vmatprep.subr.mxu0 %v390
    %3594 = vmatpush1.msra.mxu0 %v389
    %3595 = vmatprep.subr.mxu0 %v394
    %3596 = vmatpush1.msra.mxu0 %v393
    %3597 = vmatprep.subr.mxu0 %v398
    %3598 = vmatpush1.msra.mxu0 %v397
    %3599 = vmatprep.subr.mxu0 %v402
    %3600 = vmatpush1.msra.mxu0 %v401
    %3601 = vmatprep.subr.mxu0 %v406
    %3602 = vmatpush1.msra.mxu0 %v405
    %3603 = vmatprep.subr.mxu0 %v410
    %3604 = vmatpush1.msra.mxu0 %v409
    %3605 = vmatprep.subr.mxu0 %v414
    %3606 = vmatpush1.msra.mxu0 %v413
    %3607 = vmatprep.subr.mxu0 %v418
    %3608 = vmatpush1.msra.mxu0 %v417
    %3609 = vmatprep.subr.mxu0 %v422
    %3610 = vmatpush1.msra.mxu0 %v421
    %3611 = vmatprep.subr.mxu0 %v426
    %3612 = vmatpush1.msra.mxu0 %v425
    %3613 = vmatprep.subr.mxu0 %v430
    %3614 = vmatpush1.msra.mxu0 %v429
    %3615 = vmatprep.subr.mxu0 %v434
    %3616 = vmatpush1.msra.mxu0 %v433
    %3617 = vmatprep.subr.mxu0 %v438
    %3618 = vmatpush1.msra.mxu0 %v437
    %3619 = vmatprep.subr.mxu0 %v442
    %3620 = vmatpush1.msra.mxu0 %v441
    %3621 = vmatprep.subr.mxu0 %v446
    %3622 = vmatpush1.msra.mxu0 %v445
    %3623 = vmatprep.subr.mxu0 %v450
    %3624 = vmatpush1.msra.mxu0 %v449
    %3625 = vmatprep.subr.mxu0 %v454
    %3626 = vmatpush1.msra.mxu0 %v453
    %3627 = vmatprep.subr.mxu0 %v458
    %3628 = vmatpush1.msra.mxu0 %v457
    %3629 = vmatprep.subr.mxu0 %v462
    %3630 = vmatpush1.msra.mxu0 %v461
    %3631 = vmatprep.subr.mxu0 %v466
    %3632 = vmatpush1.msra.mxu0 %v465
    %3633 = vmatprep.mubr.f32.mxu0 %v3268
    %3634 = vmatmul.mubr.f32.gmra.mrb[0].mxu0 %v3497
    %v3635 = vpop.f32.mrb[0].mxu0
    %v3636 = vadd.f32 %v37, %v3635
    %v3637 = vpop.f32.mrb[0].mxu0
    %v3638 = vadd.f32 %v41, %v3637
    %3639 = vdwg.mxu0
    %vm3640 = vcmp.gt.f32.partialorder %v3638, 0.54930615
    %v3641 = vsel %vm3640, 1, 0
    %vm3642 = vcmp.gt.f32.partialorder %v3565, 0.0
    %v3643 = vsel %vm3642, 1, 0
    %v3644 = vmul.u32 %v3643, 65536
    %v3645 = vadd.s32 %v3641, %v3644
    %v3646 = vsel %vm285, %v3645, 0
    %v3647 = vand.u32 %v3646, 65535
    %v3648 = vshrl.u32 %v3646, 16
    %v3649 = vcvt.s32.f32 %v3647
    %v3650 = vcvt.s32.f32 %v3648
    %3651 = vadd.xlane.f32.xlu0 %v3649
    %v3652 = vpop.xlane.xlu0 %3651
    %3653 = vadd.xlane.f32.xlu0 %v3650
    %v3654 = vpop.xlane.xlu0 %3653
    %v3655 = vcvt.f32.s32 %v3652
    %v3656 = vcvt.f32.s32 %v3654
    %v3657 = vshll.u32 %v3656, 16
    %v3658 = vadd.s32 %v3657, %v3655
    %v3659 = vrot.slane %v3658, 4
    %v3660 = vadd.s32 %v3658, %v3659
    %v3661 = vrot.slane %v3660, 2
    %v3662 = vadd.s32 %v3660, %v3661
    %v3663 = vrot.slane %v3662, 1
    %v3664 = vadd.s32 %v3662, %v3663
    %s3665 = vtos %v3664
    %s3666 = sand.u32 %s3665, 65535
    %s3667 = sshra.s32 %s3665, 16
    %v3668 = vmul.f32 %v3565, 0.5
    %v3669 = vmul.f32 %v3567, 0.5
    %v3670 = vmul.f32 %v3636, 0.5
    %v3671 = vtanh.pop %v3668
    %v3672 = vtanh.pop %v3669
    %v3673 = vtanh.pop %v3670
    %v3674 = vadd.f32 %v3671, 1.0
    %v3675 = vadd.f32 %v3672, 1.0
    %v3676 = vadd.f32 %v3673, 1.0
    %v3677 = vmul.f32 %v3674, 0.5
    %v3678 = vmul.f32 %v3675, 0.5
    %v3679 = vmul.f32 %v3676, 0.5
    %v3680 = vtanh.pop %v3638
    %p3681 = scmp.lt.s32.totalorder %s3666, 20
    %p3682 = scmp.gt.s32.totalorder %s3667, 20
    %p3683 = pnand %p3681, %p3682
    %p3684 = pneg %p3683
    %p3685 = scmp.gt.s32.totalorder %s3666, 20
    %p3686 = scmp.lt.s32.totalorder %s3667, 20
    %p3687 = pnand %p3685, %p3686
    %p3688 = pneg %p3687
    %v3689 = vmul.f32 %v3677, %v3680
    %s3690 = scalar_select %p3688, 1, 0
    %v3691 = vstv %s3690
    %vm3692 = vcmp.eq.s32.totalorder %v3691, 1
    %v3693 = vsel %vm3692, %v3680, %v3689
    %s3694 = scalar_select %p3684, 1, 0
    %v3695 = vstv %s3694
    %vm3696 = vcmp.eq.s32.totalorder %v3695, 1
    %v3697 = vsel %vm3696, %v3677, %v3693
    %v3698 = vmul.f32 %v3678, %v3266
    %v3699 = vadd.f32 %v3698, %v3697
    %v3700 = vtanh.pop %v3699
    %v3701 = vmul.f32 %v3679, %v3700
    %v3702 = vld [vmem:[%s4] sm:$0xff]
    %v3703 = vld [vmem:[%s4 + $0x8] sm:$0xff]
    %v3704 = vld [vmem:[%s4 + $0x10] sm:$0xff]
    %v3705 = vld [vmem:[%s4 + $0x18] sm:$0xff]
    %v3706 = vld [vmem:[%s4 + $0x20] sm:$0xff]
    %v3707 = vld [vmem:[%s4 + $0x28] sm:$0xff]
    %v3708 = vld [vmem:[%s4 + $0x30] sm:$0xff]
    %v3709 = vld [vmem:[%s4 + $0x38] sm:$0xff]
    %v3710 = vld [vmem:[%s4 + $0x40] sm:$0xff]
    %v3711 = vld [vmem:[%s4 + $0x48] sm:$0xff]
    %v3712 = vld [vmem:[%s4 + $0x50] sm:$0xff]
    %v3713 = vld [vmem:[%s4 + $0x58] sm:$0xff]
    %v3714 = vld [vmem:[%s4 + $0x60] sm:$0xff]
    %v3715 = vld [vmem:[%s4 + $0x68] sm:$0xff]
    %v3716 = vld [vmem:[%s4 + $0x70] sm:$0xff]
    %v3717 = vld [vmem:[%s4 + $0x78] sm:$0xff]
    %v3718 = vld [vmem:[%s5] sm:$0x1]
    %v3720 = vlaneseq
    %v3721 = vshrl.u32 %v3720, 7
    %v3722 = vsub.s32 0, %v3721
    %v3723 = vrot.slane %v3718, %v3722
    %3725 = vmatprep.subr.mxu0 0.0
    %3726 = vmatpush1.msra.mxu0 %v3702
    %3727 = vmatprep.subr.mxu0 0.0
    %3728 = vmatpush1.msra.mxu0 %v3703
    %3729 = vmatprep.subr.mxu0 0.0
    %3730 = vmatpush1.msra.mxu0 %v3704
    %3731 = vmatprep.subr.mxu0 0.0
    %3732 = vmatpush1.msra.mxu0 %v3705
    %3733 = vmatprep.subr.mxu0 0.0
    %3734 = vmatpush1.msra.mxu0 %v3706
    %3735 = vmatprep.subr.mxu0 0.0
    %3736 = vmatpush1.msra.mxu0 %v3707
    %3737 = vmatprep.subr.mxu0 0.0
    %3738 = vmatpush1.msra.mxu0 %v3708
    %3739 = vmatprep.subr.mxu0 0.0
    %3740 = vmatpush1.msra.mxu0 %v3709
    %3741 = vmatprep.subr.mxu0 0.0
    %3742 = vmatpush1.msra.mxu0 %v3710
    %3743 = vmatprep.subr.mxu0 0.0
    %3744 = vmatpush1.msra.mxu0 %v3711
    %3745 = vmatprep.subr.mxu0 0.0
    %3746 = vmatpush1.msra.mxu0 %v3712
    %3747 = vmatprep.subr.mxu0 0.0
    %3748 = vmatpush1.msra.mxu0 %v3713
    %3749 = vmatprep.subr.mxu0 0.0
    %3750 = vmatpush1.msra.mxu0 %v3714
    %3751 = vmatprep.subr.mxu0 0.0
    %3752 = vmatpush1.msra.mxu0 %v3715
    %3753 = vmatprep.subr.mxu0 0.0
    %3754 = vmatpush1.msra.mxu0 %v3716
    %3755 = vmatprep.subr.mxu0 0.0
    %3756 = vmatpush1.msra.mxu0 %v3717
    %3757 = vmatprep.subr.mxu0 0.0
    %3758 = vmatpush1.msra.mxu0 0.0
    %3759 = vmatprep.subr.mxu0 0.0
    %3760 = vmatpush1.msra.mxu0 0.0
    %3761 = vmatprep.subr.mxu0 0.0
    %3762 = vmatpush1.msra.mxu0 0.0
    %3763 = vmatprep.subr.mxu0 0.0
    %3764 = vmatpush1.msra.mxu0 0.0
    %3765 = vmatprep.subr.mxu0 0.0
    %3766 = vmatpush1.msra.mxu0 0.0
    %3767 = vmatprep.subr.mxu0 0.0
    %3768 = vmatpush1.msra.mxu0 0.0
    %3769 = vmatprep.subr.mxu0 0.0
    %3770 = vmatpush1.msra.mxu0 0.0
    %3771 = vmatprep.subr.mxu0 0.0
    %3772 = vmatpush1.msra.mxu0 0.0
    %3773 = vmatprep.subr.mxu0 0.0
    %3774 = vmatpush1.msra.mxu0 0.0
    %3775 = vmatprep.subr.mxu0 0.0
    %3776 = vmatpush1.msra.mxu0 0.0
    %3777 = vmatprep.subr.mxu0 0.0
    %3778 = vmatpush1.msra.mxu0 0.0
    %3779 = vmatprep.subr.mxu0 0.0
    %3780 = vmatpush1.msra.mxu0 0.0
    %3781 = vmatprep.subr.mxu0 0.0
    %3782 = vmatpush1.msra.mxu0 0.0
    %3783 = vmatprep.subr.mxu0 0.0
    %3784 = vmatpush1.msra.mxu0 0.0
    %3785 = vmatprep.subr.mxu0 0.0
    %3786 = vmatpush1.msra.mxu0 0.0
    %3787 = vmatprep.subr.mxu0 0.0
    %3788 = vmatpush1.msra.mxu0 0.0
    %3789 = vmatprep.mubr.f32.mxu0 0.0
    %3790 = vmatmul.mubr.f32.gmra.mrb[0].mxu0 %v3701
    %v3791 = vpop.f32.mrb[0].mxu0
    %v3792 = vadd.f32 %v3723, %v3791
    %v3793 = vpop.f32.mrb[0].mxu0
    %3794 = vdwg.mxu0
    %vm3795 = vcmask 25600
    %3796 = vst.msk [vmem:[#allocation2] sm:$0x3] %vm3795, %v3792
    // Predicated region
    $region26: #{lstm_predictor.1} parent=1 // pred_check
      _
    $region27: #{lstm_predictor.1} parent=1 // pred_check_branch
      %3798 = sbr.rel (0) target = $region29
    $region28: #{lstm_predictor.1} parent=1 // pred_region
      %s3800 = ssub.s32 32, 32
      %3801 = vsyncadd [#allocation3], %s3800
      %s3803 = sshll.u32 [#allocation2], 4
      %s3804 = int_to_ptr.vmem [resolvable:$true] %s3803
      %3806 = dma.vmem_to_hbm [thread:$0]  %s3804, 32, %s6, [#allocation3]
    $region29: #{lstm_predictor.1} parent=1 // pred_fallthru
      _
    // Predicated region
    $region30: #{lstm_predictor.1} parent=1 // pred_check
      _
    $region31: #{lstm_predictor.1} parent=1 // pred_check_branch
      %3808 = sbr.rel (0) target = $region33
    $region32: #{lstm_predictor.1} parent=1 // pred_region
      %3809 = dma.done [#allocation3], 32
    $region33: #{lstm_predictor.1} parent=1 // pred_fallthru
      _
    %3810 = vsyncpa [#allocation3], 1

</llo_original>
